<compile_context>
chip_gen: v6e
topology: v6e:2x2x1
jax: 0.10.0
libtpu: 0.0.40
codegen_flags: <defaults>
</compile_context>

<pallas_src>
import numpy as np
import jax
import jax.numpy as jnp
from jax.experimental import pallas as pl
from jax.experimental.pallas import tpu as pltpu


def _small_matmul(a, b):
    """(M, K) @ (K, N) for tiny K via VPU broadcast+reduce (exact f32)."""
    return jnp.sum(a[:, :, None] * b[None, :, :], axis=1)


def _ca_kernel(x_ref, w1_ref, s1_ref, b1_ref, wh_ref, bh_ref, ww_ref, bw_ref,
               out_ref):
    """Fused CA forward for one batch element.

    x_ref  : (1, C, H, W)  input block (identity)
    w1_ref : (MIP, C)      conv1 1x1 weight
    s1_ref : (MIP, 1)      folded BN scale
    b1_ref : (MIP, 1)      folded conv1 bias + BN shift
    wh_ref : (C, MIP)      conv_h weight      bh_ref : (C, 1)
    ww_ref : (C, MIP)      conv_w weight      bw_ref : (C, 1)
    out_ref: (1, C, H, W)
    """
    x = x_ref[0]                                  # (C, H, W) f32

    # Directional average pools: AdaptiveAvgPool2d((H,1)) and ((1,W)).
    p_h = jnp.mean(x, axis=2)                     # (C, H)  avg over W
    p_w = jnp.mean(x, axis=1)                     # (C, W)  avg over H

    w1 = w1_ref[...]
    s1 = s1_ref[...]
    b1 = b1_ref[...]

    def bottleneck(p):
        # conv1 (1x1) + folded BN + h_swish.  conv1/BN/h_swish are per-channel,
        # so applying them separately to the H- and W-pooled halves is exactly
        # equivalent to the torch cat -> conv -> split path.
        y = _small_matmul(w1, p)                  # (MIP, S)
        y = y * s1 + b1
        return y * (jnp.clip(y + 3.0, 0.0, 6.0) * (1.0 / 6.0))   # h_swish

    y_h = bottleneck(p_h)                         # (MIP, H)
    y_w = bottleneck(p_w)                         # (MIP, W)

    a_h = jax.nn.sigmoid(_small_matmul(wh_ref[...], y_h) + bh_ref[...])  # (C, H)
    a_w = jax.nn.sigmoid(_small_matmul(ww_ref[...], y_w) + bw_ref[...])  # (C, W)

    # out = identity * a_w * a_h   (broadcast over W for a_h, over H for a_w)
    out_ref[0] = x * a_h[:, :, None] * a_w[:, None, :]


def ca_forward(x, params, *, eps=1e-5):
    """CA.forward (inference) with a fused Pallas kernel.  x: (N, C, H, W)."""
    n, c, h, w = x.shape
    w1 = params["conv1_w"].reshape(params["conv1_w"].shape[0], c)   # (mip, c)
    mip = w1.shape[0]
    oup = params["convh_w"].shape[0]
    assert oup == c, "CA residual multiply requires oup == input channels"

    # Fold conv1 bias + BatchNorm (eval mode) into a single scale / shift.
    scale = params["bn1_gamma"] / jnp.sqrt(params["bn1_var"] + eps)
    s1 = scale.reshape(mip, 1)
    b1 = ((params["conv1_b"] - params["bn1_mean"]) * scale
          + params["bn1_beta"]).reshape(mip, 1)

    wh = params["convh_w"].reshape(oup, mip)
    bh = params["convh_b"].reshape(oup, 1)
    ww = params["convw_w"].reshape(oup, mip)
    bw = params["convw_b"].reshape(oup, 1)

    return pl.pallas_call(
        _ca_kernel,
        out_shape=jax.ShapeDtypeStruct((n, c, h, w), x.dtype),
        grid=(n,),
        in_specs=[
            pl.BlockSpec((1, c, h, w), lambda i: (i, 0, 0, 0)),   # x
            pl.BlockSpec((mip, c), lambda i: (0, 0)),             # w1
            pl.BlockSpec((mip, 1), lambda i: (0, 0)),             # s1
            pl.BlockSpec((mip, 1), lambda i: (0, 0)),             # b1
            pl.BlockSpec((oup, mip), lambda i: (0, 0)),           # wh
            pl.BlockSpec((oup, 1), lambda i: (0, 0)),             # bh
            pl.BlockSpec((oup, mip), lambda i: (0, 0)),           # ww
            pl.BlockSpec((oup, 1), lambda i: (0, 0)),             # bw
        ],
        out_specs=pl.BlockSpec((1, c, h, w), lambda i: (i, 0, 0, 0)),
        compiler_params=pltpu.CompilerParams(
            dimension_semantics=("parallel",)),
    )(x, w1, s1, b1, wh, bh, ww, bw)


def _reference_forward(x, params, *, eps=1e-5):
    """Pure-JAX mirror of the PyTorch CA.forward (eval mode)."""
    n, c, h, w = x.shape
    w1 = params["conv1_w"].reshape(-1, c)                    # (mip, c)
    x_h = jnp.mean(x, axis=3, keepdims=True)                 # (n,c,h,1)
    x_w = jnp.mean(x, axis=2, keepdims=True)                 # (n,c,1,w)
    x_w = jnp.transpose(x_w, (0, 1, 3, 2))                   # (n,c,w,1)
    y = jnp.concatenate([x_h, x_w], axis=2)                  # (n,c,h+w,1)
    y = jnp.einsum("mc,nchs->nmhs", w1, y, precision="highest")
    y = y + params["conv1_b"][None, :, None, None]
    y = (y - params["bn1_mean"][None, :, None, None]) \
        / jnp.sqrt(params["bn1_var"] + eps)[None, :, None, None]
    y = y * params["bn1_gamma"][None, :, None, None] \
        + params["bn1_beta"][None, :, None, None]
    y = y * jnp.clip(y + 3.0, 0.0, 6.0) / 6.0                # h_swish
    y_h, y_w = y[:, :, :h, :], y[:, :, h:, :]
    y_w = jnp.transpose(y_w, (0, 1, 3, 2))                   # (n,mip,1,w)
    wh = params["convh_w"].reshape(c, -1)
    ww = params["convw_w"].reshape(c, -1)
    a_h = jax.nn.sigmoid(
        jnp.einsum("om,nmhs->nohs", wh, y_h, precision="highest")
        + params["convh_b"][None, :, None, None])            # (n,c,h,1)
    a_w = jax.nn.sigmoid(
        jnp.einsum("om,nmsw->nosw", ww, y_w, precision="highest")
        + params["convw_b"][None, :, None, None])            # (n,c,1,w)
    return x * a_w * a_h


if __name__ == "__main__":
    # CA(inp=32, oup=32, reduction=32) -> mip = max(8, 32//32) = 8
    n, inp, h, w = 2, 32, 16, 16
    oup = inp
    reduction = 32
    mip = max(8, inp // reduction)

    key = jax.random.PRNGKey(0)
    ks = jax.random.split(key, 11)
    x = jax.random.normal(ks[0], (n, inp, h, w), dtype=jnp.float32)
    params = {
        "conv1_w": 0.1 * jax.random.normal(ks[1], (mip, inp, 1, 1), jnp.float32),
        "conv1_b": 0.1 * jax.random.normal(ks[2], (mip,), jnp.float32),
        "bn1_gamma": 1.0 + 0.1 * jax.random.normal(ks[3], (mip,), jnp.float32),
        "bn1_beta": 0.1 * jax.random.normal(ks[4], (mip,), jnp.float32),
        "bn1_mean": 0.1 * jax.random.normal(ks[5], (mip,), jnp.float32),
        "bn1_var": jax.random.uniform(ks[6], (mip,), jnp.float32, 0.5, 1.5),
        "convh_w": 0.1 * jax.random.normal(ks[7], (oup, mip, 1, 1), jnp.float32),
        "convh_b": 0.1 * jax.random.normal(ks[8], (oup,), jnp.float32),
        "convw_w": 0.1 * jax.random.normal(ks[9], (oup, mip, 1, 1), jnp.float32),
        "convw_b": 0.1 * jax.random.normal(ks[10], (oup,), jnp.float32),
    }

    out = ca_forward(x, params)
    out = jax.block_until_ready(out)

    ref = _reference_forward(x, params)
    np.testing.assert_allclose(np.asarray(out), np.asarray(ref),
                               rtol=1e-4, atol=1e-4)
    assert out.shape == x.shape
    print("KERNEL_OK")
</pallas_src>

<mosaic_0001>
module attributes {stable_mosaic.version = 11 : i64} {
  func.func @_ca_kernel(%arg0: i32, %arg1: memref<1x32x16x16xf32, #tpu.memory_space<vmem>>, %arg2: memref<8x32xf32, #tpu.memory_space<vmem>>, %arg3: memref<8x1xf32, #tpu.memory_space<vmem>>, %arg4: memref<8x1xf32, #tpu.memory_space<vmem>>, %arg5: memref<32x8xf32, #tpu.memory_space<vmem>>, %arg6: memref<32x1xf32, #tpu.memory_space<vmem>>, %arg7: memref<32x8xf32, #tpu.memory_space<vmem>>, %arg8: memref<32x1xf32, #tpu.memory_space<vmem>>, %arg9: memref<1x32x16x16xf32, #tpu.memory_space<vmem>>) attributes {dimension_semantics = [#tpu.dimension_semantics<parallel>], iteration_bounds = array<i64: 2>, scalar_prefetch = 0 : i64, scratch_operands = 0 : i64, tpu.core_type = #tpu.core_type<tc>, window_params = [{transform_indices = @transform_0, window_bounds = array<i64: 1, 32, 16, 16>}, {pipeline_mode = #tpu.pipeline_mode<synchronous>, transform_indices = @transform_1, window_bounds = array<i64: 8, 32>}, {pipeline_mode = #tpu.pipeline_mode<synchronous>, transform_indices = @transform_2, window_bounds = array<i64: 8, 1>}, {pipeline_mode = #tpu.pipeline_mode<synchronous>, transform_indices = @transform_3, window_bounds = array<i64: 8, 1>}, {pipeline_mode = #tpu.pipeline_mode<synchronous>, transform_indices = @transform_4, window_bounds = array<i64: 32, 8>}, {pipeline_mode = #tpu.pipeline_mode<synchronous>, transform_indices = @transform_5, window_bounds = array<i64: 32, 1>}, {pipeline_mode = #tpu.pipeline_mode<synchronous>, transform_indices = @transform_6, window_bounds = array<i64: 32, 8>}, {pipeline_mode = #tpu.pipeline_mode<synchronous>, transform_indices = @transform_7, window_bounds = array<i64: 32, 1>}, {transform_indices = @transform_8, window_bounds = array<i64: 1, 32, 16, 16>}]} {
    %c0 = arith.constant 0 : index
    %c0_0 = arith.constant 0 : index
    %c0_1 = arith.constant 0 : index
    %c0_2 = arith.constant 0 : index
    %0 = vector.load %arg1[%c0, %c0_0, %c0_1, %c0_2] : memref<1x32x16x16xf32, #tpu.memory_space<vmem>>, vector<1x32x16x16xf32>
    %1 = vector.shape_cast %0 : vector<1x32x16x16xf32> to vector<32x16x16xf32>
    %cst = arith.constant dense<0.000000e+00> : vector<32x16xf32>
    %2 = vector.multi_reduction <add>, %1, %cst [2] : vector<32x16x16xf32> to vector<32x16xf32>
    %cst_3 = arith.constant 1.600000e+01 : f32
    %3 = vector.broadcast %cst_3 : f32 to vector<32x16xf32>
    %4 = arith.divf %2, %3 : vector<32x16xf32>
    %cst_4 = arith.constant dense<0.000000e+00> : vector<32x16xf32>
    %5 = vector.multi_reduction <add>, %1, %cst_4 [1] : vector<32x16x16xf32> to vector<32x16xf32>
    %cst_5 = arith.constant 1.600000e+01 : f32
    %6 = vector.broadcast %cst_5 : f32 to vector<32x16xf32>
    %7 = arith.divf %5, %6 : vector<32x16xf32>
    %c0_6 = arith.constant 0 : index
    %c0_7 = arith.constant 0 : index
    %8 = vector.load %arg2[%c0_6, %c0_7] : memref<8x32xf32, #tpu.memory_space<vmem>>, vector<8x32xf32>
    %c0_8 = arith.constant 0 : index
    %c0_9 = arith.constant 0 : index
    %9 = vector.load %arg3[%c0_8, %c0_9] : memref<8x1xf32, #tpu.memory_space<vmem>>, vector<8x1xf32>
    %c0_10 = arith.constant 0 : index
    %c0_11 = arith.constant 0 : index
    %10 = vector.load %arg4[%c0_10, %c0_11] : memref<8x1xf32, #tpu.memory_space<vmem>>, vector<8x1xf32>
    %11 = vector.shape_cast %8 : vector<8x32xf32> to vector<8x32x1xf32>
    %12 = vector.shape_cast %4 : vector<32x16xf32> to vector<1x32x16xf32>
    %13 = vector.broadcast %11 : vector<8x32x1xf32> to vector<8x32x16xf32>
    %14 = vector.broadcast %12 : vector<1x32x16xf32> to vector<8x32x16xf32>
    %15 = arith.mulf %13, %14 : vector<8x32x16xf32>
    %cst_12 = arith.constant dense<0.000000e+00> : vector<8x16xf32>
    %16 = vector.multi_reduction <add>, %15, %cst_12 [1] : vector<8x32x16xf32> to vector<8x16xf32>
    %17 = vector.broadcast %9 : vector<8x1xf32> to vector<8x16xf32>
    %18 = arith.mulf %16, %17 : vector<8x16xf32>
    %19 = vector.broadcast %10 : vector<8x1xf32> to vector<8x16xf32>
    %20 = arith.addf %18, %19 : vector<8x16xf32>
    %cst_13 = arith.constant 3.000000e+00 : f32
    %21 = vector.broadcast %cst_13 : f32 to vector<8x16xf32>
    %22 = arith.addf %20, %21 : vector<8x16xf32>
    %cst_14 = arith.constant 0.000000e+00 : f32
    %cst_15 = arith.constant 6.000000e+00 : f32
    %23 = vector.broadcast %cst_14 : f32 to vector<8x16xf32>
    %24 = arith.maximumf %23, %22 : vector<8x16xf32>
    %25 = vector.broadcast %cst_15 : f32 to vector<8x16xf32>
    %26 = arith.minimumf %25, %24 : vector<8x16xf32>
    %cst_16 = arith.constant 0.166666672 : f32
    %27 = vector.broadcast %cst_16 : f32 to vector<8x16xf32>
    %28 = arith.mulf %26, %27 : vector<8x16xf32>
    %29 = arith.mulf %20, %28 : vector<8x16xf32>
    %30 = vector.shape_cast %8 : vector<8x32xf32> to vector<8x32x1xf32>
    %31 = vector.shape_cast %7 : vector<32x16xf32> to vector<1x32x16xf32>
    %32 = vector.broadcast %30 : vector<8x32x1xf32> to vector<8x32x16xf32>
    %33 = vector.broadcast %31 : vector<1x32x16xf32> to vector<8x32x16xf32>
    %34 = arith.mulf %32, %33 : vector<8x32x16xf32>
    %cst_17 = arith.constant dense<0.000000e+00> : vector<8x16xf32>
    %35 = vector.multi_reduction <add>, %34, %cst_17 [1] : vector<8x32x16xf32> to vector<8x16xf32>
    %36 = vector.broadcast %9 : vector<8x1xf32> to vector<8x16xf32>
    %37 = arith.mulf %35, %36 : vector<8x16xf32>
    %38 = vector.broadcast %10 : vector<8x1xf32> to vector<8x16xf32>
    %39 = arith.addf %37, %38 : vector<8x16xf32>
    %cst_18 = arith.constant 3.000000e+00 : f32
    %40 = vector.broadcast %cst_18 : f32 to vector<8x16xf32>
    %41 = arith.addf %39, %40 : vector<8x16xf32>
    %cst_19 = arith.constant 0.000000e+00 : f32
    %cst_20 = arith.constant 6.000000e+00 : f32
    %42 = vector.broadcast %cst_19 : f32 to vector<8x16xf32>
    %43 = arith.maximumf %42, %41 : vector<8x16xf32>
    %44 = vector.broadcast %cst_20 : f32 to vector<8x16xf32>
    %45 = arith.minimumf %44, %43 : vector<8x16xf32>
    %cst_21 = arith.constant 0.166666672 : f32
    %46 = vector.broadcast %cst_21 : f32 to vector<8x16xf32>
    %47 = arith.mulf %45, %46 : vector<8x16xf32>
    %48 = arith.mulf %39, %47 : vector<8x16xf32>
    %c0_22 = arith.constant 0 : index
    %c0_23 = arith.constant 0 : index
    %49 = vector.load %arg5[%c0_22, %c0_23] : memref<32x8xf32, #tpu.memory_space<vmem>>, vector<32x8xf32>
    %50 = vector.shape_cast %49 : vector<32x8xf32> to vector<32x8x1xf32>
    %51 = vector.shape_cast %29 : vector<8x16xf32> to vector<1x8x16xf32>
    %52 = vector.broadcast %50 : vector<32x8x1xf32> to vector<32x8x16xf32>
    %53 = vector.broadcast %51 : vector<1x8x16xf32> to vector<32x8x16xf32>
    %54 = arith.mulf %52, %53 : vector<32x8x16xf32>
    %cst_24 = arith.constant dense<0.000000e+00> : vector<32x16xf32>
    %55 = vector.multi_reduction <add>, %54, %cst_24 [1] : vector<32x8x16xf32> to vector<32x16xf32>
    %c0_25 = arith.constant 0 : index
    %c0_26 = arith.constant 0 : index
    %56 = vector.load %arg6[%c0_25, %c0_26] : memref<32x1xf32, #tpu.memory_space<vmem>>, vector<32x1xf32>
    %57 = vector.broadcast %56 : vector<32x1xf32> to vector<32x16xf32>
    %58 = arith.addf %55, %57 : vector<32x16xf32>
    %59 = arith.negf %58 : vector<32x16xf32>
    %60 = math.exp %59 : vector<32x16xf32>
    %cst_27 = arith.constant 1.000000e+00 : f32
    %61 = vector.broadcast %cst_27 : f32 to vector<32x16xf32>
    %62 = arith.addf %61, %60 : vector<32x16xf32>
    %63 = arith.divf %61, %62 : vector<32x16xf32>
    %c0_28 = arith.constant 0 : index
    %c0_29 = arith.constant 0 : index
    %64 = vector.load %arg7[%c0_28, %c0_29] : memref<32x8xf32, #tpu.memory_space<vmem>>, vector<32x8xf32>
    %65 = vector.shape_cast %64 : vector<32x8xf32> to vector<32x8x1xf32>
    %66 = vector.shape_cast %48 : vector<8x16xf32> to vector<1x8x16xf32>
    %67 = vector.broadcast %65 : vector<32x8x1xf32> to vector<32x8x16xf32>
    %68 = vector.broadcast %66 : vector<1x8x16xf32> to vector<32x8x16xf32>
    %69 = arith.mulf %67, %68 : vector<32x8x16xf32>
    %cst_30 = arith.constant dense<0.000000e+00> : vector<32x16xf32>
    %70 = vector.multi_reduction <add>, %69, %cst_30 [1] : vector<32x8x16xf32> to vector<32x16xf32>
    %c0_31 = arith.constant 0 : index
    %c0_32 = arith.constant 0 : index
    %71 = vector.load %arg8[%c0_31, %c0_32] : memref<32x1xf32, #tpu.memory_space<vmem>>, vector<32x1xf32>
    %72 = vector.broadcast %71 : vector<32x1xf32> to vector<32x16xf32>
    %73 = arith.addf %70, %72 : vector<32x16xf32>
    %74 = arith.negf %73 : vector<32x16xf32>
    %75 = math.exp %74 : vector<32x16xf32>
    %cst_33 = arith.constant 1.000000e+00 : f32
    %76 = vector.broadcast %cst_33 : f32 to vector<32x16xf32>
    %77 = arith.addf %76, %75 : vector<32x16xf32>
    %78 = arith.divf %76, %77 : vector<32x16xf32>
    %79 = vector.shape_cast %63 : vector<32x16xf32> to vector<32x16x1xf32>
    %80 = vector.broadcast %79 : vector<32x16x1xf32> to vector<32x16x16xf32>
    %81 = arith.mulf %1, %80 : vector<32x16x16xf32>
    %82 = vector.shape_cast %78 : vector<32x16xf32> to vector<32x1x16xf32>
    %83 = vector.broadcast %82 : vector<32x1x16xf32> to vector<32x16x16xf32>
    %84 = arith.mulf %81, %83 : vector<32x16x16xf32>
    %c0_34 = arith.constant 0 : index
    %c0_35 = arith.constant 0 : index
    %c0_36 = arith.constant 0 : index
    %c0_37 = arith.constant 0 : index
    %85 = vector.load %arg9[%c0_34, %c0_35, %c0_36, %c0_37] : memref<1x32x16x16xf32, #tpu.memory_space<vmem>>, vector<1x32x16x16xf32>
    %86 = vector.shape_cast %85 : vector<1x32x16x16xf32> to vector<32x16x16xf32>
    %87 = vector.shape_cast %84 : vector<32x16x16xf32> to vector<1x32x16x16xf32>
    tpu.vector_store %arg9[%c0_34, %c0_35, %c0_36, %c0_37], %87 {strides = array<i32>} : memref<1x32x16x16xf32, #tpu.memory_space<vmem>>, vector<1x32x16x16xf32>,
    return
  }
  func.func @transform_0(%arg0: i32) -> (i32, i32, i32, i32) {
    %c0_i32 = arith.constant 0 : i32
    %c0_i32_0 = arith.constant 0 : i32
    %c0_i32_1 = arith.constant 0 : i32
    %c0_i32_2 = arith.constant 0 : i32
    return %arg0, %c0_i32, %c0_i32_0, %c0_i32_1 : i32, i32, i32, i32
  }
  func.func @transform_1(%arg0: i32) -> (i32, i32) {
    %c0_i32 = arith.constant 0 : i32
    %c0_i32_0 = arith.constant 0 : i32
    %c0_i32_1 = arith.constant 0 : i32
    return %c0_i32, %c0_i32_0 : i32, i32
  }
  func.func @transform_2(%arg0: i32) -> (i32, i32) {
    %c0_i32 = arith.constant 0 : i32
    %c0_i32_0 = arith.constant 0 : i32
    %c0_i32_1 = arith.constant 0 : i32
    return %c0_i32, %c0_i32_0 : i32, i32
  }
  func.func @transform_3(%arg0: i32) -> (i32, i32) {
    %c0_i32 = arith.constant 0 : i32
    %c0_i32_0 = arith.constant 0 : i32
    %c0_i32_1 = arith.constant 0 : i32
    return %c0_i32, %c0_i32_0 : i32, i32
  }
  func.func @transform_4(%arg0: i32) -> (i32, i32) {
    %c0_i32 = arith.constant 0 : i32
    %c0_i32_0 = arith.constant 0 : i32
    %c0_i32_1 = arith.constant 0 : i32
    return %c0_i32, %c0_i32_0 : i32, i32
  }
  func.func @transform_5(%arg0: i32) -> (i32, i32) {
    %c0_i32 = arith.constant 0 : i32
    %c0_i32_0 = arith.constant 0 : i32
    %c0_i32_1 = arith.constant 0 : i32
    return %c0_i32, %c0_i32_0 : i32, i32
  }
  func.func @transform_6(%arg0: i32) -> (i32, i32) {
    %c0_i32 = arith.constant 0 : i32
    %c0_i32_0 = arith.constant 0 : i32
    %c0_i32_1 = arith.constant 0 : i32
    return %c0_i32, %c0_i32_0 : i32, i32
  }
  func.func @transform_7(%arg0: i32) -> (i32, i32) {
    %c0_i32 = arith.constant 0 : i32
    %c0_i32_0 = arith.constant 0 : i32
    %c0_i32_1 = arith.constant 0 : i32
    return %c0_i32, %c0_i32_0 : i32, i32
  }
  func.func @transform_8(%arg0: i32) -> (i32, i32, i32, i32) {
    %c0_i32 = arith.constant 0 : i32
    %c0_i32_0 = arith.constant 0 : i32
    %c0_i32_1 = arith.constant 0 : i32
    %c0_i32_2 = arith.constant 0 : i32
    return %arg0, %c0_i32, %c0_i32_0, %c0_i32_1 : i32, i32, i32, i32
  }
}

</mosaic_0001>

<llo_original>
// kernel: tpu_custom_call.1
$region0: #{tpu_custom_call.1}
  #allocation0 [shape = 'u32[]', space=smem, size = 0x4, offset = 0x4, fixed_abs, tag = 'smem constant byte address 0x4 - core index']
  #allocation1 [shape = 'u32[144,128]{1,0:T(1,128)}', space=vmem, size = 0x12000, scoped, tag = 'internal scratch']
  %s0 = inlined_call_operand.vmem [shape: f32[2,32,16,16], index: 0, kind: input, shape index: {}]
  %s1 = inlined_call_operand.vmem [shape: f32[8,32], index: 1, kind: input, shape index: {}]
  %s2 = inlined_call_operand.vmem [shape: f32[8,1], index: 2, kind: input, shape index: {}]
  %s3 = inlined_call_operand.vmem [shape: f32[8,1], index: 3, kind: input, shape index: {}]
  %s4 = inlined_call_operand.vmem [shape: f32[32,8], index: 4, kind: input, shape index: {}]
  %s5 = inlined_call_operand.vmem [shape: f32[32,1], index: 5, kind: input, shape index: {}]
  %s6 = inlined_call_operand.vmem [shape: f32[32,8], index: 6, kind: input, shape index: {}]
  %s7 = inlined_call_operand.vmem [shape: f32[32,1], index: 7, kind: input, shape index: {}]
  %s8 = inlined_call_operand.vmem [shape: f32[2,32,16,16], index: 8, kind: output, shape index: {}]
  %s9 = sld [smem:[#allocation0]]
  $region65: #{tpu_custom_call.1} parent=0
    _
  %s11 = ssub.s32 1, %s9
  %s12 = scalar_select 0, %s11, %s9
  loop: start=0, step=1, limit=4
  $region2: #{tpu_custom_call.1} parent=0 // loop_pre_header
    _
  $region3: #{tpu_custom_call.1} parent=0 // loop_header
    %s14 = sphi 0, %s18
    %p15 = scmp.ge.s32.totalorder %s14, 4
    %s24 = sphi 0, %s26
    %s27 = sphi 0, %s24
    %s28 = sphi 0, %s27
    %s44 = sphi 0, %s28
    %s48 = sphi 0, %s48
    %s50 = sphi 0, %s48
    %s51 = sphi 0, %s50
    %s65 = sphi 0, %s51
    %s69 = sphi 0, %s69
    %s71 = sphi 0, %s69
    %s72 = sphi 0, %s71
    %s86 = sphi 0, %s72
    %s90 = sphi 0, %s90
    %s92 = sphi 0, %s90
    %s93 = sphi 0, %s92
    %s107 = sphi 0, %s93
    %s111 = sphi 0, %s111
    %s113 = sphi 0, %s111
    %s114 = sphi 0, %s113
    %s128 = sphi 0, %s114
    %s132 = sphi 0, %s132
    %s134 = sphi 0, %s132
    %s135 = sphi 0, %s134
    %s149 = sphi 0, %s135
    %s153 = sphi 0, %s153
    %s155 = sphi 0, %s153
    %s156 = sphi 0, %s155
    %s170 = sphi 0, %s156
    %s174 = sphi 0, %s174
    %s176 = sphi 0, %s174
    %s177 = sphi 0, %s176
    %s191 = sphi 0, %s177
    %s197 = sphi 0, %s199
    %s200 = sphi 0, %s197
    %s201 = sphi 0, %s200
    %s217 = sphi 0, %s201
  $region4: #{tpu_custom_call.1} parent=0 // loop_header_branch
    %17 = sbr.rel (%p15) target = $region8
  $region5: #{tpu_custom_call.1} parent=0 // loop_body
    %s19 = ssub.s32 %s14, 1
    %s20 = ssub.s32 %s14, 2
    %s21 = sadd.s32 %s14, 1
    %s22 = ssub.s32 %s14, %s21
    %p23 = scmp.eq.s32.totalorder %s22, 0
    %s25 = sadd.s32 %s24, 1
    %s26 = scalar_select %p23, %s24, %s25
    %p29 = pneg %p23
    %p30 = scmp.eq.s32.totalorder %s14, 1
    %p31 = por %p29, %p30
    %p32 = scmp.ne.s32.totalorder %s24, %s27
    %p33 = scmp.eq.s32.totalorder %s14, 0
    %p34 = por %p32, %p33
    %p35 = scmp.ne.s32.totalorder %s24, %s27
    %p36 = scmp.eq.s32.totalorder %s19, 1
    %p37 = por %p35, %p36
    %p38 = scmp.ne.s32.totalorder %s27, %s28
    %p39 = scmp.eq.s32.totalorder %s19, 0
    %p40 = por %p38, %p39
    %p41 = scmp.ne.s32.totalorder %s27, %s28
    %p42 = scmp.eq.s32.totalorder %s20, 1
    %p43 = por %p41, %p42
    %p45 = scmp.ne.s32.totalorder %s28, %s44
    %p46 = scmp.eq.s32.totalorder %s20, 0
    %p47 = por %p45, %p46
    %s49 = sadd.s32 %s48, 1
    %p52 = scmp.eq.s32.totalorder %s14, 1
    %p53 = scmp.ne.s32.totalorder %s48, %s50
    %p54 = scmp.eq.s32.totalorder %s14, 0
    %p55 = por %p53, %p54
    %p56 = scmp.ne.s32.totalorder %s48, %s50
    %p57 = scmp.eq.s32.totalorder %s19, 1
    %p58 = por %p56, %p57
    %p59 = scmp.ne.s32.totalorder %s50, %s51
    %p60 = scmp.eq.s32.totalorder %s19, 0
    %p61 = por %p59, %p60
    %p62 = scmp.ne.s32.totalorder %s50, %s51
    %p63 = scmp.eq.s32.totalorder %s20, 1
    %p64 = por %p62, %p63
    %p66 = scmp.ne.s32.totalorder %s51, %s65
    %p67 = scmp.eq.s32.totalorder %s20, 0
    %p68 = por %p66, %p67
    %s70 = sadd.s32 %s69, 1
    %p73 = scmp.eq.s32.totalorder %s14, 1
    %p74 = scmp.ne.s32.totalorder %s69, %s71
    %p75 = scmp.eq.s32.totalorder %s14, 0
    %p76 = por %p74, %p75
    %p77 = scmp.ne.s32.totalorder %s69, %s71
    %p78 = scmp.eq.s32.totalorder %s19, 1
    %p79 = por %p77, %p78
    %p80 = scmp.ne.s32.totalorder %s71, %s72
    %p81 = scmp.eq.s32.totalorder %s19, 0
    %p82 = por %p80, %p81
    %p83 = scmp.ne.s32.totalorder %s71, %s72
    %p84 = scmp.eq.s32.totalorder %s20, 1
    %p85 = por %p83, %p84
    %p87 = scmp.ne.s32.totalorder %s72, %s86
    %p88 = scmp.eq.s32.totalorder %s20, 0
    %p89 = por %p87, %p88
    %s91 = sadd.s32 %s90, 1
    %p94 = scmp.eq.s32.totalorder %s14, 1
    %p95 = scmp.ne.s32.totalorder %s90, %s92
    %p96 = scmp.eq.s32.totalorder %s14, 0
    %p97 = por %p95, %p96
    %p98 = scmp.ne.s32.totalorder %s90, %s92
    %p99 = scmp.eq.s32.totalorder %s19, 1
    %p100 = por %p98, %p99
    %p101 = scmp.ne.s32.totalorder %s92, %s93
    %p102 = scmp.eq.s32.totalorder %s19, 0
    %p103 = por %p101, %p102
    %p104 = scmp.ne.s32.totalorder %s92, %s93
    %p105 = scmp.eq.s32.totalorder %s20, 1
    %p106 = por %p104, %p105
    %p108 = scmp.ne.s32.totalorder %s93, %s107
    %p109 = scmp.eq.s32.totalorder %s20, 0
    %p110 = por %p108, %p109
    %s112 = sadd.s32 %s111, 1
    %p115 = scmp.eq.s32.totalorder %s14, 1
    %p116 = scmp.ne.s32.totalorder %s111, %s113
    %p117 = scmp.eq.s32.totalorder %s14, 0
    %p118 = por %p116, %p117
    %p119 = scmp.ne.s32.totalorder %s111, %s113
    %p120 = scmp.eq.s32.totalorder %s19, 1
    %p121 = por %p119, %p120
    %p122 = scmp.ne.s32.totalorder %s113, %s114
    %p123 = scmp.eq.s32.totalorder %s19, 0
    %p124 = por %p122, %p123
    %p125 = scmp.ne.s32.totalorder %s113, %s114
    %p126 = scmp.eq.s32.totalorder %s20, 1
    %p127 = por %p125, %p126
    %p129 = scmp.ne.s32.totalorder %s114, %s128
    %p130 = scmp.eq.s32.totalorder %s20, 0
    %p131 = por %p129, %p130
    %s133 = sadd.s32 %s132, 1
    %p136 = scmp.eq.s32.totalorder %s14, 1
    %p137 = scmp.ne.s32.totalorder %s132, %s134
    %p138 = scmp.eq.s32.totalorder %s14, 0
    %p139 = por %p137, %p138
    %p140 = scmp.ne.s32.totalorder %s132, %s134
    %p141 = scmp.eq.s32.totalorder %s19, 1
    %p142 = por %p140, %p141
    %p143 = scmp.ne.s32.totalorder %s134, %s135
    %p144 = scmp.eq.s32.totalorder %s19, 0
    %p145 = por %p143, %p144
    %p146 = scmp.ne.s32.totalorder %s134, %s135
    %p147 = scmp.eq.s32.totalorder %s20, 1
    %p148 = por %p146, %p147
    %p150 = scmp.ne.s32.totalorder %s135, %s149
    %p151 = scmp.eq.s32.totalorder %s20, 0
    %p152 = por %p150, %p151
    %s154 = sadd.s32 %s153, 1
    %p157 = scmp.eq.s32.totalorder %s14, 1
    %p158 = scmp.ne.s32.totalorder %s153, %s155
    %p159 = scmp.eq.s32.totalorder %s14, 0
    %p160 = por %p158, %p159
    %p161 = scmp.ne.s32.totalorder %s153, %s155
    %p162 = scmp.eq.s32.totalorder %s19, 1
    %p163 = por %p161, %p162
    %p164 = scmp.ne.s32.totalorder %s155, %s156
    %p165 = scmp.eq.s32.totalorder %s19, 0
    %p166 = por %p164, %p165
    %p167 = scmp.ne.s32.totalorder %s155, %s156
    %p168 = scmp.eq.s32.totalorder %s20, 1
    %p169 = por %p167, %p168
    %p171 = scmp.ne.s32.totalorder %s156, %s170
    %p172 = scmp.eq.s32.totalorder %s20, 0
    %p173 = por %p171, %p172
    %s175 = sadd.s32 %s174, 1
    %p178 = scmp.eq.s32.totalorder %s14, 1
    %p179 = scmp.ne.s32.totalorder %s174, %s176
    %p180 = scmp.eq.s32.totalorder %s14, 0
    %p181 = por %p179, %p180
    %p182 = scmp.ne.s32.totalorder %s174, %s176
    %p183 = scmp.eq.s32.totalorder %s19, 1
    %p184 = por %p182, %p183
    %p185 = scmp.ne.s32.totalorder %s176, %s177
    %p186 = scmp.eq.s32.totalorder %s19, 0
    %p187 = por %p185, %p186
    %p188 = scmp.ne.s32.totalorder %s176, %s177
    %p189 = scmp.eq.s32.totalorder %s20, 1
    %p190 = por %p188, %p189
    %p192 = scmp.ne.s32.totalorder %s177, %s191
    %p193 = scmp.eq.s32.totalorder %s20, 0
    %p194 = por %p192, %p193
    %s195 = ssub.s32 %s14, %s21
    %p196 = scmp.eq.s32.totalorder %s195, 0
    %s198 = sadd.s32 %s197, 1
    %s199 = scalar_select %p196, %s197, %s198
    %p202 = pneg %p196
    %p203 = scmp.eq.s32.totalorder %s14, 1
    %p204 = por %p202, %p203
    %p205 = scmp.ne.s32.totalorder %s197, %s200
    %p206 = scmp.eq.s32.totalorder %s14, 0
    %p207 = por %p205, %p206
    %p208 = scmp.ne.s32.totalorder %s197, %s200
    %p209 = scmp.eq.s32.totalorder %s19, 1
    %p210 = por %p208, %p209
    %p211 = scmp.ne.s32.totalorder %s200, %s201
    %p212 = scmp.eq.s32.totalorder %s19, 0
    %p213 = por %p211, %p212
    %p214 = scmp.ne.s32.totalorder %s200, %s201
    %p215 = scmp.eq.s32.totalorder %s20, 1
    %p216 = por %p214, %p215
    %p218 = scmp.ne.s32.totalorder %s201, %s217
    %p219 = scmp.eq.s32.totalorder %s20, 0
    %p220 = por %p218, %p219
    %p221 = scmp.le.s32.totalorder 1, %s14
    %p222 = scmp.lt.s32.totalorder %s14, 3
    %p223 = pnand %p221, %p222
    %p224 = pneg %p223
    // Predicated region
    $region9: #{tpu_custom_call.1} parent=5 // pred_check
      _
    $region10: #{tpu_custom_call.1} parent=5 // pred_check_branch
      %226 = sbr.rel (%p223) target = $region12
    $region11: #{tpu_custom_call.1} parent=5 // pred_region
      %s227 = ssub.s32 %s14, 1
      // Predicated region
      $region13: #{tpu_custom_call.1} parent=11 // pred_check
        %p228 = pneg %p61
      $region14: #{tpu_custom_call.1} parent=11 // pred_check_branch
        %230 = sbr.rel (%p228) target = $region16
      $region15: #{tpu_custom_call.1} parent=11 // pred_region
        _
      $region16: #{tpu_custom_call.1} parent=11 // pred_fallthru
        _
      // Predicated region
      $region17: #{tpu_custom_call.1} parent=11 // pred_check
        %p231 = pneg %p82
      $region18: #{tpu_custom_call.1} parent=11 // pred_check_branch
        %233 = sbr.rel (%p231) target = $region20
      $region19: #{tpu_custom_call.1} parent=11 // pred_region
        _
      $region20: #{tpu_custom_call.1} parent=11 // pred_fallthru
        _
      // Predicated region
      $region21: #{tpu_custom_call.1} parent=11 // pred_check
        %p234 = pneg %p103
      $region22: #{tpu_custom_call.1} parent=11 // pred_check_branch
        %236 = sbr.rel (%p234) target = $region24
      $region23: #{tpu_custom_call.1} parent=11 // pred_region
        _
      $region24: #{tpu_custom_call.1} parent=11 // pred_fallthru
        _
      // Predicated region
      $region25: #{tpu_custom_call.1} parent=11 // pred_check
        %p237 = pneg %p124
      $region26: #{tpu_custom_call.1} parent=11 // pred_check_branch
        %239 = sbr.rel (%p237) target = $region28
      $region27: #{tpu_custom_call.1} parent=11 // pred_region
        _
      $region28: #{tpu_custom_call.1} parent=11 // pred_fallthru
        _
      // Predicated region
      $region29: #{tpu_custom_call.1} parent=11 // pred_check
        %p240 = pneg %p145
      $region30: #{tpu_custom_call.1} parent=11 // pred_check_branch
        %242 = sbr.rel (%p240) target = $region32
      $region31: #{tpu_custom_call.1} parent=11 // pred_region
        _
      $region32: #{tpu_custom_call.1} parent=11 // pred_fallthru
        _
      // Predicated region
      $region33: #{tpu_custom_call.1} parent=11 // pred_check
        %p243 = pneg %p166
      $region34: #{tpu_custom_call.1} parent=11 // pred_check_branch
        %245 = sbr.rel (%p243) target = $region36
      $region35: #{tpu_custom_call.1} parent=11 // pred_region
        _
      $region36: #{tpu_custom_call.1} parent=11 // pred_fallthru
        _
      // Predicated region
      $region37: #{tpu_custom_call.1} parent=11 // pred_check
        %p246 = pneg %p187
      $region38: #{tpu_custom_call.1} parent=11 // pred_check_branch
        %248 = sbr.rel (%p246) target = $region40
      $region39: #{tpu_custom_call.1} parent=11 // pred_region
        _
      $region40: #{tpu_custom_call.1} parent=11 // pred_fallthru
        _
    $region12: #{tpu_custom_call.1} parent=5 // pred_fallthru
      _
    %p249 = scmp.lt.s32.totalorder %s14, 2
    // Predicated region
    $region41: #{tpu_custom_call.1} parent=5 // pred_check
      %p250 = pneg %p249
    $region42: #{tpu_custom_call.1} parent=5 // pred_check_branch
      %252 = sbr.rel (%p250) target = $region44
    $region43: #{tpu_custom_call.1} parent=5 // pred_region
      // Predicated region
      $region45: #{tpu_custom_call.1} parent=43 // pred_check
        %p253 = pneg %p34
      $region46: #{tpu_custom_call.1} parent=43 // pred_check_branch
        %255 = sbr.rel (%p253) target = $region48
      $region47: #{tpu_custom_call.1} parent=43 // pred_region
        %p256 = scmp.lt.s32.totalorder %s14, 1
        %s257 = scalar_select %p256, %s14, 1
        %s258 = smul.addr %s257, 64
        %s259 = smul.addr %s258, 8
        %s260 = scalar_lea.vmem %s0, %s259
      $region48: #{tpu_custom_call.1} parent=43 // pred_fallthru
        _
    $region44: #{tpu_custom_call.1} parent=5 // pred_fallthru
      _
    %p261 = scmp.le.s32.totalorder 1, %s14
    %p262 = scmp.lt.s32.totalorder %s14, 3
    %p263 = pnand %p261, %p262
    %p264 = pneg %p263
    // Predicated region
    $region49: #{tpu_custom_call.1} parent=5 // pred_check
      _
    $region50: #{tpu_custom_call.1} parent=5 // pred_check_branch
      %266 = sbr.rel (%p263) target = $region52
    $region51: #{tpu_custom_call.1} parent=5 // pred_region
      %s267 = ssub.s32 %s14, 1
      %p268 = scmp.lt.s32.totalorder %s19, 1
      %s269 = scalar_select %p268, %s19, 1
      %s270 = smul.addr %s269, 64
      %s271 = smul.addr %s270, 8
      %s272 = scalar_lea.vmem %s0, %s271
      %p273 = pneg %p40
      %p274 = pneg %p37
      %p275 = pneg %p61
      %p276 = pneg %p58
      %p277 = pneg %p82
      %p278 = pneg %p79
      %p279 = pneg %p103
      %p280 = pneg %p100
      %p281 = pneg %p124
      %p282 = pneg %p121
      %p283 = pneg %p145
      %p284 = pneg %p142
      %p285 = pneg %p166
      %p286 = pneg %p163
      %p287 = pneg %p187
      %p288 = pneg %p184
      %p289 = pneg %p213
      %p290 = pneg %p210
      %p291 = scmp.lt.s32.totalorder %s19, 1
      %s292 = scalar_select %p291, %s19, 1
      %s293 = smul.addr %s292, 64
      %s294 = smul.addr %s293, 8
      %s295 = scalar_lea.vmem %s8, %s294
      %p296 = scmp.lt.s32.totalorder %s19, 1
      %s297 = scalar_select %p296, %s19, 1
      %s298 = smul.addr %s297, 64
      %s299 = smul.addr %s298, 8
      %s300 = scalar_lea.vmem %s0, %s299
      %p301 = scmp.lt.s32.totalorder %s19, 1
      %s302 = scalar_select %p301, %s19, 1
      %s303 = smul.addr %s302, 64
      %s304 = smul.addr %s303, 8
      %s305 = scalar_lea.vmem %s8, %s304
      %v306 = vld [vmem:[%s300] sm:$0xff]
      %v307 = vld [vmem:[%s300 + $0x8] sm:$0xff]
      %v308 = vld [vmem:[%s300 + $0x10] sm:$0xff]
      %v309 = vld [vmem:[%s300 + $0x18] sm:$0xff]
      %v310 = vld [vmem:[%s300 + $0x20] sm:$0xff]
      %v311 = vld [vmem:[%s300 + $0x28] sm:$0xff]
      %v312 = vld [vmem:[%s300 + $0x30] sm:$0xff]
      %v313 = vld [vmem:[%s300 + $0x38] sm:$0xff]
      %v314 = vld [vmem:[%s300 + $0x40] sm:$0xff]
      %v315 = vld [vmem:[%s300 + $0x48] sm:$0xff]
      %v316 = vld [vmem:[%s300 + $0x50] sm:$0xff]
      %v317 = vld [vmem:[%s300 + $0x58] sm:$0xff]
      %v318 = vld [vmem:[%s300 + $0x60] sm:$0xff]
      %v319 = vld [vmem:[%s300 + $0x68] sm:$0xff]
      %v320 = vld [vmem:[%s300 + $0x70] sm:$0xff]
      %v321 = vld [vmem:[%s300 + $0x78] sm:$0xff]
      %v322 = vld [vmem:[%s300 + $0x80] sm:$0xff]
      %v323 = vld [vmem:[%s300 + $0x88] sm:$0xff]
      %v324 = vld [vmem:[%s300 + $0x90] sm:$0xff]
      %v325 = vld [vmem:[%s300 + $0x98] sm:$0xff]
      %v326 = vld [vmem:[%s300 + $0xa0] sm:$0xff]
      %v327 = vld [vmem:[%s300 + $0xa8] sm:$0xff]
      %v328 = vld [vmem:[%s300 + $0xb0] sm:$0xff]
      %v329 = vld [vmem:[%s300 + $0xb8] sm:$0xff]
      %v330 = vld [vmem:[%s300 + $0xc0] sm:$0xff]
      %v331 = vld [vmem:[%s300 + $0xc8] sm:$0xff]
      %v332 = vld [vmem:[%s300 + $0xd0] sm:$0xff]
      %v333 = vld [vmem:[%s300 + $0xd8] sm:$0xff]
      %v334 = vld [vmem:[%s300 + $0xe0] sm:$0xff]
      %v335 = vld [vmem:[%s300 + $0xe8] sm:$0xff]
      %v336 = vld [vmem:[%s300 + $0xf0] sm:$0xff]
      %v337 = vld [vmem:[%s300 + $0xf8] sm:$0xff]
      %v338 = vld [vmem:[%s300 + $0x100] sm:$0xff]
      %v339 = vld [vmem:[%s300 + $0x108] sm:$0xff]
      %v340 = vld [vmem:[%s300 + $0x110] sm:$0xff]
      %v341 = vld [vmem:[%s300 + $0x118] sm:$0xff]
      %v342 = vld [vmem:[%s300 + $0x120] sm:$0xff]
      %v343 = vld [vmem:[%s300 + $0x128] sm:$0xff]
      %v344 = vld [vmem:[%s300 + $0x130] sm:$0xff]
      %v345 = vld [vmem:[%s300 + $0x138] sm:$0xff]
      %v346 = vld [vmem:[%s300 + $0x140] sm:$0xff]
      %v347 = vld [vmem:[%s300 + $0x148] sm:$0xff]
      %v348 = vld [vmem:[%s300 + $0x150] sm:$0xff]
      %v349 = vld [vmem:[%s300 + $0x158] sm:$0xff]
      %v350 = vld [vmem:[%s300 + $0x160] sm:$0xff]
      %v351 = vld [vmem:[%s300 + $0x168] sm:$0xff]
      %v352 = vld [vmem:[%s300 + $0x170] sm:$0xff]
      %v353 = vld [vmem:[%s300 + $0x178] sm:$0xff]
      %v354 = vld [vmem:[%s300 + $0x180] sm:$0xff]
      %v355 = vld [vmem:[%s300 + $0x188] sm:$0xff]
      %v356 = vld [vmem:[%s300 + $0x190] sm:$0xff]
      %v357 = vld [vmem:[%s300 + $0x198] sm:$0xff]
      %v358 = vld [vmem:[%s300 + $0x1a0] sm:$0xff]
      %v359 = vld [vmem:[%s300 + $0x1a8] sm:$0xff]
      %v360 = vld [vmem:[%s300 + $0x1b0] sm:$0xff]
      %v361 = vld [vmem:[%s300 + $0x1b8] sm:$0xff]
      %v362 = vld [vmem:[%s300 + $0x1c0] sm:$0xff]
      %v363 = vld [vmem:[%s300 + $0x1c8] sm:$0xff]
      %v364 = vld [vmem:[%s300 + $0x1d0] sm:$0xff]
      %v365 = vld [vmem:[%s300 + $0x1d8] sm:$0xff]
      %v366 = vld [vmem:[%s300 + $0x1e0] sm:$0xff]
      %v367 = vld [vmem:[%s300 + $0x1e8] sm:$0xff]
      %v368 = vld [vmem:[%s300 + $0x1f0] sm:$0xff]
      %v369 = vld [vmem:[%s300 + $0x1f8] sm:$0xff]
      %vm370 = vcmask 130048
      %v371 = vsel %vm370, %v306, 0.0
      %372 = vadd.xlane.f32.xlu0 %v371
      %v373 = vpop.xlane.xlu0 %372
      %v374 = vsel %vm370, %v307, 0.0
      %375 = vadd.xlane.f32.xlu0 %v374
      %v376 = vpop.xlane.xlu0 %375
      %v377 = vsel %vm370, %v308, 0.0
      %378 = vadd.xlane.f32.xlu0 %v377
      %v379 = vpop.xlane.xlu0 %378
      %v380 = vsel %vm370, %v309, 0.0
      %381 = vadd.xlane.f32.xlu0 %v380
      %v382 = vpop.xlane.xlu0 %381
      %v383 = vsel %vm370, %v310, 0.0
      %384 = vadd.xlane.f32.xlu0 %v383
      %v385 = vpop.xlane.xlu0 %384
      %v386 = vsel %vm370, %v311, 0.0
      %387 = vadd.xlane.f32.xlu0 %v386
      %v388 = vpop.xlane.xlu0 %387
      %v389 = vsel %vm370, %v312, 0.0
      %390 = vadd.xlane.f32.xlu0 %v389
      %v391 = vpop.xlane.xlu0 %390
      %v392 = vsel %vm370, %v313, 0.0
      %393 = vadd.xlane.f32.xlu0 %v392
      %v394 = vpop.xlane.xlu0 %393
      %v395 = vsel %vm370, %v314, 0.0
      %396 = vadd.xlane.f32.xlu0 %v395
      %v397 = vpop.xlane.xlu0 %396
      %v398 = vsel %vm370, %v315, 0.0
      %399 = vadd.xlane.f32.xlu0 %v398
      %v400 = vpop.xlane.xlu0 %399
      %v401 = vsel %vm370, %v316, 0.0
      %402 = vadd.xlane.f32.xlu0 %v401
      %v403 = vpop.xlane.xlu0 %402
      %v404 = vsel %vm370, %v317, 0.0
      %405 = vadd.xlane.f32.xlu0 %v404
      %v406 = vpop.xlane.xlu0 %405
      %v407 = vsel %vm370, %v318, 0.0
      %408 = vadd.xlane.f32.xlu0 %v407
      %v409 = vpop.xlane.xlu0 %408
      %v410 = vsel %vm370, %v319, 0.0
      %411 = vadd.xlane.f32.xlu0 %v410
      %v412 = vpop.xlane.xlu0 %411
      %v413 = vsel %vm370, %v320, 0.0
      %414 = vadd.xlane.f32.xlu0 %v413
      %v415 = vpop.xlane.xlu0 %414
      %v416 = vsel %vm370, %v321, 0.0
      %417 = vadd.xlane.f32.xlu0 %v416
      %v418 = vpop.xlane.xlu0 %417
      %v419 = vsel %vm370, %v322, 0.0
      %420 = vadd.xlane.f32.xlu0 %v419
      %v421 = vpop.xlane.xlu0 %420
      %v422 = vsel %vm370, %v323, 0.0
      %423 = vadd.xlane.f32.xlu0 %v422
      %v424 = vpop.xlane.xlu0 %423
      %v425 = vsel %vm370, %v324, 0.0
      %426 = vadd.xlane.f32.xlu0 %v425
      %v427 = vpop.xlane.xlu0 %426
      %v428 = vsel %vm370, %v325, 0.0
      %429 = vadd.xlane.f32.xlu0 %v428
      %v430 = vpop.xlane.xlu0 %429
      %v431 = vsel %vm370, %v326, 0.0
      %432 = vadd.xlane.f32.xlu0 %v431
      %v433 = vpop.xlane.xlu0 %432
      %v434 = vsel %vm370, %v327, 0.0
      %435 = vadd.xlane.f32.xlu0 %v434
      %v436 = vpop.xlane.xlu0 %435
      %v437 = vsel %vm370, %v328, 0.0
      %438 = vadd.xlane.f32.xlu0 %v437
      %v439 = vpop.xlane.xlu0 %438
      %v440 = vsel %vm370, %v329, 0.0
      %441 = vadd.xlane.f32.xlu0 %v440
      %v442 = vpop.xlane.xlu0 %441
      %v443 = vsel %vm370, %v330, 0.0
      %444 = vadd.xlane.f32.xlu0 %v443
      %v445 = vpop.xlane.xlu0 %444
      %v446 = vsel %vm370, %v331, 0.0
      %447 = vadd.xlane.f32.xlu0 %v446
      %v448 = vpop.xlane.xlu0 %447
      %v449 = vsel %vm370, %v332, 0.0
      %450 = vadd.xlane.f32.xlu0 %v449
      %v451 = vpop.xlane.xlu0 %450
      %v452 = vsel %vm370, %v333, 0.0
      %453 = vadd.xlane.f32.xlu0 %v452
      %v454 = vpop.xlane.xlu0 %453
      %v455 = vsel %vm370, %v334, 0.0
      %456 = vadd.xlane.f32.xlu0 %v455
      %v457 = vpop.xlane.xlu0 %456
      %v458 = vsel %vm370, %v335, 0.0
      %459 = vadd.xlane.f32.xlu0 %v458
      %v460 = vpop.xlane.xlu0 %459
      %v461 = vsel %vm370, %v336, 0.0
      %462 = vadd.xlane.f32.xlu0 %v461
      %v463 = vpop.xlane.xlu0 %462
      %v464 = vsel %vm370, %v337, 0.0
      %465 = vadd.xlane.f32.xlu0 %v464
      %v466 = vpop.xlane.xlu0 %465
      %v467 = vsel %vm370, %v338, 0.0
      %468 = vadd.xlane.f32.xlu0 %v467
      %v469 = vpop.xlane.xlu0 %468
      %v470 = vsel %vm370, %v339, 0.0
      %471 = vadd.xlane.f32.xlu0 %v470
      %v472 = vpop.xlane.xlu0 %471
      %v473 = vsel %vm370, %v340, 0.0
      %474 = vadd.xlane.f32.xlu0 %v473
      %v475 = vpop.xlane.xlu0 %474
      %v476 = vsel %vm370, %v341, 0.0
      %477 = vadd.xlane.f32.xlu0 %v476
      %v478 = vpop.xlane.xlu0 %477
      %v479 = vsel %vm370, %v342, 0.0
      %480 = vadd.xlane.f32.xlu0 %v479
      %v481 = vpop.xlane.xlu0 %480
      %v482 = vsel %vm370, %v343, 0.0
      %483 = vadd.xlane.f32.xlu0 %v482
      %v484 = vpop.xlane.xlu0 %483
      %v485 = vsel %vm370, %v344, 0.0
      %486 = vadd.xlane.f32.xlu0 %v485
      %v487 = vpop.xlane.xlu0 %486
      %v488 = vsel %vm370, %v345, 0.0
      %489 = vadd.xlane.f32.xlu0 %v488
      %v490 = vpop.xlane.xlu0 %489
      %v491 = vsel %vm370, %v346, 0.0
      %492 = vadd.xlane.f32.xlu0 %v491
      %v493 = vpop.xlane.xlu0 %492
      %v494 = vsel %vm370, %v347, 0.0
      %495 = vadd.xlane.f32.xlu0 %v494
      %v496 = vpop.xlane.xlu0 %495
      %v497 = vsel %vm370, %v348, 0.0
      %498 = vadd.xlane.f32.xlu0 %v497
      %v499 = vpop.xlane.xlu0 %498
      %v500 = vsel %vm370, %v349, 0.0
      %501 = vadd.xlane.f32.xlu0 %v500
      %v502 = vpop.xlane.xlu0 %501
      %v503 = vsel %vm370, %v350, 0.0
      %504 = vadd.xlane.f32.xlu0 %v503
      %v505 = vpop.xlane.xlu0 %504
      %v506 = vsel %vm370, %v351, 0.0
      %507 = vadd.xlane.f32.xlu0 %v506
      %v508 = vpop.xlane.xlu0 %507
      %v509 = vsel %vm370, %v352, 0.0
      %510 = vadd.xlane.f32.xlu0 %v509
      %v511 = vpop.xlane.xlu0 %510
      %v512 = vsel %vm370, %v353, 0.0
      %513 = vadd.xlane.f32.xlu0 %v512
      %v514 = vpop.xlane.xlu0 %513
      %v515 = vsel %vm370, %v354, 0.0
      %516 = vadd.xlane.f32.xlu0 %v515
      %v517 = vpop.xlane.xlu0 %516
      %v518 = vsel %vm370, %v355, 0.0
      %519 = vadd.xlane.f32.xlu0 %v518
      %v520 = vpop.xlane.xlu0 %519
      %v521 = vsel %vm370, %v356, 0.0
      %522 = vadd.xlane.f32.xlu0 %v521
      %v523 = vpop.xlane.xlu0 %522
      %v524 = vsel %vm370, %v357, 0.0
      %525 = vadd.xlane.f32.xlu0 %v524
      %v526 = vpop.xlane.xlu0 %525
      %v527 = vsel %vm370, %v358, 0.0
      %528 = vadd.xlane.f32.xlu0 %v527
      %v529 = vpop.xlane.xlu0 %528
      %v530 = vsel %vm370, %v359, 0.0
      %531 = vadd.xlane.f32.xlu0 %v530
      %v532 = vpop.xlane.xlu0 %531
      %v533 = vsel %vm370, %v360, 0.0
      %534 = vadd.xlane.f32.xlu0 %v533
      %v535 = vpop.xlane.xlu0 %534
      %v536 = vsel %vm370, %v361, 0.0
      %537 = vadd.xlane.f32.xlu0 %v536
      %v538 = vpop.xlane.xlu0 %537
      %v539 = vsel %vm370, %v362, 0.0
      %540 = vadd.xlane.f32.xlu0 %v539
      %v541 = vpop.xlane.xlu0 %540
      %v542 = vsel %vm370, %v363, 0.0
      %543 = vadd.xlane.f32.xlu0 %v542
      %v544 = vpop.xlane.xlu0 %543
      %v545 = vsel %vm370, %v364, 0.0
      %546 = vadd.xlane.f32.xlu0 %v545
      %v547 = vpop.xlane.xlu0 %546
      %v548 = vsel %vm370, %v365, 0.0
      %549 = vadd.xlane.f32.xlu0 %v548
      %v550 = vpop.xlane.xlu0 %549
      %v551 = vsel %vm370, %v366, 0.0
      %552 = vadd.xlane.f32.xlu0 %v551
      %v553 = vpop.xlane.xlu0 %552
      %v554 = vsel %vm370, %v367, 0.0
      %555 = vadd.xlane.f32.xlu0 %v554
      %v556 = vpop.xlane.xlu0 %555
      %v557 = vsel %vm370, %v368, 0.0
      %558 = vadd.xlane.f32.xlu0 %v557
      %v559 = vpop.xlane.xlu0 %558
      %v560 = vsel %vm370, %v369, 0.0
      %561 = vadd.xlane.f32.xlu0 %v560
      %v562 = vpop.xlane.xlu0 %561
      %v563 = vrcp.pop 16.0
      %v564 = vmul.f32 %v373, %v563
      %v565 = vmul.f32 %v376, %v563
      %v566 = vmul.f32 %v379, %v563
      %v567 = vmul.f32 %v382, %v563
      %v568 = vmul.f32 %v385, %v563
      %v569 = vmul.f32 %v388, %v563
      %v570 = vmul.f32 %v391, %v563
      %v571 = vmul.f32 %v394, %v563
      %v572 = vmul.f32 %v397, %v563
      %v573 = vmul.f32 %v400, %v563
      %v574 = vmul.f32 %v403, %v563
      %v575 = vmul.f32 %v406, %v563
      %v576 = vmul.f32 %v409, %v563
      %v577 = vmul.f32 %v412, %v563
      %v578 = vmul.f32 %v415, %v563
      %v579 = vmul.f32 %v418, %v563
      %v580 = vmul.f32 %v421, %v563
      %v581 = vmul.f32 %v424, %v563
      %v582 = vmul.f32 %v427, %v563
      %v583 = vmul.f32 %v430, %v563
      %v584 = vmul.f32 %v433, %v563
      %v585 = vmul.f32 %v436, %v563
      %v586 = vmul.f32 %v439, %v563
      %v587 = vmul.f32 %v442, %v563
      %v588 = vmul.f32 %v445, %v563
      %v589 = vmul.f32 %v448, %v563
      %v590 = vmul.f32 %v451, %v563
      %v591 = vmul.f32 %v454, %v563
      %v592 = vmul.f32 %v457, %v563
      %v593 = vmul.f32 %v460, %v563
      %v594 = vmul.f32 %v463, %v563
      %v595 = vmul.f32 %v466, %v563
      %v596 = vmul.f32 %v469, %v563
      %v597 = vmul.f32 %v472, %v563
      %v598 = vmul.f32 %v475, %v563
      %v599 = vmul.f32 %v478, %v563
      %v600 = vmul.f32 %v481, %v563
      %v601 = vmul.f32 %v484, %v563
      %v602 = vmul.f32 %v487, %v563
      %v603 = vmul.f32 %v490, %v563
      %v604 = vmul.f32 %v493, %v563
      %v605 = vmul.f32 %v496, %v563
      %v606 = vmul.f32 %v499, %v563
      %v607 = vmul.f32 %v502, %v563
      %v608 = vmul.f32 %v505, %v563
      %v609 = vmul.f32 %v508, %v563
      %v610 = vmul.f32 %v511, %v563
      %v611 = vmul.f32 %v514, %v563
      %v612 = vmul.f32 %v517, %v563
      %v613 = vmul.f32 %v520, %v563
      %v614 = vmul.f32 %v523, %v563
      %v615 = vmul.f32 %v526, %v563
      %v616 = vmul.f32 %v529, %v563
      %v617 = vmul.f32 %v532, %v563
      %v618 = vmul.f32 %v535, %v563
      %v619 = vmul.f32 %v538, %v563
      %v620 = vmul.f32 %v541, %v563
      %v621 = vmul.f32 %v544, %v563
      %v622 = vmul.f32 %v547, %v563
      %v623 = vmul.f32 %v550, %v563
      %v624 = vmul.f32 %v553, %v563
      %v625 = vmul.f32 %v556, %v563
      %v626 = vmul.f32 %v559, %v563
      %v627 = vmul.f32 %v562, %v563
      %v628 = vadd.f32 %v371, %v374
      %v629 = vrot.slane %v628, 4
      %v630 = vadd.f32 %v628, %v629
      %v631 = vrot.slane %v630, 2
      %v632 = vadd.f32 %v630, %v631
      %v633 = vrot.slane %v632, 1
      %v634 = vadd.f32 %v632, %v633
      %v635 = vadd.f32 %v377, %v380
      %v636 = vrot.slane %v635, 4
      %v637 = vadd.f32 %v635, %v636
      %v638 = vrot.slane %v637, 2
      %v639 = vadd.f32 %v637, %v638
      %v640 = vrot.slane %v639, 1
      %v641 = vadd.f32 %v639, %v640
      %v642 = vadd.f32 %v383, %v386
      %v643 = vrot.slane %v642, 4
      %v644 = vadd.f32 %v642, %v643
      %v645 = vrot.slane %v644, 2
      %v646 = vadd.f32 %v644, %v645
      %v647 = vrot.slane %v646, 1
      %v648 = vadd.f32 %v646, %v647
      %v649 = vadd.f32 %v389, %v392
      %v650 = vrot.slane %v649, 4
      %v651 = vadd.f32 %v649, %v650
      %v652 = vrot.slane %v651, 2
      %v653 = vadd.f32 %v651, %v652
      %v654 = vrot.slane %v653, 1
      %v655 = vadd.f32 %v653, %v654
      %v656 = vadd.f32 %v395, %v398
      %v657 = vrot.slane %v656, 4
      %v658 = vadd.f32 %v656, %v657
      %v659 = vrot.slane %v658, 2
      %v660 = vadd.f32 %v658, %v659
      %v661 = vrot.slane %v660, 1
      %v662 = vadd.f32 %v660, %v661
      %v663 = vadd.f32 %v401, %v404
      %v664 = vrot.slane %v663, 4
      %v665 = vadd.f32 %v663, %v664
      %v666 = vrot.slane %v665, 2
      %v667 = vadd.f32 %v665, %v666
      %v668 = vrot.slane %v667, 1
      %v669 = vadd.f32 %v667, %v668
      %v670 = vadd.f32 %v407, %v410
      %v671 = vrot.slane %v670, 4
      %v672 = vadd.f32 %v670, %v671
      %v673 = vrot.slane %v672, 2
      %v674 = vadd.f32 %v672, %v673
      %v675 = vrot.slane %v674, 1
      %v676 = vadd.f32 %v674, %v675
      %v677 = vadd.f32 %v413, %v416
      %v678 = vrot.slane %v677, 4
      %v679 = vadd.f32 %v677, %v678
      %v680 = vrot.slane %v679, 2
      %v681 = vadd.f32 %v679, %v680
      %v682 = vrot.slane %v681, 1
      %v683 = vadd.f32 %v681, %v682
      %v684 = vadd.f32 %v419, %v422
      %v685 = vrot.slane %v684, 4
      %v686 = vadd.f32 %v684, %v685
      %v687 = vrot.slane %v686, 2
      %v688 = vadd.f32 %v686, %v687
      %v689 = vrot.slane %v688, 1
      %v690 = vadd.f32 %v688, %v689
      %v691 = vadd.f32 %v425, %v428
      %v692 = vrot.slane %v691, 4
      %v693 = vadd.f32 %v691, %v692
      %v694 = vrot.slane %v693, 2
      %v695 = vadd.f32 %v693, %v694
      %v696 = vrot.slane %v695, 1
      %v697 = vadd.f32 %v695, %v696
      %v698 = vadd.f32 %v431, %v434
      %v699 = vrot.slane %v698, 4
      %v700 = vadd.f32 %v698, %v699
      %v701 = vrot.slane %v700, 2
      %v702 = vadd.f32 %v700, %v701
      %v703 = vrot.slane %v702, 1
      %v704 = vadd.f32 %v702, %v703
      %v705 = vadd.f32 %v437, %v440
      %v706 = vrot.slane %v705, 4
      %v707 = vadd.f32 %v705, %v706
      %v708 = vrot.slane %v707, 2
      %v709 = vadd.f32 %v707, %v708
      %v710 = vrot.slane %v709, 1
      %v711 = vadd.f32 %v709, %v710
      %v712 = vadd.f32 %v443, %v446
      %v713 = vrot.slane %v712, 4
      %v714 = vadd.f32 %v712, %v713
      %v715 = vrot.slane %v714, 2
      %v716 = vadd.f32 %v714, %v715
      %v717 = vrot.slane %v716, 1
      %v718 = vadd.f32 %v716, %v717
      %v719 = vadd.f32 %v449, %v452
      %v720 = vrot.slane %v719, 4
      %v721 = vadd.f32 %v719, %v720
      %v722 = vrot.slane %v721, 2
      %v723 = vadd.f32 %v721, %v722
      %v724 = vrot.slane %v723, 1
      %v725 = vadd.f32 %v723, %v724
      %v726 = vadd.f32 %v455, %v458
      %v727 = vrot.slane %v726, 4
      %v728 = vadd.f32 %v726, %v727
      %v729 = vrot.slane %v728, 2
      %v730 = vadd.f32 %v728, %v729
      %v731 = vrot.slane %v730, 1
      %v732 = vadd.f32 %v730, %v731
      %v733 = vadd.f32 %v461, %v464
      %v734 = vrot.slane %v733, 4
      %v735 = vadd.f32 %v733, %v734
      %v736 = vrot.slane %v735, 2
      %v737 = vadd.f32 %v735, %v736
      %v738 = vrot.slane %v737, 1
      %v739 = vadd.f32 %v737, %v738
      %v740 = vadd.f32 %v467, %v470
      %v741 = vrot.slane %v740, 4
      %v742 = vadd.f32 %v740, %v741
      %v743 = vrot.slane %v742, 2
      %v744 = vadd.f32 %v742, %v743
      %v745 = vrot.slane %v744, 1
      %v746 = vadd.f32 %v744, %v745
      %v747 = vadd.f32 %v473, %v476
      %v748 = vrot.slane %v747, 4
      %v749 = vadd.f32 %v747, %v748
      %v750 = vrot.slane %v749, 2
      %v751 = vadd.f32 %v749, %v750
      %v752 = vrot.slane %v751, 1
      %v753 = vadd.f32 %v751, %v752
      %v754 = vadd.f32 %v479, %v482
      %v755 = vrot.slane %v754, 4
      %v756 = vadd.f32 %v754, %v755
      %v757 = vrot.slane %v756, 2
      %v758 = vadd.f32 %v756, %v757
      %v759 = vrot.slane %v758, 1
      %v760 = vadd.f32 %v758, %v759
      %v761 = vadd.f32 %v485, %v488
      %v762 = vrot.slane %v761, 4
      %v763 = vadd.f32 %v761, %v762
      %v764 = vrot.slane %v763, 2
      %v765 = vadd.f32 %v763, %v764
      %v766 = vrot.slane %v765, 1
      %v767 = vadd.f32 %v765, %v766
      %v768 = vadd.f32 %v491, %v494
      %v769 = vrot.slane %v768, 4
      %v770 = vadd.f32 %v768, %v769
      %v771 = vrot.slane %v770, 2
      %v772 = vadd.f32 %v770, %v771
      %v773 = vrot.slane %v772, 1
      %v774 = vadd.f32 %v772, %v773
      %v775 = vadd.f32 %v497, %v500
      %v776 = vrot.slane %v775, 4
      %v777 = vadd.f32 %v775, %v776
      %v778 = vrot.slane %v777, 2
      %v779 = vadd.f32 %v777, %v778
      %v780 = vrot.slane %v779, 1
      %v781 = vadd.f32 %v779, %v780
      %v782 = vadd.f32 %v503, %v506
      %v783 = vrot.slane %v782, 4
      %v784 = vadd.f32 %v782, %v783
      %v785 = vrot.slane %v784, 2
      %v786 = vadd.f32 %v784, %v785
      %v787 = vrot.slane %v786, 1
      %v788 = vadd.f32 %v786, %v787
      %v789 = vadd.f32 %v509, %v512
      %v790 = vrot.slane %v789, 4
      %v791 = vadd.f32 %v789, %v790
      %v792 = vrot.slane %v791, 2
      %v793 = vadd.f32 %v791, %v792
      %v794 = vrot.slane %v793, 1
      %v795 = vadd.f32 %v793, %v794
      %v796 = vadd.f32 %v515, %v518
      %v797 = vrot.slane %v796, 4
      %v798 = vadd.f32 %v796, %v797
      %v799 = vrot.slane %v798, 2
      %v800 = vadd.f32 %v798, %v799
      %v801 = vrot.slane %v800, 1
      %v802 = vadd.f32 %v800, %v801
      %v803 = vadd.f32 %v521, %v524
      %v804 = vrot.slane %v803, 4
      %v805 = vadd.f32 %v803, %v804
      %v806 = vrot.slane %v805, 2
      %v807 = vadd.f32 %v805, %v806
      %v808 = vrot.slane %v807, 1
      %v809 = vadd.f32 %v807, %v808
      %v810 = vadd.f32 %v527, %v530
      %v811 = vrot.slane %v810, 4
      %v812 = vadd.f32 %v810, %v811
      %v813 = vrot.slane %v812, 2
      %v814 = vadd.f32 %v812, %v813
      %v815 = vrot.slane %v814, 1
      %v816 = vadd.f32 %v814, %v815
      %v817 = vadd.f32 %v533, %v536
      %v818 = vrot.slane %v817, 4
      %v819 = vadd.f32 %v817, %v818
      %v820 = vrot.slane %v819, 2
      %v821 = vadd.f32 %v819, %v820
      %v822 = vrot.slane %v821, 1
      %v823 = vadd.f32 %v821, %v822
      %v824 = vadd.f32 %v539, %v542
      %v825 = vrot.slane %v824, 4
      %v826 = vadd.f32 %v824, %v825
      %v827 = vrot.slane %v826, 2
      %v828 = vadd.f32 %v826, %v827
      %v829 = vrot.slane %v828, 1
      %v830 = vadd.f32 %v828, %v829
      %v831 = vadd.f32 %v545, %v548
      %v832 = vrot.slane %v831, 4
      %v833 = vadd.f32 %v831, %v832
      %v834 = vrot.slane %v833, 2
      %v835 = vadd.f32 %v833, %v834
      %v836 = vrot.slane %v835, 1
      %v837 = vadd.f32 %v835, %v836
      %v838 = vadd.f32 %v551, %v554
      %v839 = vrot.slane %v838, 4
      %v840 = vadd.f32 %v838, %v839
      %v841 = vrot.slane %v840, 2
      %v842 = vadd.f32 %v840, %v841
      %v843 = vrot.slane %v842, 1
      %v844 = vadd.f32 %v842, %v843
      %v845 = vadd.f32 %v557, %v560
      %v846 = vrot.slane %v845, 4
      %v847 = vadd.f32 %v845, %v846
      %v848 = vrot.slane %v847, 2
      %v849 = vadd.f32 %v847, %v848
      %v850 = vrot.slane %v849, 1
      %v851 = vadd.f32 %v849, %v850
      %v852 = vmul.f32 %v634, %v563
      %v853 = vmul.f32 %v641, %v563
      %v854 = vmul.f32 %v648, %v563
      %v855 = vmul.f32 %v655, %v563
      %v856 = vmul.f32 %v662, %v563
      %v857 = vmul.f32 %v669, %v563
      %v858 = vmul.f32 %v676, %v563
      %v859 = vmul.f32 %v683, %v563
      %v860 = vmul.f32 %v690, %v563
      %v861 = vmul.f32 %v697, %v563
      %v862 = vmul.f32 %v704, %v563
      %v863 = vmul.f32 %v711, %v563
      %v864 = vmul.f32 %v718, %v563
      %v865 = vmul.f32 %v725, %v563
      %v866 = vmul.f32 %v732, %v563
      %v867 = vmul.f32 %v739, %v563
      %v868 = vmul.f32 %v746, %v563
      %v869 = vmul.f32 %v753, %v563
      %v870 = vmul.f32 %v760, %v563
      %v871 = vmul.f32 %v767, %v563
      %v872 = vmul.f32 %v774, %v563
      %v873 = vmul.f32 %v781, %v563
      %v874 = vmul.f32 %v788, %v563
      %v875 = vmul.f32 %v795, %v563
      %v876 = vmul.f32 %v802, %v563
      %v877 = vmul.f32 %v809, %v563
      %v878 = vmul.f32 %v816, %v563
      %v879 = vmul.f32 %v823, %v563
      %v880 = vmul.f32 %v830, %v563
      %v881 = vmul.f32 %v837, %v563
      %v882 = vmul.f32 %v844, %v563
      %v883 = vmul.f32 %v851, %v563
      %v884 = vld [vmem:[%s1] sm:$0xff]
      %v885 = vld [vmem:[%s2] sm:$0xff]
      %v886 = vld [vmem:[%s3] sm:$0xff]
      %v887 = vlaneseq
      %v888 = vshrl.u32 %v887, 7
      %v889 = vsub.s32 0, %v888
      %v890 = vrot.slane %v884, %v889
      %892 = vbcast.lane.b32.xlu0 %v890, 256
      %v893 = vpop.permute.xlu0 %892
      %s895 = sor.u32 256, 8
      %896 = vbcast.lane.b32.xlu0 %v890, %s895
      %v897 = vpop.permute.xlu0 %896
      %s899 = sor.u32 256, 16
      %900 = vbcast.lane.b32.xlu0 %v890, %s899
      %v901 = vpop.permute.xlu0 %900
      %s903 = sor.u32 256, 24
      %904 = vbcast.lane.b32.xlu0 %v890, %s903
      %v905 = vpop.permute.xlu0 %904
      %v906 = vlaneseq
      %v907 = vshrl.u32 %v906, 7
      %v908 = vsub.s32 1, %v907
      %v909 = vrot.slane %v884, %v908
      %911 = vbcast.lane.b32.xlu0 %v909, 256
      %v912 = vpop.permute.xlu0 %911
      %s914 = sor.u32 256, 8
      %915 = vbcast.lane.b32.xlu0 %v909, %s914
      %v916 = vpop.permute.xlu0 %915
      %s918 = sor.u32 256, 16
      %919 = vbcast.lane.b32.xlu0 %v909, %s918
      %v920 = vpop.permute.xlu0 %919
      %s922 = sor.u32 256, 24
      %923 = vbcast.lane.b32.xlu0 %v909, %s922
      %v924 = vpop.permute.xlu0 %923
      %v925 = vlaneseq
      %v926 = vshrl.u32 %v925, 7
      %v927 = vsub.s32 2, %v926
      %v928 = vrot.slane %v884, %v927
      %930 = vbcast.lane.b32.xlu0 %v928, 256
      %v931 = vpop.permute.xlu0 %930
      %s933 = sor.u32 256, 8
      %934 = vbcast.lane.b32.xlu0 %v928, %s933
      %v935 = vpop.permute.xlu0 %934
      %s937 = sor.u32 256, 16
      %938 = vbcast.lane.b32.xlu0 %v928, %s937
      %v939 = vpop.permute.xlu0 %938
      %s941 = sor.u32 256, 24
      %942 = vbcast.lane.b32.xlu0 %v928, %s941
      %v943 = vpop.permute.xlu0 %942
      %v944 = vlaneseq
      %v945 = vshrl.u32 %v944, 7
      %v946 = vsub.s32 3, %v945
      %v947 = vrot.slane %v884, %v946
      %949 = vbcast.lane.b32.xlu0 %v947, 256
      %v950 = vpop.permute.xlu0 %949
      %s952 = sor.u32 256, 8
      %953 = vbcast.lane.b32.xlu0 %v947, %s952
      %v954 = vpop.permute.xlu0 %953
      %s956 = sor.u32 256, 16
      %957 = vbcast.lane.b32.xlu0 %v947, %s956
      %v958 = vpop.permute.xlu0 %957
      %s960 = sor.u32 256, 24
      %961 = vbcast.lane.b32.xlu0 %v947, %s960
      %v962 = vpop.permute.xlu0 %961
      %v963 = vlaneseq
      %v964 = vshrl.u32 %v963, 7
      %v965 = vsub.s32 4, %v964
      %v966 = vrot.slane %v884, %v965
      %968 = vbcast.lane.b32.xlu0 %v966, 256
      %v969 = vpop.permute.xlu0 %968
      %s971 = sor.u32 256, 8
      %972 = vbcast.lane.b32.xlu0 %v966, %s971
      %v973 = vpop.permute.xlu0 %972
      %s975 = sor.u32 256, 16
      %976 = vbcast.lane.b32.xlu0 %v966, %s975
      %v977 = vpop.permute.xlu0 %976
      %s979 = sor.u32 256, 24
      %980 = vbcast.lane.b32.xlu0 %v966, %s979
      %v981 = vpop.permute.xlu0 %980
      %v982 = vlaneseq
      %v983 = vshrl.u32 %v982, 7
      %v984 = vsub.s32 5, %v983
      %v985 = vrot.slane %v884, %v984
      %987 = vbcast.lane.b32.xlu0 %v985, 256
      %v988 = vpop.permute.xlu0 %987
      %s990 = sor.u32 256, 8
      %991 = vbcast.lane.b32.xlu0 %v985, %s990
      %v992 = vpop.permute.xlu0 %991
      %s994 = sor.u32 256, 16
      %995 = vbcast.lane.b32.xlu0 %v985, %s994
      %v996 = vpop.permute.xlu0 %995
      %s998 = sor.u32 256, 24
      %999 = vbcast.lane.b32.xlu0 %v985, %s998
      %v1000 = vpop.permute.xlu0 %999
      %v1001 = vlaneseq
      %v1002 = vshrl.u32 %v1001, 7
      %v1003 = vsub.s32 6, %v1002
      %v1004 = vrot.slane %v884, %v1003
      %1006 = vbcast.lane.b32.xlu0 %v1004, 256
      %v1007 = vpop.permute.xlu0 %1006
      %s1009 = sor.u32 256, 8
      %1010 = vbcast.lane.b32.xlu0 %v1004, %s1009
      %v1011 = vpop.permute.xlu0 %1010
      %s1013 = sor.u32 256, 16
      %1014 = vbcast.lane.b32.xlu0 %v1004, %s1013
      %v1015 = vpop.permute.xlu0 %1014
      %s1017 = sor.u32 256, 24
      %1018 = vbcast.lane.b32.xlu0 %v1004, %s1017
      %v1019 = vpop.permute.xlu0 %1018
      %v1020 = vlaneseq
      %v1021 = vshrl.u32 %v1020, 7
      %v1022 = vsub.s32 7, %v1021
      %v1023 = vrot.slane %v884, %v1022
      %1025 = vbcast.lane.b32.xlu0 %v1023, 256
      %v1026 = vpop.permute.xlu0 %1025
      %s1028 = sor.u32 256, 8
      %1029 = vbcast.lane.b32.xlu0 %v1023, %s1028
      %v1030 = vpop.permute.xlu0 %1029
      %s1032 = sor.u32 256, 16
      %1033 = vbcast.lane.b32.xlu0 %v1023, %s1032
      %v1034 = vpop.permute.xlu0 %1033
      %s1036 = sor.u32 256, 24
      %1037 = vbcast.lane.b32.xlu0 %v1023, %s1036
      %v1038 = vpop.permute.xlu0 %1037
      %v1103 = vlaneseq
      %v1104 = vand.u32 %v1103, 127
      %v1105 = vlaneseq
      %v1106 = vshrl.u32 %v1105, 7
      %v1107 = vsub.s32 %v1104, %v1106
      %v1108 = vrot.slane %v564, %v1107
      %v1109 = vadd.s32 %v1104, 4294967288
      %v1110 = vlaneseq
      %v1111 = vshrl.u32 %v1110, 7
      %v1112 = vsub.s32 %v1109, %v1111
      %v1113 = vrot.slane %v565, %v1112
      %vm1114 = vcmask 130112
      %v1115 = vsel %vm1114, %v1113, %v1108
      %v1116 = vlaneseq
      %v1117 = vshrl.u32 %v1116, 7
      %v1118 = vsub.s32 %v1104, %v1117
      %v1119 = vrot.slane %v566, %v1118
      %v1120 = vlaneseq
      %v1121 = vshrl.u32 %v1120, 7
      %v1122 = vsub.s32 %v1109, %v1121
      %v1123 = vrot.slane %v567, %v1122
      %v1124 = vsel %vm1114, %v1123, %v1119
      %v1125 = vlaneseq
      %v1126 = vshrl.u32 %v1125, 7
      %v1127 = vsub.s32 %v1104, %v1126
      %v1128 = vrot.slane %v568, %v1127
      %v1129 = vlaneseq
      %v1130 = vshrl.u32 %v1129, 7
      %v1131 = vsub.s32 %v1109, %v1130
      %v1132 = vrot.slane %v569, %v1131
      %v1133 = vsel %vm1114, %v1132, %v1128
      %v1134 = vlaneseq
      %v1135 = vshrl.u32 %v1134, 7
      %v1136 = vsub.s32 %v1104, %v1135
      %v1137 = vrot.slane %v570, %v1136
      %v1138 = vlaneseq
      %v1139 = vshrl.u32 %v1138, 7
      %v1140 = vsub.s32 %v1109, %v1139
      %v1141 = vrot.slane %v571, %v1140
      %v1142 = vsel %vm1114, %v1141, %v1137
      %v1143 = vlaneseq
      %v1144 = vshrl.u32 %v1143, 7
      %v1145 = vsub.s32 %v1104, %v1144
      %v1146 = vrot.slane %v572, %v1145
      %v1147 = vlaneseq
      %v1148 = vshrl.u32 %v1147, 7
      %v1149 = vsub.s32 %v1109, %v1148
      %v1150 = vrot.slane %v573, %v1149
      %v1151 = vsel %vm1114, %v1150, %v1146
      %v1152 = vlaneseq
      %v1153 = vshrl.u32 %v1152, 7
      %v1154 = vsub.s32 %v1104, %v1153
      %v1155 = vrot.slane %v574, %v1154
      %v1156 = vlaneseq
      %v1157 = vshrl.u32 %v1156, 7
      %v1158 = vsub.s32 %v1109, %v1157
      %v1159 = vrot.slane %v575, %v1158
      %v1160 = vsel %vm1114, %v1159, %v1155
      %v1161 = vlaneseq
      %v1162 = vshrl.u32 %v1161, 7
      %v1163 = vsub.s32 %v1104, %v1162
      %v1164 = vrot.slane %v576, %v1163
      %v1165 = vlaneseq
      %v1166 = vshrl.u32 %v1165, 7
      %v1167 = vsub.s32 %v1109, %v1166
      %v1168 = vrot.slane %v577, %v1167
      %v1169 = vsel %vm1114, %v1168, %v1164
      %v1170 = vlaneseq
      %v1171 = vshrl.u32 %v1170, 7
      %v1172 = vsub.s32 %v1104, %v1171
      %v1173 = vrot.slane %v578, %v1172
      %v1174 = vlaneseq
      %v1175 = vshrl.u32 %v1174, 7
      %v1176 = vsub.s32 %v1109, %v1175
      %v1177 = vrot.slane %v579, %v1176
      %v1178 = vsel %vm1114, %v1177, %v1173
      %v1179 = vlaneseq
      %v1180 = vshrl.u32 %v1179, 7
      %v1181 = vsub.s32 %v1104, %v1180
      %v1182 = vrot.slane %v580, %v1181
      %v1183 = vlaneseq
      %v1184 = vshrl.u32 %v1183, 7
      %v1185 = vsub.s32 %v1109, %v1184
      %v1186 = vrot.slane %v581, %v1185
      %v1187 = vsel %vm1114, %v1186, %v1182
      %v1188 = vlaneseq
      %v1189 = vshrl.u32 %v1188, 7
      %v1190 = vsub.s32 %v1104, %v1189
      %v1191 = vrot.slane %v582, %v1190
      %v1192 = vlaneseq
      %v1193 = vshrl.u32 %v1192, 7
      %v1194 = vsub.s32 %v1109, %v1193
      %v1195 = vrot.slane %v583, %v1194
      %v1196 = vsel %vm1114, %v1195, %v1191
      %v1197 = vlaneseq
      %v1198 = vshrl.u32 %v1197, 7
      %v1199 = vsub.s32 %v1104, %v1198
      %v1200 = vrot.slane %v584, %v1199
      %v1201 = vlaneseq
      %v1202 = vshrl.u32 %v1201, 7
      %v1203 = vsub.s32 %v1109, %v1202
      %v1204 = vrot.slane %v585, %v1203
      %v1205 = vsel %vm1114, %v1204, %v1200
      %v1206 = vlaneseq
      %v1207 = vshrl.u32 %v1206, 7
      %v1208 = vsub.s32 %v1104, %v1207
      %v1209 = vrot.slane %v586, %v1208
      %v1210 = vlaneseq
      %v1211 = vshrl.u32 %v1210, 7
      %v1212 = vsub.s32 %v1109, %v1211
      %v1213 = vrot.slane %v587, %v1212
      %v1214 = vsel %vm1114, %v1213, %v1209
      %v1215 = vlaneseq
      %v1216 = vshrl.u32 %v1215, 7
      %v1217 = vsub.s32 %v1104, %v1216
      %v1218 = vrot.slane %v588, %v1217
      %v1219 = vlaneseq
      %v1220 = vshrl.u32 %v1219, 7
      %v1221 = vsub.s32 %v1109, %v1220
      %v1222 = vrot.slane %v589, %v1221
      %v1223 = vsel %vm1114, %v1222, %v1218
      %v1224 = vlaneseq
      %v1225 = vshrl.u32 %v1224, 7
      %v1226 = vsub.s32 %v1104, %v1225
      %v1227 = vrot.slane %v590, %v1226
      %v1228 = vlaneseq
      %v1229 = vshrl.u32 %v1228, 7
      %v1230 = vsub.s32 %v1109, %v1229
      %v1231 = vrot.slane %v591, %v1230
      %v1232 = vsel %vm1114, %v1231, %v1227
      %v1233 = vlaneseq
      %v1234 = vshrl.u32 %v1233, 7
      %v1235 = vsub.s32 %v1104, %v1234
      %v1236 = vrot.slane %v592, %v1235
      %v1237 = vlaneseq
      %v1238 = vshrl.u32 %v1237, 7
      %v1239 = vsub.s32 %v1109, %v1238
      %v1240 = vrot.slane %v593, %v1239
      %v1241 = vsel %vm1114, %v1240, %v1236
      %v1242 = vlaneseq
      %v1243 = vshrl.u32 %v1242, 7
      %v1244 = vsub.s32 %v1104, %v1243
      %v1245 = vrot.slane %v594, %v1244
      %v1246 = vlaneseq
      %v1247 = vshrl.u32 %v1246, 7
      %v1248 = vsub.s32 %v1109, %v1247
      %v1249 = vrot.slane %v595, %v1248
      %v1250 = vsel %vm1114, %v1249, %v1245
      %v1251 = vlaneseq
      %v1252 = vshrl.u32 %v1251, 7
      %v1253 = vsub.s32 %v1104, %v1252
      %v1254 = vrot.slane %v596, %v1253
      %v1255 = vlaneseq
      %v1256 = vshrl.u32 %v1255, 7
      %v1257 = vsub.s32 %v1109, %v1256
      %v1258 = vrot.slane %v597, %v1257
      %v1259 = vsel %vm1114, %v1258, %v1254
      %v1260 = vlaneseq
      %v1261 = vshrl.u32 %v1260, 7
      %v1262 = vsub.s32 %v1104, %v1261
      %v1263 = vrot.slane %v598, %v1262
      %v1264 = vlaneseq
      %v1265 = vshrl.u32 %v1264, 7
      %v1266 = vsub.s32 %v1109, %v1265
      %v1267 = vrot.slane %v599, %v1266
      %v1268 = vsel %vm1114, %v1267, %v1263
      %v1269 = vlaneseq
      %v1270 = vshrl.u32 %v1269, 7
      %v1271 = vsub.s32 %v1104, %v1270
      %v1272 = vrot.slane %v600, %v1271
      %v1273 = vlaneseq
      %v1274 = vshrl.u32 %v1273, 7
      %v1275 = vsub.s32 %v1109, %v1274
      %v1276 = vrot.slane %v601, %v1275
      %v1277 = vsel %vm1114, %v1276, %v1272
      %v1278 = vlaneseq
      %v1279 = vshrl.u32 %v1278, 7
      %v1280 = vsub.s32 %v1104, %v1279
      %v1281 = vrot.slane %v602, %v1280
      %v1282 = vlaneseq
      %v1283 = vshrl.u32 %v1282, 7
      %v1284 = vsub.s32 %v1109, %v1283
      %v1285 = vrot.slane %v603, %v1284
      %v1286 = vsel %vm1114, %v1285, %v1281
      %v1287 = vlaneseq
      %v1288 = vshrl.u32 %v1287, 7
      %v1289 = vsub.s32 %v1104, %v1288
      %v1290 = vrot.slane %v604, %v1289
      %v1291 = vlaneseq
      %v1292 = vshrl.u32 %v1291, 7
      %v1293 = vsub.s32 %v1109, %v1292
      %v1294 = vrot.slane %v605, %v1293
      %v1295 = vsel %vm1114, %v1294, %v1290
      %v1296 = vlaneseq
      %v1297 = vshrl.u32 %v1296, 7
      %v1298 = vsub.s32 %v1104, %v1297
      %v1299 = vrot.slane %v606, %v1298
      %v1300 = vlaneseq
      %v1301 = vshrl.u32 %v1300, 7
      %v1302 = vsub.s32 %v1109, %v1301
      %v1303 = vrot.slane %v607, %v1302
      %v1304 = vsel %vm1114, %v1303, %v1299
      %v1305 = vlaneseq
      %v1306 = vshrl.u32 %v1305, 7
      %v1307 = vsub.s32 %v1104, %v1306
      %v1308 = vrot.slane %v608, %v1307
      %v1309 = vlaneseq
      %v1310 = vshrl.u32 %v1309, 7
      %v1311 = vsub.s32 %v1109, %v1310
      %v1312 = vrot.slane %v609, %v1311
      %v1313 = vsel %vm1114, %v1312, %v1308
      %v1314 = vlaneseq
      %v1315 = vshrl.u32 %v1314, 7
      %v1316 = vsub.s32 %v1104, %v1315
      %v1317 = vrot.slane %v610, %v1316
      %v1318 = vlaneseq
      %v1319 = vshrl.u32 %v1318, 7
      %v1320 = vsub.s32 %v1109, %v1319
      %v1321 = vrot.slane %v611, %v1320
      %v1322 = vsel %vm1114, %v1321, %v1317
      %v1323 = vlaneseq
      %v1324 = vshrl.u32 %v1323, 7
      %v1325 = vsub.s32 %v1104, %v1324
      %v1326 = vrot.slane %v612, %v1325
      %v1327 = vlaneseq
      %v1328 = vshrl.u32 %v1327, 7
      %v1329 = vsub.s32 %v1109, %v1328
      %v1330 = vrot.slane %v613, %v1329
      %v1331 = vsel %vm1114, %v1330, %v1326
      %v1332 = vlaneseq
      %v1333 = vshrl.u32 %v1332, 7
      %v1334 = vsub.s32 %v1104, %v1333
      %v1335 = vrot.slane %v614, %v1334
      %v1336 = vlaneseq
      %v1337 = vshrl.u32 %v1336, 7
      %v1338 = vsub.s32 %v1109, %v1337
      %v1339 = vrot.slane %v615, %v1338
      %v1340 = vsel %vm1114, %v1339, %v1335
      %v1341 = vlaneseq
      %v1342 = vshrl.u32 %v1341, 7
      %v1343 = vsub.s32 %v1104, %v1342
      %v1344 = vrot.slane %v616, %v1343
      %v1345 = vlaneseq
      %v1346 = vshrl.u32 %v1345, 7
      %v1347 = vsub.s32 %v1109, %v1346
      %v1348 = vrot.slane %v617, %v1347
      %v1349 = vsel %vm1114, %v1348, %v1344
      %v1350 = vlaneseq
      %v1351 = vshrl.u32 %v1350, 7
      %v1352 = vsub.s32 %v1104, %v1351
      %v1353 = vrot.slane %v618, %v1352
      %v1354 = vlaneseq
      %v1355 = vshrl.u32 %v1354, 7
      %v1356 = vsub.s32 %v1109, %v1355
      %v1357 = vrot.slane %v619, %v1356
      %v1358 = vsel %vm1114, %v1357, %v1353
      %v1359 = vlaneseq
      %v1360 = vshrl.u32 %v1359, 7
      %v1361 = vsub.s32 %v1104, %v1360
      %v1362 = vrot.slane %v620, %v1361
      %v1363 = vlaneseq
      %v1364 = vshrl.u32 %v1363, 7
      %v1365 = vsub.s32 %v1109, %v1364
      %v1366 = vrot.slane %v621, %v1365
      %v1367 = vsel %vm1114, %v1366, %v1362
      %v1368 = vlaneseq
      %v1369 = vshrl.u32 %v1368, 7
      %v1370 = vsub.s32 %v1104, %v1369
      %v1371 = vrot.slane %v622, %v1370
      %v1372 = vlaneseq
      %v1373 = vshrl.u32 %v1372, 7
      %v1374 = vsub.s32 %v1109, %v1373
      %v1375 = vrot.slane %v623, %v1374
      %v1376 = vsel %vm1114, %v1375, %v1371
      %v1377 = vlaneseq
      %v1378 = vshrl.u32 %v1377, 7
      %v1379 = vsub.s32 %v1104, %v1378
      %v1380 = vrot.slane %v624, %v1379
      %v1381 = vlaneseq
      %v1382 = vshrl.u32 %v1381, 7
      %v1383 = vsub.s32 %v1109, %v1382
      %v1384 = vrot.slane %v625, %v1383
      %v1385 = vsel %vm1114, %v1384, %v1380
      %v1386 = vlaneseq
      %v1387 = vshrl.u32 %v1386, 7
      %v1388 = vsub.s32 %v1104, %v1387
      %v1389 = vrot.slane %v626, %v1388
      %v1390 = vlaneseq
      %v1391 = vshrl.u32 %v1390, 7
      %v1392 = vsub.s32 %v1109, %v1391
      %v1393 = vrot.slane %v627, %v1392
      %v1394 = vsel %vm1114, %v1393, %v1389
      %vm1395 = vcmask 1041409
      %v1396 = vsel %vm1395, %v1124, %v1115
      %vm1397 = vcmask 1042434
      %v1398 = vsel %vm1397, %v1133, %v1396
      %vm1399 = vcmask 1043459
      %v1400 = vsel %vm1399, %v1142, %v1398
      %vm1401 = vcmask 1044484
      %v1402 = vsel %vm1401, %v1151, %v1400
      %vm1403 = vcmask 1045509
      %v1404 = vsel %vm1403, %v1160, %v1402
      %vm1405 = vcmask 1046534
      %v1406 = vsel %vm1405, %v1169, %v1404
      %vm1407 = vcmask 1047559
      %v1408 = vsel %vm1407, %v1178, %v1406
      %v1409 = vsel %vm1395, %v1196, %v1187
      %v1410 = vsel %vm1397, %v1205, %v1409
      %v1411 = vsel %vm1399, %v1214, %v1410
      %v1412 = vsel %vm1401, %v1223, %v1411
      %v1413 = vsel %vm1403, %v1232, %v1412
      %v1414 = vsel %vm1405, %v1241, %v1413
      %v1415 = vsel %vm1407, %v1250, %v1414
      %v1416 = vsel %vm1395, %v1268, %v1259
      %v1417 = vsel %vm1397, %v1277, %v1416
      %v1418 = vsel %vm1399, %v1286, %v1417
      %v1419 = vsel %vm1401, %v1295, %v1418
      %v1420 = vsel %vm1403, %v1304, %v1419
      %v1421 = vsel %vm1405, %v1313, %v1420
      %v1422 = vsel %vm1407, %v1322, %v1421
      %v1423 = vsel %vm1395, %v1340, %v1331
      %v1424 = vsel %vm1397, %v1349, %v1423
      %v1425 = vsel %vm1399, %v1358, %v1424
      %v1426 = vsel %vm1401, %v1367, %v1425
      %v1427 = vsel %vm1403, %v1376, %v1426
      %v1428 = vsel %vm1405, %v1385, %v1427
      %v1429 = vsel %vm1407, %v1394, %v1428
      %v1434 = vmul.f32 %v893, %v1408
      %v1435 = vmul.f32 %v897, %v1415
      %v1436 = vmul.f32 %v901, %v1422
      %v1437 = vmul.f32 %v905, %v1429
      %v1438 = vmul.f32 %v912, %v1408
      %v1439 = vmul.f32 %v916, %v1415
      %v1440 = vmul.f32 %v920, %v1422
      %v1441 = vmul.f32 %v924, %v1429
      %v1442 = vmul.f32 %v931, %v1408
      %v1443 = vmul.f32 %v935, %v1415
      %v1444 = vmul.f32 %v939, %v1422
      %v1445 = vmul.f32 %v943, %v1429
      %v1446 = vmul.f32 %v950, %v1408
      %v1447 = vmul.f32 %v954, %v1415
      %v1448 = vmul.f32 %v958, %v1422
      %v1449 = vmul.f32 %v962, %v1429
      %v1450 = vmul.f32 %v969, %v1408
      %v1451 = vmul.f32 %v973, %v1415
      %v1452 = vmul.f32 %v977, %v1422
      %v1453 = vmul.f32 %v981, %v1429
      %v1454 = vmul.f32 %v988, %v1408
      %v1455 = vmul.f32 %v992, %v1415
      %v1456 = vmul.f32 %v996, %v1422
      %v1457 = vmul.f32 %v1000, %v1429
      %v1458 = vmul.f32 %v1007, %v1408
      %v1459 = vmul.f32 %v1011, %v1415
      %v1460 = vmul.f32 %v1015, %v1422
      %v1461 = vmul.f32 %v1019, %v1429
      %v1462 = vmul.f32 %v1026, %v1408
      %v1463 = vmul.f32 %v1030, %v1415
      %v1464 = vmul.f32 %v1034, %v1422
      %v1465 = vmul.f32 %v1038, %v1429
      %v1466 = vsel %vm370, %v1434, 0.0
      %v1467 = vsel %vm370, %v1435, 0.0
      %v1468 = vadd.f32 %v1466, %v1467
      %v1469 = vsel %vm370, %v1436, 0.0
      %v1470 = vadd.f32 %v1468, %v1469
      %v1471 = vsel %vm370, %v1437, 0.0
      %v1472 = vadd.f32 %v1470, %v1471
      %v1473 = vrot.slane %v1472, 4
      %v1474 = vadd.f32 %v1472, %v1473
      %v1475 = vrot.slane %v1474, 2
      %v1476 = vadd.f32 %v1474, %v1475
      %v1477 = vrot.slane %v1476, 1
      %v1478 = vadd.f32 %v1476, %v1477
      %v1479 = vsel %vm370, %v1438, 0.0
      %v1480 = vsel %vm370, %v1439, 0.0
      %v1481 = vadd.f32 %v1479, %v1480
      %v1482 = vsel %vm370, %v1440, 0.0
      %v1483 = vadd.f32 %v1481, %v1482
      %v1484 = vsel %vm370, %v1441, 0.0
      %v1485 = vadd.f32 %v1483, %v1484
      %v1486 = vrot.slane %v1485, 4
      %v1487 = vadd.f32 %v1485, %v1486
      %v1488 = vrot.slane %v1487, 2
      %v1489 = vadd.f32 %v1487, %v1488
      %v1490 = vrot.slane %v1489, 1
      %v1491 = vadd.f32 %v1489, %v1490
      %v1492 = vsel %vm370, %v1442, 0.0
      %v1493 = vsel %vm370, %v1443, 0.0
      %v1494 = vadd.f32 %v1492, %v1493
      %v1495 = vsel %vm370, %v1444, 0.0
      %v1496 = vadd.f32 %v1494, %v1495
      %v1497 = vsel %vm370, %v1445, 0.0
      %v1498 = vadd.f32 %v1496, %v1497
      %v1499 = vrot.slane %v1498, 4
      %v1500 = vadd.f32 %v1498, %v1499
      %v1501 = vrot.slane %v1500, 2
      %v1502 = vadd.f32 %v1500, %v1501
      %v1503 = vrot.slane %v1502, 1
      %v1504 = vadd.f32 %v1502, %v1503
      %v1505 = vsel %vm370, %v1446, 0.0
      %v1506 = vsel %vm370, %v1447, 0.0
      %v1507 = vadd.f32 %v1505, %v1506
      %v1508 = vsel %vm370, %v1448, 0.0
      %v1509 = vadd.f32 %v1507, %v1508
      %v1510 = vsel %vm370, %v1449, 0.0
      %v1511 = vadd.f32 %v1509, %v1510
      %v1512 = vrot.slane %v1511, 4
      %v1513 = vadd.f32 %v1511, %v1512
      %v1514 = vrot.slane %v1513, 2
      %v1515 = vadd.f32 %v1513, %v1514
      %v1516 = vrot.slane %v1515, 1
      %v1517 = vadd.f32 %v1515, %v1516
      %v1518 = vsel %vm370, %v1450, 0.0
      %v1519 = vsel %vm370, %v1451, 0.0
      %v1520 = vadd.f32 %v1518, %v1519
      %v1521 = vsel %vm370, %v1452, 0.0
      %v1522 = vadd.f32 %v1520, %v1521
      %v1523 = vsel %vm370, %v1453, 0.0
      %v1524 = vadd.f32 %v1522, %v1523
      %v1525 = vrot.slane %v1524, 4
      %v1526 = vadd.f32 %v1524, %v1525
      %v1527 = vrot.slane %v1526, 2
      %v1528 = vadd.f32 %v1526, %v1527
      %v1529 = vrot.slane %v1528, 1
      %v1530 = vadd.f32 %v1528, %v1529
      %v1531 = vsel %vm370, %v1454, 0.0
      %v1532 = vsel %vm370, %v1455, 0.0
      %v1533 = vadd.f32 %v1531, %v1532
      %v1534 = vsel %vm370, %v1456, 0.0
      %v1535 = vadd.f32 %v1533, %v1534
      %v1536 = vsel %vm370, %v1457, 0.0
      %v1537 = vadd.f32 %v1535, %v1536
      %v1538 = vrot.slane %v1537, 4
      %v1539 = vadd.f32 %v1537, %v1538
      %v1540 = vrot.slane %v1539, 2
      %v1541 = vadd.f32 %v1539, %v1540
      %v1542 = vrot.slane %v1541, 1
      %v1543 = vadd.f32 %v1541, %v1542
      %v1544 = vsel %vm370, %v1458, 0.0
      %v1545 = vsel %vm370, %v1459, 0.0
      %v1546 = vadd.f32 %v1544, %v1545
      %v1547 = vsel %vm370, %v1460, 0.0
      %v1548 = vadd.f32 %v1546, %v1547
      %v1549 = vsel %vm370, %v1461, 0.0
      %v1550 = vadd.f32 %v1548, %v1549
      %v1551 = vrot.slane %v1550, 4
      %v1552 = vadd.f32 %v1550, %v1551
      %v1553 = vrot.slane %v1552, 2
      %v1554 = vadd.f32 %v1552, %v1553
      %v1555 = vrot.slane %v1554, 1
      %v1556 = vadd.f32 %v1554, %v1555
      %v1557 = vsel %vm370, %v1462, 0.0
      %v1558 = vsel %vm370, %v1463, 0.0
      %v1559 = vadd.f32 %v1557, %v1558
      %v1560 = vsel %vm370, %v1464, 0.0
      %v1561 = vadd.f32 %v1559, %v1560
      %v1562 = vsel %vm370, %v1465, 0.0
      %v1563 = vadd.f32 %v1561, %v1562
      %v1564 = vrot.slane %v1563, 4
      %v1565 = vadd.f32 %v1563, %v1564
      %v1566 = vrot.slane %v1565, 2
      %v1567 = vadd.f32 %v1565, %v1566
      %v1568 = vrot.slane %v1567, 1
      %v1569 = vadd.f32 %v1567, %v1568
      %1571 = vset.pattern.permute.xlu0 0
      %1572 = vperm.xlu0 %1571, %v885
      %v1573 = vpop.permute.xlu0 %1572
      %v1574 = vrot.slane %v1573, 1
      %v1575 = vrot.slane %v1573, 2
      %v1576 = vrot.slane %v1573, 3
      %v1577 = vrot.slane %v1573, 4
      %v1578 = vrot.slane %v1573, 5
      %v1579 = vrot.slane %v1573, 6
      %v1580 = vrot.slane %v1573, 7
      %v1589 = vmul.f32 %v1478, %v1573
      %v1590 = vmul.f32 %v1491, %v1574
      %v1591 = vmul.f32 %v1504, %v1575
      %v1592 = vmul.f32 %v1517, %v1576
      %v1593 = vmul.f32 %v1530, %v1577
      %v1594 = vmul.f32 %v1543, %v1578
      %v1595 = vmul.f32 %v1556, %v1579
      %v1596 = vmul.f32 %v1569, %v1580
      %1598 = vset.pattern.permute.xlu0 0
      %1599 = vperm.xlu0 %1598, %v886
      %v1600 = vpop.permute.xlu0 %1599
      %v1601 = vrot.slane %v1600, 1
      %v1602 = vrot.slane %v1600, 2
      %v1603 = vrot.slane %v1600, 3
      %v1604 = vrot.slane %v1600, 4
      %v1605 = vrot.slane %v1600, 5
      %v1606 = vrot.slane %v1600, 6
      %v1607 = vrot.slane %v1600, 7
      %v1616 = vadd.f32 %v1589, %v1600
      %v1617 = vadd.f32 %v1590, %v1601
      %v1618 = vadd.f32 %v1591, %v1602
      %v1619 = vadd.f32 %v1592, %v1603
      %v1620 = vadd.f32 %v1593, %v1604
      %v1621 = vadd.f32 %v1594, %v1605
      %v1622 = vadd.f32 %v1595, %v1606
      %v1623 = vadd.f32 %v1596, %v1607
      %v1624 = vadd.f32 %v1616, 3.0
      %v1625 = vadd.f32 %v1617, 3.0
      %v1626 = vadd.f32 %v1618, 3.0
      %v1627 = vadd.f32 %v1619, 3.0
      %v1628 = vadd.f32 %v1620, 3.0
      %v1629 = vadd.f32 %v1621, 3.0
      %v1630 = vadd.f32 %v1622, 3.0
      %v1631 = vadd.f32 %v1623, 3.0
      %v1632 = vmax.f32 %v1624, 0.0
      %v1633 = vmax.f32 %v1625, 0.0
      %v1634 = vmax.f32 %v1626, 0.0
      %v1635 = vmax.f32 %v1627, 0.0
      %v1636 = vmax.f32 %v1628, 0.0
      %v1637 = vmax.f32 %v1629, 0.0
      %v1638 = vmax.f32 %v1630, 0.0
      %v1639 = vmax.f32 %v1631, 0.0
      %v1640 = vmin.f32 %v1632, 6.0
      %v1641 = vmin.f32 %v1633, 6.0
      %v1642 = vmin.f32 %v1634, 6.0
      %v1643 = vmin.f32 %v1635, 6.0
      %v1644 = vmin.f32 %v1636, 6.0
      %v1645 = vmin.f32 %v1637, 6.0
      %v1646 = vmin.f32 %v1638, 6.0
      %v1647 = vmin.f32 %v1639, 6.0
      %v1648 = vmul.f32 %v1640, 0.16666667
      %v1649 = vmul.f32 %v1641, 0.16666667
      %v1650 = vmul.f32 %v1642, 0.16666667
      %v1651 = vmul.f32 %v1643, 0.16666667
      %v1652 = vmul.f32 %v1644, 0.16666667
      %v1653 = vmul.f32 %v1645, 0.16666667
      %v1654 = vmul.f32 %v1646, 0.16666667
      %v1655 = vmul.f32 %v1647, 0.16666667
      %v1656 = vmul.f32 %v1616, %v1648
      %v1657 = vmul.f32 %v1617, %v1649
      %v1658 = vmul.f32 %v1618, %v1650
      %v1659 = vmul.f32 %v1619, %v1651
      %v1660 = vmul.f32 %v1620, %v1652
      %v1661 = vmul.f32 %v1621, %v1653
      %v1662 = vmul.f32 %v1622, %v1654
      %v1663 = vmul.f32 %v1623, %v1655
      %v1696 = vsel %vm1395, %v853, %v852
      %v1697 = vsel %vm1397, %v854, %v1696
      %v1698 = vsel %vm1399, %v855, %v1697
      %v1699 = vsel %vm1401, %v856, %v1698
      %v1700 = vsel %vm1403, %v857, %v1699
      %v1701 = vsel %vm1405, %v858, %v1700
      %v1702 = vsel %vm1407, %v859, %v1701
      %v1703 = vsel %vm1395, %v861, %v860
      %v1704 = vsel %vm1397, %v862, %v1703
      %v1705 = vsel %vm1399, %v863, %v1704
      %v1706 = vsel %vm1401, %v864, %v1705
      %v1707 = vsel %vm1403, %v865, %v1706
      %v1708 = vsel %vm1405, %v866, %v1707
      %v1709 = vsel %vm1407, %v867, %v1708
      %v1710 = vsel %vm1395, %v869, %v868
      %v1711 = vsel %vm1397, %v870, %v1710
      %v1712 = vsel %vm1399, %v871, %v1711
      %v1713 = vsel %vm1401, %v872, %v1712
      %v1714 = vsel %vm1403, %v873, %v1713
      %v1715 = vsel %vm1405, %v874, %v1714
      %v1716 = vsel %vm1407, %v875, %v1715
      %v1717 = vsel %vm1395, %v877, %v876
      %v1718 = vsel %vm1397, %v878, %v1717
      %v1719 = vsel %vm1399, %v879, %v1718
      %v1720 = vsel %vm1401, %v880, %v1719
      %v1721 = vsel %vm1403, %v881, %v1720
      %v1722 = vsel %vm1405, %v882, %v1721
      %v1723 = vsel %vm1407, %v883, %v1722
      %v1728 = vmul.f32 %v893, %v1702
      %v1729 = vmul.f32 %v897, %v1709
      %v1730 = vmul.f32 %v901, %v1716
      %v1731 = vmul.f32 %v905, %v1723
      %v1732 = vmul.f32 %v912, %v1702
      %v1733 = vmul.f32 %v916, %v1709
      %v1734 = vmul.f32 %v920, %v1716
      %v1735 = vmul.f32 %v924, %v1723
      %v1736 = vmul.f32 %v931, %v1702
      %v1737 = vmul.f32 %v935, %v1709
      %v1738 = vmul.f32 %v939, %v1716
      %v1739 = vmul.f32 %v943, %v1723
      %v1740 = vmul.f32 %v950, %v1702
      %v1741 = vmul.f32 %v954, %v1709
      %v1742 = vmul.f32 %v958, %v1716
      %v1743 = vmul.f32 %v962, %v1723
      %v1744 = vmul.f32 %v969, %v1702
      %v1745 = vmul.f32 %v973, %v1709
      %v1746 = vmul.f32 %v977, %v1716
      %v1747 = vmul.f32 %v981, %v1723
      %v1748 = vmul.f32 %v988, %v1702
      %v1749 = vmul.f32 %v992, %v1709
      %v1750 = vmul.f32 %v996, %v1716
      %v1751 = vmul.f32 %v1000, %v1723
      %v1752 = vmul.f32 %v1007, %v1702
      %v1753 = vmul.f32 %v1011, %v1709
      %v1754 = vmul.f32 %v1015, %v1716
      %v1755 = vmul.f32 %v1019, %v1723
      %v1756 = vmul.f32 %v1026, %v1702
      %v1757 = vmul.f32 %v1030, %v1709
      %v1758 = vmul.f32 %v1034, %v1716
      %v1759 = vmul.f32 %v1038, %v1723
      %v1760 = vsel %vm370, %v1728, 0.0
      %v1761 = vsel %vm370, %v1729, 0.0
      %v1762 = vadd.f32 %v1760, %v1761
      %v1763 = vsel %vm370, %v1730, 0.0
      %v1764 = vadd.f32 %v1762, %v1763
      %v1765 = vsel %vm370, %v1731, 0.0
      %v1766 = vadd.f32 %v1764, %v1765
      %v1767 = vrot.slane %v1766, 4
      %v1768 = vadd.f32 %v1766, %v1767
      %v1769 = vrot.slane %v1768, 2
      %v1770 = vadd.f32 %v1768, %v1769
      %v1771 = vrot.slane %v1770, 1
      %v1772 = vadd.f32 %v1770, %v1771
      %v1773 = vsel %vm370, %v1732, 0.0
      %v1774 = vsel %vm370, %v1733, 0.0
      %v1775 = vadd.f32 %v1773, %v1774
      %v1776 = vsel %vm370, %v1734, 0.0
      %v1777 = vadd.f32 %v1775, %v1776
      %v1778 = vsel %vm370, %v1735, 0.0
      %v1779 = vadd.f32 %v1777, %v1778
      %v1780 = vrot.slane %v1779, 4
      %v1781 = vadd.f32 %v1779, %v1780
      %v1782 = vrot.slane %v1781, 2
      %v1783 = vadd.f32 %v1781, %v1782
      %v1784 = vrot.slane %v1783, 1
      %v1785 = vadd.f32 %v1783, %v1784
      %v1786 = vsel %vm370, %v1736, 0.0
      %v1787 = vsel %vm370, %v1737, 0.0
      %v1788 = vadd.f32 %v1786, %v1787
      %v1789 = vsel %vm370, %v1738, 0.0
      %v1790 = vadd.f32 %v1788, %v1789
      %v1791 = vsel %vm370, %v1739, 0.0
      %v1792 = vadd.f32 %v1790, %v1791
      %v1793 = vrot.slane %v1792, 4
      %v1794 = vadd.f32 %v1792, %v1793
      %v1795 = vrot.slane %v1794, 2
      %v1796 = vadd.f32 %v1794, %v1795
      %v1797 = vrot.slane %v1796, 1
      %v1798 = vadd.f32 %v1796, %v1797
      %v1799 = vsel %vm370, %v1740, 0.0
      %v1800 = vsel %vm370, %v1741, 0.0
      %v1801 = vadd.f32 %v1799, %v1800
      %v1802 = vsel %vm370, %v1742, 0.0
      %v1803 = vadd.f32 %v1801, %v1802
      %v1804 = vsel %vm370, %v1743, 0.0
      %v1805 = vadd.f32 %v1803, %v1804
      %v1806 = vrot.slane %v1805, 4
      %v1807 = vadd.f32 %v1805, %v1806
      %v1808 = vrot.slane %v1807, 2
      %v1809 = vadd.f32 %v1807, %v1808
      %v1810 = vrot.slane %v1809, 1
      %v1811 = vadd.f32 %v1809, %v1810
      %v1812 = vsel %vm370, %v1744, 0.0
      %v1813 = vsel %vm370, %v1745, 0.0
      %v1814 = vadd.f32 %v1812, %v1813
      %v1815 = vsel %vm370, %v1746, 0.0
      %v1816 = vadd.f32 %v1814, %v1815
      %v1817 = vsel %vm370, %v1747, 0.0
      %v1818 = vadd.f32 %v1816, %v1817
      %v1819 = vrot.slane %v1818, 4
      %v1820 = vadd.f32 %v1818, %v1819
      %v1821 = vrot.slane %v1820, 2
      %v1822 = vadd.f32 %v1820, %v1821
      %v1823 = vrot.slane %v1822, 1
      %v1824 = vadd.f32 %v1822, %v1823
      %v1825 = vsel %vm370, %v1748, 0.0
      %v1826 = vsel %vm370, %v1749, 0.0
      %v1827 = vadd.f32 %v1825, %v1826
      %v1828 = vsel %vm370, %v1750, 0.0
      %v1829 = vadd.f32 %v1827, %v1828
      %v1830 = vsel %vm370, %v1751, 0.0
      %v1831 = vadd.f32 %v1829, %v1830
      %v1832 = vrot.slane %v1831, 4
      %v1833 = vadd.f32 %v1831, %v1832
      %v1834 = vrot.slane %v1833, 2
      %v1835 = vadd.f32 %v1833, %v1834
      %v1836 = vrot.slane %v1835, 1
      %v1837 = vadd.f32 %v1835, %v1836
      %v1838 = vsel %vm370, %v1752, 0.0
      %v1839 = vsel %vm370, %v1753, 0.0
      %v1840 = vadd.f32 %v1838, %v1839
      %v1841 = vsel %vm370, %v1754, 0.0
      %v1842 = vadd.f32 %v1840, %v1841
      %v1843 = vsel %vm370, %v1755, 0.0
      %v1844 = vadd.f32 %v1842, %v1843
      %v1845 = vrot.slane %v1844, 4
      %v1846 = vadd.f32 %v1844, %v1845
      %v1847 = vrot.slane %v1846, 2
      %v1848 = vadd.f32 %v1846, %v1847
      %v1849 = vrot.slane %v1848, 1
      %v1850 = vadd.f32 %v1848, %v1849
      %v1851 = vsel %vm370, %v1756, 0.0
      %v1852 = vsel %vm370, %v1757, 0.0
      %v1853 = vadd.f32 %v1851, %v1852
      %v1854 = vsel %vm370, %v1758, 0.0
      %v1855 = vadd.f32 %v1853, %v1854
      %v1856 = vsel %vm370, %v1759, 0.0
      %v1857 = vadd.f32 %v1855, %v1856
      %v1858 = vrot.slane %v1857, 4
      %v1859 = vadd.f32 %v1857, %v1858
      %v1860 = vrot.slane %v1859, 2
      %v1861 = vadd.f32 %v1859, %v1860
      %v1862 = vrot.slane %v1861, 1
      %v1863 = vadd.f32 %v1861, %v1862
      %v1864 = vmul.f32 %v1772, %v1573
      %v1865 = vmul.f32 %v1785, %v1574
      %v1866 = vmul.f32 %v1798, %v1575
      %v1867 = vmul.f32 %v1811, %v1576
      %v1868 = vmul.f32 %v1824, %v1577
      %v1869 = vmul.f32 %v1837, %v1578
      %v1870 = vmul.f32 %v1850, %v1579
      %v1871 = vmul.f32 %v1863, %v1580
      %v1872 = vadd.f32 %v1864, %v1600
      %v1873 = vadd.f32 %v1865, %v1601
      %v1874 = vadd.f32 %v1866, %v1602
      %v1875 = vadd.f32 %v1867, %v1603
      %v1876 = vadd.f32 %v1868, %v1604
      %v1877 = vadd.f32 %v1869, %v1605
      %v1878 = vadd.f32 %v1870, %v1606
      %v1879 = vadd.f32 %v1871, %v1607
      %v1880 = vadd.f32 %v1872, 3.0
      %v1881 = vadd.f32 %v1873, 3.0
      %v1882 = vadd.f32 %v1874, 3.0
      %v1883 = vadd.f32 %v1875, 3.0
      %v1884 = vadd.f32 %v1876, 3.0
      %v1885 = vadd.f32 %v1877, 3.0
      %v1886 = vadd.f32 %v1878, 3.0
      %v1887 = vadd.f32 %v1879, 3.0
      %v1888 = vmax.f32 %v1880, 0.0
      %v1889 = vmax.f32 %v1881, 0.0
      %v1890 = vmax.f32 %v1882, 0.0
      %v1891 = vmax.f32 %v1883, 0.0
      %v1892 = vmax.f32 %v1884, 0.0
      %v1893 = vmax.f32 %v1885, 0.0
      %v1894 = vmax.f32 %v1886, 0.0
      %v1895 = vmax.f32 %v1887, 0.0
      %v1896 = vmin.f32 %v1888, 6.0
      %v1897 = vmin.f32 %v1889, 6.0
      %v1898 = vmin.f32 %v1890, 6.0
      %v1899 = vmin.f32 %v1891, 6.0
      %v1900 = vmin.f32 %v1892, 6.0
      %v1901 = vmin.f32 %v1893, 6.0
      %v1902 = vmin.f32 %v1894, 6.0
      %v1903 = vmin.f32 %v1895, 6.0
      %v1904 = vmul.f32 %v1896, 0.16666667
      %v1905 = vmul.f32 %v1897, 0.16666667
      %v1906 = vmul.f32 %v1898, 0.16666667
      %v1907 = vmul.f32 %v1899, 0.16666667
      %v1908 = vmul.f32 %v1900, 0.16666667
      %v1909 = vmul.f32 %v1901, 0.16666667
      %v1910 = vmul.f32 %v1902, 0.16666667
      %v1911 = vmul.f32 %v1903, 0.16666667
      %v1912 = vmul.f32 %v1872, %v1904
      %v1913 = vmul.f32 %v1873, %v1905
      %v1914 = vmul.f32 %v1874, %v1906
      %v1915 = vmul.f32 %v1875, %v1907
      %v1916 = vmul.f32 %v1876, %v1908
      %v1917 = vmul.f32 %v1877, %v1909
      %v1918 = vmul.f32 %v1878, %v1910
      %v1919 = vmul.f32 %v1879, %v1911
      %v1920 = vld [vmem:[%s4] sm:$0xff]
      %v1921 = vld [vmem:[%s4 + $0x8] sm:$0xff]
      %v1922 = vld [vmem:[%s4 + $0x10] sm:$0xff]
      %v1923 = vld [vmem:[%s4 + $0x18] sm:$0xff]
      %v1924 = vlaneseq
      %v1925 = vshrl.u32 %v1924, 7
      %v1926 = vsub.s32 0, %v1925
      %v1927 = vrot.slane %v1920, %v1926
      %1929 = vbcast.lane.b32.xlu0 %v1927, 256
      %v1930 = vpop.permute.xlu0 %1929
      %v1931 = vlaneseq
      %v1932 = vshrl.u32 %v1931, 7
      %v1933 = vsub.s32 1, %v1932
      %v1934 = vrot.slane %v1920, %v1933
      %1936 = vbcast.lane.b32.xlu0 %v1934, 256
      %v1937 = vpop.permute.xlu0 %1936
      %v1938 = vlaneseq
      %v1939 = vshrl.u32 %v1938, 7
      %v1940 = vsub.s32 2, %v1939
      %v1941 = vrot.slane %v1920, %v1940
      %1943 = vbcast.lane.b32.xlu0 %v1941, 256
      %v1944 = vpop.permute.xlu0 %1943
      %v1945 = vlaneseq
      %v1946 = vshrl.u32 %v1945, 7
      %v1947 = vsub.s32 3, %v1946
      %v1948 = vrot.slane %v1920, %v1947
      %1950 = vbcast.lane.b32.xlu0 %v1948, 256
      %v1951 = vpop.permute.xlu0 %1950
      %v1952 = vlaneseq
      %v1953 = vshrl.u32 %v1952, 7
      %v1954 = vsub.s32 4, %v1953
      %v1955 = vrot.slane %v1920, %v1954
      %1957 = vbcast.lane.b32.xlu0 %v1955, 256
      %v1958 = vpop.permute.xlu0 %1957
      %v1959 = vlaneseq
      %v1960 = vshrl.u32 %v1959, 7
      %v1961 = vsub.s32 5, %v1960
      %v1962 = vrot.slane %v1920, %v1961
      %1964 = vbcast.lane.b32.xlu0 %v1962, 256
      %v1965 = vpop.permute.xlu0 %1964
      %v1966 = vlaneseq
      %v1967 = vshrl.u32 %v1966, 7
      %v1968 = vsub.s32 6, %v1967
      %v1969 = vrot.slane %v1920, %v1968
      %1971 = vbcast.lane.b32.xlu0 %v1969, 256
      %v1972 = vpop.permute.xlu0 %1971
      %v1973 = vlaneseq
      %v1974 = vshrl.u32 %v1973, 7
      %v1975 = vsub.s32 7, %v1974
      %v1976 = vrot.slane %v1920, %v1975
      %1978 = vbcast.lane.b32.xlu0 %v1976, 256
      %v1979 = vpop.permute.xlu0 %1978
      %v1980 = vlaneseq
      %v1981 = vshrl.u32 %v1980, 7
      %v1982 = vsub.s32 0, %v1981
      %v1983 = vrot.slane %v1921, %v1982
      %1985 = vbcast.lane.b32.xlu0 %v1983, 256
      %v1986 = vpop.permute.xlu0 %1985
      %v1987 = vlaneseq
      %v1988 = vshrl.u32 %v1987, 7
      %v1989 = vsub.s32 1, %v1988
      %v1990 = vrot.slane %v1921, %v1989
      %1992 = vbcast.lane.b32.xlu0 %v1990, 256
      %v1993 = vpop.permute.xlu0 %1992
      %v1994 = vlaneseq
      %v1995 = vshrl.u32 %v1994, 7
      %v1996 = vsub.s32 2, %v1995
      %v1997 = vrot.slane %v1921, %v1996
      %1999 = vbcast.lane.b32.xlu0 %v1997, 256
      %v2000 = vpop.permute.xlu0 %1999
      %v2001 = vlaneseq
      %v2002 = vshrl.u32 %v2001, 7
      %v2003 = vsub.s32 3, %v2002
      %v2004 = vrot.slane %v1921, %v2003
      %2006 = vbcast.lane.b32.xlu0 %v2004, 256
      %v2007 = vpop.permute.xlu0 %2006
      %v2008 = vlaneseq
      %v2009 = vshrl.u32 %v2008, 7
      %v2010 = vsub.s32 4, %v2009
      %v2011 = vrot.slane %v1921, %v2010
      %2013 = vbcast.lane.b32.xlu0 %v2011, 256
      %v2014 = vpop.permute.xlu0 %2013
      %v2015 = vlaneseq
      %v2016 = vshrl.u32 %v2015, 7
      %v2017 = vsub.s32 5, %v2016
      %v2018 = vrot.slane %v1921, %v2017
      %2020 = vbcast.lane.b32.xlu0 %v2018, 256
      %v2021 = vpop.permute.xlu0 %2020
      %v2022 = vlaneseq
      %v2023 = vshrl.u32 %v2022, 7
      %v2024 = vsub.s32 6, %v2023
      %v2025 = vrot.slane %v1921, %v2024
      %2027 = vbcast.lane.b32.xlu0 %v2025, 256
      %v2028 = vpop.permute.xlu0 %2027
      %v2029 = vlaneseq
      %v2030 = vshrl.u32 %v2029, 7
      %v2031 = vsub.s32 7, %v2030
      %v2032 = vrot.slane %v1921, %v2031
      %2034 = vbcast.lane.b32.xlu0 %v2032, 256
      %v2035 = vpop.permute.xlu0 %2034
      %v2036 = vlaneseq
      %v2037 = vshrl.u32 %v2036, 7
      %v2038 = vsub.s32 0, %v2037
      %v2039 = vrot.slane %v1922, %v2038
      %2041 = vbcast.lane.b32.xlu0 %v2039, 256
      %v2042 = vpop.permute.xlu0 %2041
      %v2043 = vlaneseq
      %v2044 = vshrl.u32 %v2043, 7
      %v2045 = vsub.s32 1, %v2044
      %v2046 = vrot.slane %v1922, %v2045
      %2048 = vbcast.lane.b32.xlu0 %v2046, 256
      %v2049 = vpop.permute.xlu0 %2048
      %v2050 = vlaneseq
      %v2051 = vshrl.u32 %v2050, 7
      %v2052 = vsub.s32 2, %v2051
      %v2053 = vrot.slane %v1922, %v2052
      %2055 = vbcast.lane.b32.xlu0 %v2053, 256
      %v2056 = vpop.permute.xlu0 %2055
      %v2057 = vlaneseq
      %v2058 = vshrl.u32 %v2057, 7
      %v2059 = vsub.s32 3, %v2058
      %v2060 = vrot.slane %v1922, %v2059
      %2062 = vbcast.lane.b32.xlu0 %v2060, 256
      %v2063 = vpop.permute.xlu0 %2062
      %v2064 = vlaneseq
      %v2065 = vshrl.u32 %v2064, 7
      %v2066 = vsub.s32 4, %v2065
      %v2067 = vrot.slane %v1922, %v2066
      %2069 = vbcast.lane.b32.xlu0 %v2067, 256
      %v2070 = vpop.permute.xlu0 %2069
      %v2071 = vlaneseq
      %v2072 = vshrl.u32 %v2071, 7
      %v2073 = vsub.s32 5, %v2072
      %v2074 = vrot.slane %v1922, %v2073
      %2076 = vbcast.lane.b32.xlu0 %v2074, 256
      %v2077 = vpop.permute.xlu0 %2076
      %v2078 = vlaneseq
      %v2079 = vshrl.u32 %v2078, 7
      %v2080 = vsub.s32 6, %v2079
      %v2081 = vrot.slane %v1922, %v2080
      %2083 = vbcast.lane.b32.xlu0 %v2081, 256
      %v2084 = vpop.permute.xlu0 %2083
      %v2085 = vlaneseq
      %v2086 = vshrl.u32 %v2085, 7
      %v2087 = vsub.s32 7, %v2086
      %v2088 = vrot.slane %v1922, %v2087
      %2090 = vbcast.lane.b32.xlu0 %v2088, 256
      %v2091 = vpop.permute.xlu0 %2090
      %v2092 = vlaneseq
      %v2093 = vshrl.u32 %v2092, 7
      %v2094 = vsub.s32 0, %v2093
      %v2095 = vrot.slane %v1923, %v2094
      %2097 = vbcast.lane.b32.xlu0 %v2095, 256
      %v2098 = vpop.permute.xlu0 %2097
      %v2099 = vlaneseq
      %v2100 = vshrl.u32 %v2099, 7
      %v2101 = vsub.s32 1, %v2100
      %v2102 = vrot.slane %v1923, %v2101
      %2104 = vbcast.lane.b32.xlu0 %v2102, 256
      %v2105 = vpop.permute.xlu0 %2104
      %v2106 = vlaneseq
      %v2107 = vshrl.u32 %v2106, 7
      %v2108 = vsub.s32 2, %v2107
      %v2109 = vrot.slane %v1923, %v2108
      %2111 = vbcast.lane.b32.xlu0 %v2109, 256
      %v2112 = vpop.permute.xlu0 %2111
      %v2113 = vlaneseq
      %v2114 = vshrl.u32 %v2113, 7
      %v2115 = vsub.s32 3, %v2114
      %v2116 = vrot.slane %v1923, %v2115
      %2118 = vbcast.lane.b32.xlu0 %v2116, 256
      %v2119 = vpop.permute.xlu0 %2118
      %v2120 = vlaneseq
      %v2121 = vshrl.u32 %v2120, 7
      %v2122 = vsub.s32 4, %v2121
      %v2123 = vrot.slane %v1923, %v2122
      %2125 = vbcast.lane.b32.xlu0 %v2123, 256
      %v2126 = vpop.permute.xlu0 %2125
      %v2127 = vlaneseq
      %v2128 = vshrl.u32 %v2127, 7
      %v2129 = vsub.s32 5, %v2128
      %v2130 = vrot.slane %v1923, %v2129
      %2132 = vbcast.lane.b32.xlu0 %v2130, 256
      %v2133 = vpop.permute.xlu0 %2132
      %v2134 = vlaneseq
      %v2135 = vshrl.u32 %v2134, 7
      %v2136 = vsub.s32 6, %v2135
      %v2137 = vrot.slane %v1923, %v2136
      %2139 = vbcast.lane.b32.xlu0 %v2137, 256
      %v2140 = vpop.permute.xlu0 %2139
      %v2141 = vlaneseq
      %v2142 = vshrl.u32 %v2141, 7
      %v2143 = vsub.s32 7, %v2142
      %v2144 = vrot.slane %v1923, %v2143
      %2146 = vbcast.lane.b32.xlu0 %v2144, 256
      %v2147 = vpop.permute.xlu0 %2146
      %v2156 = vrot.slane %v1657, 7
      %v2157 = vsel %vm1395, %v2156, %v1656
      %v2158 = vrot.slane %v1658, 6
      %v2159 = vsel %vm1397, %v2158, %v2157
      %v2160 = vrot.slane %v1659, 5
      %v2161 = vsel %vm1399, %v2160, %v2159
      %v2162 = vrot.slane %v1660, 4
      %v2163 = vsel %vm1401, %v2162, %v2161
      %v2164 = vrot.slane %v1661, 3
      %v2165 = vsel %vm1403, %v2164, %v2163
      %v2166 = vrot.slane %v1662, 2
      %v2167 = vsel %vm1405, %v2166, %v2165
      %v2168 = vrot.slane %v1663, 1
      %v2169 = vsel %vm1407, %v2168, %v2167
      %v2171 = vmul.f32 %v1930, %v2169
      %v2172 = vmul.f32 %v1937, %v2169
      %v2173 = vmul.f32 %v1944, %v2169
      %v2174 = vmul.f32 %v1951, %v2169
      %v2175 = vmul.f32 %v1958, %v2169
      %v2176 = vmul.f32 %v1965, %v2169
      %v2177 = vmul.f32 %v1972, %v2169
      %v2178 = vmul.f32 %v1979, %v2169
      %v2179 = vmul.f32 %v1986, %v2169
      %v2180 = vmul.f32 %v1993, %v2169
      %v2181 = vmul.f32 %v2000, %v2169
      %v2182 = vmul.f32 %v2007, %v2169
      %v2183 = vmul.f32 %v2014, %v2169
      %v2184 = vmul.f32 %v2021, %v2169
      %v2185 = vmul.f32 %v2028, %v2169
      %v2186 = vmul.f32 %v2035, %v2169
      %v2187 = vmul.f32 %v2042, %v2169
      %v2188 = vmul.f32 %v2049, %v2169
      %v2189 = vmul.f32 %v2056, %v2169
      %v2190 = vmul.f32 %v2063, %v2169
      %v2191 = vmul.f32 %v2070, %v2169
      %v2192 = vmul.f32 %v2077, %v2169
      %v2193 = vmul.f32 %v2084, %v2169
      %v2194 = vmul.f32 %v2091, %v2169
      %v2195 = vmul.f32 %v2098, %v2169
      %v2196 = vmul.f32 %v2105, %v2169
      %v2197 = vmul.f32 %v2112, %v2169
      %v2198 = vmul.f32 %v2119, %v2169
      %v2199 = vmul.f32 %v2126, %v2169
      %v2200 = vmul.f32 %v2133, %v2169
      %v2201 = vmul.f32 %v2140, %v2169
      %v2202 = vmul.f32 %v2147, %v2169
      %v2203 = vsel %vm370, %v2171, 0.0
      %v2204 = vrot.slane %v2203, 4
      %v2205 = vadd.f32 %v2203, %v2204
      %v2206 = vrot.slane %v2205, 2
      %v2207 = vadd.f32 %v2205, %v2206
      %v2208 = vrot.slane %v2207, 1
      %v2209 = vadd.f32 %v2207, %v2208
      %v2210 = vsel %vm370, %v2172, 0.0
      %v2211 = vrot.slane %v2210, 4
      %v2212 = vadd.f32 %v2210, %v2211
      %v2213 = vrot.slane %v2212, 2
      %v2214 = vadd.f32 %v2212, %v2213
      %v2215 = vrot.slane %v2214, 1
      %v2216 = vadd.f32 %v2214, %v2215
      %v2217 = vsel %vm370, %v2173, 0.0
      %v2218 = vrot.slane %v2217, 4
      %v2219 = vadd.f32 %v2217, %v2218
      %v2220 = vrot.slane %v2219, 2
      %v2221 = vadd.f32 %v2219, %v2220
      %v2222 = vrot.slane %v2221, 1
      %v2223 = vadd.f32 %v2221, %v2222
      %v2224 = vsel %vm370, %v2174, 0.0
      %v2225 = vrot.slane %v2224, 4
      %v2226 = vadd.f32 %v2224, %v2225
      %v2227 = vrot.slane %v2226, 2
      %v2228 = vadd.f32 %v2226, %v2227
      %v2229 = vrot.slane %v2228, 1
      %v2230 = vadd.f32 %v2228, %v2229
      %v2231 = vsel %vm370, %v2175, 0.0
      %v2232 = vrot.slane %v2231, 4
      %v2233 = vadd.f32 %v2231, %v2232
      %v2234 = vrot.slane %v2233, 2
      %v2235 = vadd.f32 %v2233, %v2234
      %v2236 = vrot.slane %v2235, 1
      %v2237 = vadd.f32 %v2235, %v2236
      %v2238 = vsel %vm370, %v2176, 0.0
      %v2239 = vrot.slane %v2238, 4
      %v2240 = vadd.f32 %v2238, %v2239
      %v2241 = vrot.slane %v2240, 2
      %v2242 = vadd.f32 %v2240, %v2241
      %v2243 = vrot.slane %v2242, 1
      %v2244 = vadd.f32 %v2242, %v2243
      %v2245 = vsel %vm370, %v2177, 0.0
      %v2246 = vrot.slane %v2245, 4
      %v2247 = vadd.f32 %v2245, %v2246
      %v2248 = vrot.slane %v2247, 2
      %v2249 = vadd.f32 %v2247, %v2248
      %v2250 = vrot.slane %v2249, 1
      %v2251 = vadd.f32 %v2249, %v2250
      %v2252 = vsel %vm370, %v2178, 0.0
      %v2253 = vrot.slane %v2252, 4
      %v2254 = vadd.f32 %v2252, %v2253
      %v2255 = vrot.slane %v2254, 2
      %v2256 = vadd.f32 %v2254, %v2255
      %v2257 = vrot.slane %v2256, 1
      %v2258 = vadd.f32 %v2256, %v2257
      %v2259 = vsel %vm370, %v2179, 0.0
      %v2260 = vrot.slane %v2259, 4
      %v2261 = vadd.f32 %v2259, %v2260
      %v2262 = vrot.slane %v2261, 2
      %v2263 = vadd.f32 %v2261, %v2262
      %v2264 = vrot.slane %v2263, 1
      %v2265 = vadd.f32 %v2263, %v2264
      %v2266 = vsel %vm370, %v2180, 0.0
      %v2267 = vrot.slane %v2266, 4
      %v2268 = vadd.f32 %v2266, %v2267
      %v2269 = vrot.slane %v2268, 2
      %v2270 = vadd.f32 %v2268, %v2269
      %v2271 = vrot.slane %v2270, 1
      %v2272 = vadd.f32 %v2270, %v2271
      %v2273 = vsel %vm370, %v2181, 0.0
      %v2274 = vrot.slane %v2273, 4
      %v2275 = vadd.f32 %v2273, %v2274
      %v2276 = vrot.slane %v2275, 2
      %v2277 = vadd.f32 %v2275, %v2276
      %v2278 = vrot.slane %v2277, 1
      %v2279 = vadd.f32 %v2277, %v2278
      %v2280 = vsel %vm370, %v2182, 0.0
      %v2281 = vrot.slane %v2280, 4
      %v2282 = vadd.f32 %v2280, %v2281
      %v2283 = vrot.slane %v2282, 2
      %v2284 = vadd.f32 %v2282, %v2283
      %v2285 = vrot.slane %v2284, 1
      %v2286 = vadd.f32 %v2284, %v2285
      %v2287 = vsel %vm370, %v2183, 0.0
      %v2288 = vrot.slane %v2287, 4
      %v2289 = vadd.f32 %v2287, %v2288
      %v2290 = vrot.slane %v2289, 2
      %v2291 = vadd.f32 %v2289, %v2290
      %v2292 = vrot.slane %v2291, 1
      %v2293 = vadd.f32 %v2291, %v2292
      %v2294 = vsel %vm370, %v2184, 0.0
      %v2295 = vrot.slane %v2294, 4
      %v2296 = vadd.f32 %v2294, %v2295
      %v2297 = vrot.slane %v2296, 2
      %v2298 = vadd.f32 %v2296, %v2297
      %v2299 = vrot.slane %v2298, 1
      %v2300 = vadd.f32 %v2298, %v2299
      %v2301 = vsel %vm370, %v2185, 0.0
      %v2302 = vrot.slane %v2301, 4
      %v2303 = vadd.f32 %v2301, %v2302
      %v2304 = vrot.slane %v2303, 2
      %v2305 = vadd.f32 %v2303, %v2304
      %v2306 = vrot.slane %v2305, 1
      %v2307 = vadd.f32 %v2305, %v2306
      %v2308 = vsel %vm370, %v2186, 0.0
      %v2309 = vrot.slane %v2308, 4
      %v2310 = vadd.f32 %v2308, %v2309
      %v2311 = vrot.slane %v2310, 2
      %v2312 = vadd.f32 %v2310, %v2311
      %v2313 = vrot.slane %v2312, 1
      %v2314 = vadd.f32 %v2312, %v2313
      %v2315 = vsel %vm370, %v2187, 0.0
      %v2316 = vrot.slane %v2315, 4
      %v2317 = vadd.f32 %v2315, %v2316
      %v2318 = vrot.slane %v2317, 2
      %v2319 = vadd.f32 %v2317, %v2318
      %v2320 = vrot.slane %v2319, 1
      %v2321 = vadd.f32 %v2319, %v2320
      %v2322 = vsel %vm370, %v2188, 0.0
      %v2323 = vrot.slane %v2322, 4
      %v2324 = vadd.f32 %v2322, %v2323
      %v2325 = vrot.slane %v2324, 2
      %v2326 = vadd.f32 %v2324, %v2325
      %v2327 = vrot.slane %v2326, 1
      %v2328 = vadd.f32 %v2326, %v2327
      %v2329 = vsel %vm370, %v2189, 0.0
      %v2330 = vrot.slane %v2329, 4
      %v2331 = vadd.f32 %v2329, %v2330
      %v2332 = vrot.slane %v2331, 2
      %v2333 = vadd.f32 %v2331, %v2332
      %v2334 = vrot.slane %v2333, 1
      %v2335 = vadd.f32 %v2333, %v2334
      %v2336 = vsel %vm370, %v2190, 0.0
      %v2337 = vrot.slane %v2336, 4
      %v2338 = vadd.f32 %v2336, %v2337
      %v2339 = vrot.slane %v2338, 2
      %v2340 = vadd.f32 %v2338, %v2339
      %v2341 = vrot.slane %v2340, 1
      %v2342 = vadd.f32 %v2340, %v2341
      %v2343 = vsel %vm370, %v2191, 0.0
      %v2344 = vrot.slane %v2343, 4
      %v2345 = vadd.f32 %v2343, %v2344
      %v2346 = vrot.slane %v2345, 2
      %v2347 = vadd.f32 %v2345, %v2346
      %v2348 = vrot.slane %v2347, 1
      %v2349 = vadd.f32 %v2347, %v2348
      %v2350 = vsel %vm370, %v2192, 0.0
      %v2351 = vrot.slane %v2350, 4
      %v2352 = vadd.f32 %v2350, %v2351
      %v2353 = vrot.slane %v2352, 2
      %v2354 = vadd.f32 %v2352, %v2353
      %v2355 = vrot.slane %v2354, 1
      %v2356 = vadd.f32 %v2354, %v2355
      %v2357 = vsel %vm370, %v2193, 0.0
      %v2358 = vrot.slane %v2357, 4
      %v2359 = vadd.f32 %v2357, %v2358
      %v2360 = vrot.slane %v2359, 2
      %v2361 = vadd.f32 %v2359, %v2360
      %v2362 = vrot.slane %v2361, 1
      %v2363 = vadd.f32 %v2361, %v2362
      %v2364 = vsel %vm370, %v2194, 0.0
      %v2365 = vrot.slane %v2364, 4
      %v2366 = vadd.f32 %v2364, %v2365
      %v2367 = vrot.slane %v2366, 2
      %v2368 = vadd.f32 %v2366, %v2367
      %v2369 = vrot.slane %v2368, 1
      %v2370 = vadd.f32 %v2368, %v2369
      %v2371 = vsel %vm370, %v2195, 0.0
      %v2372 = vrot.slane %v2371, 4
      %v2373 = vadd.f32 %v2371, %v2372
      %v2374 = vrot.slane %v2373, 2
      %v2375 = vadd.f32 %v2373, %v2374
      %v2376 = vrot.slane %v2375, 1
      %v2377 = vadd.f32 %v2375, %v2376
      %v2378 = vsel %vm370, %v2196, 0.0
      %v2379 = vrot.slane %v2378, 4
      %v2380 = vadd.f32 %v2378, %v2379
      %v2381 = vrot.slane %v2380, 2
      %v2382 = vadd.f32 %v2380, %v2381
      %v2383 = vrot.slane %v2382, 1
      %v2384 = vadd.f32 %v2382, %v2383
      %v2385 = vsel %vm370, %v2197, 0.0
      %v2386 = vrot.slane %v2385, 4
      %v2387 = vadd.f32 %v2385, %v2386
      %v2388 = vrot.slane %v2387, 2
      %v2389 = vadd.f32 %v2387, %v2388
      %v2390 = vrot.slane %v2389, 1
      %v2391 = vadd.f32 %v2389, %v2390
      %v2392 = vsel %vm370, %v2198, 0.0
      %v2393 = vrot.slane %v2392, 4
      %v2394 = vadd.f32 %v2392, %v2393
      %v2395 = vrot.slane %v2394, 2
      %v2396 = vadd.f32 %v2394, %v2395
      %v2397 = vrot.slane %v2396, 1
      %v2398 = vadd.f32 %v2396, %v2397
      %v2399 = vsel %vm370, %v2199, 0.0
      %v2400 = vrot.slane %v2399, 4
      %v2401 = vadd.f32 %v2399, %v2400
      %v2402 = vrot.slane %v2401, 2
      %v2403 = vadd.f32 %v2401, %v2402
      %v2404 = vrot.slane %v2403, 1
      %v2405 = vadd.f32 %v2403, %v2404
      %v2406 = vsel %vm370, %v2200, 0.0
      %v2407 = vrot.slane %v2406, 4
      %v2408 = vadd.f32 %v2406, %v2407
      %v2409 = vrot.slane %v2408, 2
      %v2410 = vadd.f32 %v2408, %v2409
      %v2411 = vrot.slane %v2410, 1
      %v2412 = vadd.f32 %v2410, %v2411
      %v2413 = vsel %vm370, %v2201, 0.0
      %v2414 = vrot.slane %v2413, 4
      %v2415 = vadd.f32 %v2413, %v2414
      %v2416 = vrot.slane %v2415, 2
      %v2417 = vadd.f32 %v2415, %v2416
      %v2418 = vrot.slane %v2417, 1
      %v2419 = vadd.f32 %v2417, %v2418
      %v2420 = vsel %vm370, %v2202, 0.0
      %v2421 = vrot.slane %v2420, 4
      %v2422 = vadd.f32 %v2420, %v2421
      %v2423 = vrot.slane %v2422, 2
      %v2424 = vadd.f32 %v2422, %v2423
      %v2425 = vrot.slane %v2424, 1
      %v2426 = vadd.f32 %v2424, %v2425
      %v2427 = vld [vmem:[%s5] sm:$0xff]
      %v2428 = vld [vmem:[%s5 + $0x8] sm:$0xff]
      %v2429 = vld [vmem:[%s5 + $0x10] sm:$0xff]
      %v2430 = vld [vmem:[%s5 + $0x18] sm:$0xff]
      %2432 = vset.pattern.permute.xlu0 0
      %2433 = vperm.xlu0 %2432, %v2427
      %v2434 = vpop.permute.xlu0 %2433
      %2436 = vset.pattern.permute.xlu0 0
      %2437 = vperm.xlu0 %2436, %v2428
      %v2438 = vpop.permute.xlu0 %2437
      %2440 = vset.pattern.permute.xlu0 0
      %2441 = vperm.xlu0 %2440, %v2429
      %v2442 = vpop.permute.xlu0 %2441
      %2444 = vset.pattern.permute.xlu0 0
      %2445 = vperm.xlu0 %2444, %v2430
      %v2446 = vpop.permute.xlu0 %2445
      %v2447 = vrot.slane %v2434, 1
      %v2448 = vrot.slane %v2434, 2
      %v2449 = vrot.slane %v2434, 3
      %v2450 = vrot.slane %v2434, 4
      %v2451 = vrot.slane %v2434, 5
      %v2452 = vrot.slane %v2434, 6
      %v2453 = vrot.slane %v2434, 7
      %v2454 = vrot.slane %v2438, 1
      %v2455 = vrot.slane %v2438, 2
      %v2456 = vrot.slane %v2438, 3
      %v2457 = vrot.slane %v2438, 4
      %v2458 = vrot.slane %v2438, 5
      %v2459 = vrot.slane %v2438, 6
      %v2460 = vrot.slane %v2438, 7
      %v2461 = vrot.slane %v2442, 1
      %v2462 = vrot.slane %v2442, 2
      %v2463 = vrot.slane %v2442, 3
      %v2464 = vrot.slane %v2442, 4
      %v2465 = vrot.slane %v2442, 5
      %v2466 = vrot.slane %v2442, 6
      %v2467 = vrot.slane %v2442, 7
      %v2468 = vrot.slane %v2446, 1
      %v2469 = vrot.slane %v2446, 2
      %v2470 = vrot.slane %v2446, 3
      %v2471 = vrot.slane %v2446, 4
      %v2472 = vrot.slane %v2446, 5
      %v2473 = vrot.slane %v2446, 6
      %v2474 = vrot.slane %v2446, 7
      %v2507 = vadd.f32 %v2209, %v2434
      %v2508 = vadd.f32 %v2216, %v2447
      %v2509 = vadd.f32 %v2223, %v2448
      %v2510 = vadd.f32 %v2230, %v2449
      %v2511 = vadd.f32 %v2237, %v2450
      %v2512 = vadd.f32 %v2244, %v2451
      %v2513 = vadd.f32 %v2251, %v2452
      %v2514 = vadd.f32 %v2258, %v2453
      %v2515 = vadd.f32 %v2265, %v2438
      %v2516 = vadd.f32 %v2272, %v2454
      %v2517 = vadd.f32 %v2279, %v2455
      %v2518 = vadd.f32 %v2286, %v2456
      %v2519 = vadd.f32 %v2293, %v2457
      %v2520 = vadd.f32 %v2300, %v2458
      %v2521 = vadd.f32 %v2307, %v2459
      %v2522 = vadd.f32 %v2314, %v2460
      %v2523 = vadd.f32 %v2321, %v2442
      %v2524 = vadd.f32 %v2328, %v2461
      %v2525 = vadd.f32 %v2335, %v2462
      %v2526 = vadd.f32 %v2342, %v2463
      %v2527 = vadd.f32 %v2349, %v2464
      %v2528 = vadd.f32 %v2356, %v2465
      %v2529 = vadd.f32 %v2363, %v2466
      %v2530 = vadd.f32 %v2370, %v2467
      %v2531 = vadd.f32 %v2377, %v2446
      %v2532 = vadd.f32 %v2384, %v2468
      %v2533 = vadd.f32 %v2391, %v2469
      %v2534 = vadd.f32 %v2398, %v2470
      %v2535 = vadd.f32 %v2405, %v2471
      %v2536 = vadd.f32 %v2412, %v2472
      %v2537 = vadd.f32 %v2419, %v2473
      %v2538 = vadd.f32 %v2426, %v2474
      %v2539 = vxor.u32 %v2507, 2147483648
      %v2540 = vxor.u32 %v2508, 2147483648
      %v2541 = vxor.u32 %v2509, 2147483648
      %v2542 = vxor.u32 %v2510, 2147483648
      %v2543 = vxor.u32 %v2511, 2147483648
      %v2544 = vxor.u32 %v2512, 2147483648
      %v2545 = vxor.u32 %v2513, 2147483648
      %v2546 = vxor.u32 %v2514, 2147483648
      %v2547 = vxor.u32 %v2515, 2147483648
      %v2548 = vxor.u32 %v2516, 2147483648
      %v2549 = vxor.u32 %v2517, 2147483648
      %v2550 = vxor.u32 %v2518, 2147483648
      %v2551 = vxor.u32 %v2519, 2147483648
      %v2552 = vxor.u32 %v2520, 2147483648
      %v2553 = vxor.u32 %v2521, 2147483648
      %v2554 = vxor.u32 %v2522, 2147483648
      %v2555 = vxor.u32 %v2523, 2147483648
      %v2556 = vxor.u32 %v2524, 2147483648
      %v2557 = vxor.u32 %v2525, 2147483648
      %v2558 = vxor.u32 %v2526, 2147483648
      %v2559 = vxor.u32 %v2527, 2147483648
      %v2560 = vxor.u32 %v2528, 2147483648
      %v2561 = vxor.u32 %v2529, 2147483648
      %v2562 = vxor.u32 %v2530, 2147483648
      %v2563 = vxor.u32 %v2531, 2147483648
      %v2564 = vxor.u32 %v2532, 2147483648
      %v2565 = vxor.u32 %v2533, 2147483648
      %v2566 = vxor.u32 %v2534, 2147483648
      %v2567 = vxor.u32 %v2535, 2147483648
      %v2568 = vxor.u32 %v2536, 2147483648
      %v2569 = vxor.u32 %v2537, 2147483648
      %v2570 = vxor.u32 %v2538, 2147483648
      %v2571 = vmul.f32 %v2539, 1.442695
      %v2572 = vpow.pop %v2571
      %v2573 = vmul.f32 %v2540, 1.442695
      %v2574 = vpow.pop %v2573
      %v2575 = vmul.f32 %v2541, 1.442695
      %v2576 = vpow.pop %v2575
      %v2577 = vmul.f32 %v2542, 1.442695
      %v2578 = vpow.pop %v2577
      %v2579 = vmul.f32 %v2543, 1.442695
      %v2580 = vpow.pop %v2579
      %v2581 = vmul.f32 %v2544, 1.442695
      %v2582 = vpow.pop %v2581
      %v2583 = vmul.f32 %v2545, 1.442695
      %v2584 = vpow.pop %v2583
      %v2585 = vmul.f32 %v2546, 1.442695
      %v2586 = vpow.pop %v2585
      %v2587 = vmul.f32 %v2547, 1.442695
      %v2588 = vpow.pop %v2587
      %v2589 = vmul.f32 %v2548, 1.442695
      %v2590 = vpow.pop %v2589
      %v2591 = vmul.f32 %v2549, 1.442695
      %v2592 = vpow.pop %v2591
      %v2593 = vmul.f32 %v2550, 1.442695
      %v2594 = vpow.pop %v2593
      %v2595 = vmul.f32 %v2551, 1.442695
      %v2596 = vpow.pop %v2595
      %v2597 = vmul.f32 %v2552, 1.442695
      %v2598 = vpow.pop %v2597
      %v2599 = vmul.f32 %v2553, 1.442695
      %v2600 = vpow.pop %v2599
      %v2601 = vmul.f32 %v2554, 1.442695
      %v2602 = vpow.pop %v2601
      %v2603 = vmul.f32 %v2555, 1.442695
      %v2604 = vpow.pop %v2603
      %v2605 = vmul.f32 %v2556, 1.442695
      %v2606 = vpow.pop %v2605
      %v2607 = vmul.f32 %v2557, 1.442695
      %v2608 = vpow.pop %v2607
      %v2609 = vmul.f32 %v2558, 1.442695
      %v2610 = vpow.pop %v2609
      %v2611 = vmul.f32 %v2559, 1.442695
      %v2612 = vpow.pop %v2611
      %v2613 = vmul.f32 %v2560, 1.442695
      %v2614 = vpow.pop %v2613
      %v2615 = vmul.f32 %v2561, 1.442695
      %v2616 = vpow.pop %v2615
      %v2617 = vmul.f32 %v2562, 1.442695
      %v2618 = vpow.pop %v2617
      %v2619 = vmul.f32 %v2563, 1.442695
      %v2620 = vpow.pop %v2619
      %v2621 = vmul.f32 %v2564, 1.442695
      %v2622 = vpow.pop %v2621
      %v2623 = vmul.f32 %v2565, 1.442695
      %v2624 = vpow.pop %v2623
      %v2625 = vmul.f32 %v2566, 1.442695
      %v2626 = vpow.pop %v2625
      %v2627 = vmul.f32 %v2567, 1.442695
      %v2628 = vpow.pop %v2627
      %v2629 = vmul.f32 %v2568, 1.442695
      %v2630 = vpow.pop %v2629
      %v2631 = vmul.f32 %v2569, 1.442695
      %v2632 = vpow.pop %v2631
      %v2633 = vmul.f32 %v2570, 1.442695
      %v2634 = vpow.pop %v2633
      %v2635 = vadd.f32 %v2572, 1.0
      %v2636 = vadd.f32 %v2574, 1.0
      %v2637 = vadd.f32 %v2576, 1.0
      %v2638 = vadd.f32 %v2578, 1.0
      %v2639 = vadd.f32 %v2580, 1.0
      %v2640 = vadd.f32 %v2582, 1.0
      %v2641 = vadd.f32 %v2584, 1.0
      %v2642 = vadd.f32 %v2586, 1.0
      %v2643 = vadd.f32 %v2588, 1.0
      %v2644 = vadd.f32 %v2590, 1.0
      %v2645 = vadd.f32 %v2592, 1.0
      %v2646 = vadd.f32 %v2594, 1.0
      %v2647 = vadd.f32 %v2596, 1.0
      %v2648 = vadd.f32 %v2598, 1.0
      %v2649 = vadd.f32 %v2600, 1.0
      %v2650 = vadd.f32 %v2602, 1.0
      %v2651 = vadd.f32 %v2604, 1.0
      %v2652 = vadd.f32 %v2606, 1.0
      %v2653 = vadd.f32 %v2608, 1.0
      %v2654 = vadd.f32 %v2610, 1.0
      %v2655 = vadd.f32 %v2612, 1.0
      %v2656 = vadd.f32 %v2614, 1.0
      %v2657 = vadd.f32 %v2616, 1.0
      %v2658 = vadd.f32 %v2618, 1.0
      %v2659 = vadd.f32 %v2620, 1.0
      %v2660 = vadd.f32 %v2622, 1.0
      %v2661 = vadd.f32 %v2624, 1.0
      %v2662 = vadd.f32 %v2626, 1.0
      %v2663 = vadd.f32 %v2628, 1.0
      %v2664 = vadd.f32 %v2630, 1.0
      %v2665 = vadd.f32 %v2632, 1.0
      %v2666 = vadd.f32 %v2634, 1.0
      %v2667 = vrcp.pop %v2635
      %v2668 = vmul.f32 1.0, %v2667
      %v2669 = vrcp.pop %v2636
      %v2670 = vmul.f32 1.0, %v2669
      %v2671 = vrcp.pop %v2637
      %v2672 = vmul.f32 1.0, %v2671
      %v2673 = vrcp.pop %v2638
      %v2674 = vmul.f32 1.0, %v2673
      %v2675 = vrcp.pop %v2639
      %v2676 = vmul.f32 1.0, %v2675
      %v2677 = vrcp.pop %v2640
      %v2678 = vmul.f32 1.0, %v2677
      %v2679 = vrcp.pop %v2641
      %v2680 = vmul.f32 1.0, %v2679
      %v2681 = vrcp.pop %v2642
      %v2682 = vmul.f32 1.0, %v2681
      %v2683 = vrcp.pop %v2643
      %v2684 = vmul.f32 1.0, %v2683
      %v2685 = vrcp.pop %v2644
      %v2686 = vmul.f32 1.0, %v2685
      %v2687 = vrcp.pop %v2645
      %v2688 = vmul.f32 1.0, %v2687
      %v2689 = vrcp.pop %v2646
      %v2690 = vmul.f32 1.0, %v2689
      %v2691 = vrcp.pop %v2647
      %v2692 = vmul.f32 1.0, %v2691
      %v2693 = vrcp.pop %v2648
      %v2694 = vmul.f32 1.0, %v2693
      %v2695 = vrcp.pop %v2649
      %v2696 = vmul.f32 1.0, %v2695
      %v2697 = vrcp.pop %v2650
      %v2698 = vmul.f32 1.0, %v2697
      %v2699 = vrcp.pop %v2651
      %v2700 = vmul.f32 1.0, %v2699
      %v2701 = vrcp.pop %v2652
      %v2702 = vmul.f32 1.0, %v2701
      %v2703 = vrcp.pop %v2653
      %v2704 = vmul.f32 1.0, %v2703
      %v2705 = vrcp.pop %v2654
      %v2706 = vmul.f32 1.0, %v2705
      %v2707 = vrcp.pop %v2655
      %v2708 = vmul.f32 1.0, %v2707
      %v2709 = vrcp.pop %v2656
      %v2710 = vmul.f32 1.0, %v2709
      %v2711 = vrcp.pop %v2657
      %v2712 = vmul.f32 1.0, %v2711
      %v2713 = vrcp.pop %v2658
      %v2714 = vmul.f32 1.0, %v2713
      %v2715 = vrcp.pop %v2659
      %v2716 = vmul.f32 1.0, %v2715
      %v2717 = vrcp.pop %v2660
      %v2718 = vmul.f32 1.0, %v2717
      %v2719 = vrcp.pop %v2661
      %v2720 = vmul.f32 1.0, %v2719
      %v2721 = vrcp.pop %v2662
      %v2722 = vmul.f32 1.0, %v2721
      %v2723 = vrcp.pop %v2663
      %v2724 = vmul.f32 1.0, %v2723
      %v2725 = vrcp.pop %v2664
      %v2726 = vmul.f32 1.0, %v2725
      %v2727 = vrcp.pop %v2665
      %v2728 = vmul.f32 1.0, %v2727
      %v2729 = vrcp.pop %v2666
      %v2730 = vmul.f32 1.0, %v2729
      %v2731 = vld [vmem:[%s6] sm:$0xff]
      %v2732 = vld [vmem:[%s6 + $0x8] sm:$0xff]
      %v2733 = vld [vmem:[%s6 + $0x10] sm:$0xff]
      %v2734 = vld [vmem:[%s6 + $0x18] sm:$0xff]
      %v2735 = vlaneseq
      %v2736 = vshrl.u32 %v2735, 7
      %v2737 = vsub.s32 0, %v2736
      %v2738 = vrot.slane %v2731, %v2737
      %2740 = vbcast.lane.b32.xlu0 %v2738, 256
      %v2741 = vpop.permute.xlu0 %2740
      %v2742 = vlaneseq
      %v2743 = vshrl.u32 %v2742, 7
      %v2744 = vsub.s32 1, %v2743
      %v2745 = vrot.slane %v2731, %v2744
      %2747 = vbcast.lane.b32.xlu0 %v2745, 256
      %v2748 = vpop.permute.xlu0 %2747
      %v2749 = vlaneseq
      %v2750 = vshrl.u32 %v2749, 7
      %v2751 = vsub.s32 2, %v2750
      %v2752 = vrot.slane %v2731, %v2751
      %2754 = vbcast.lane.b32.xlu0 %v2752, 256
      %v2755 = vpop.permute.xlu0 %2754
      %v2756 = vlaneseq
      %v2757 = vshrl.u32 %v2756, 7
      %v2758 = vsub.s32 3, %v2757
      %v2759 = vrot.slane %v2731, %v2758
      %2761 = vbcast.lane.b32.xlu0 %v2759, 256
      %v2762 = vpop.permute.xlu0 %2761
      %v2763 = vlaneseq
      %v2764 = vshrl.u32 %v2763, 7
      %v2765 = vsub.s32 4, %v2764
      %v2766 = vrot.slane %v2731, %v2765
      %2768 = vbcast.lane.b32.xlu0 %v2766, 256
      %v2769 = vpop.permute.xlu0 %2768
      %v2770 = vlaneseq
      %v2771 = vshrl.u32 %v2770, 7
      %v2772 = vsub.s32 5, %v2771
      %v2773 = vrot.slane %v2731, %v2772
      %2775 = vbcast.lane.b32.xlu0 %v2773, 256
      %v2776 = vpop.permute.xlu0 %2775
      %v2777 = vlaneseq
      %v2778 = vshrl.u32 %v2777, 7
      %v2779 = vsub.s32 6, %v2778
      %v2780 = vrot.slane %v2731, %v2779
      %2782 = vbcast.lane.b32.xlu0 %v2780, 256
      %v2783 = vpop.permute.xlu0 %2782
      %v2784 = vlaneseq
      %v2785 = vshrl.u32 %v2784, 7
      %v2786 = vsub.s32 7, %v2785
      %v2787 = vrot.slane %v2731, %v2786
      %2789 = vbcast.lane.b32.xlu0 %v2787, 256
      %v2790 = vpop.permute.xlu0 %2789
      %v2791 = vlaneseq
      %v2792 = vshrl.u32 %v2791, 7
      %v2793 = vsub.s32 0, %v2792
      %v2794 = vrot.slane %v2732, %v2793
      %2796 = vbcast.lane.b32.xlu0 %v2794, 256
      %v2797 = vpop.permute.xlu0 %2796
      %v2798 = vlaneseq
      %v2799 = vshrl.u32 %v2798, 7
      %v2800 = vsub.s32 1, %v2799
      %v2801 = vrot.slane %v2732, %v2800
      %2803 = vbcast.lane.b32.xlu0 %v2801, 256
      %v2804 = vpop.permute.xlu0 %2803
      %v2805 = vlaneseq
      %v2806 = vshrl.u32 %v2805, 7
      %v2807 = vsub.s32 2, %v2806
      %v2808 = vrot.slane %v2732, %v2807
      %2810 = vbcast.lane.b32.xlu0 %v2808, 256
      %v2811 = vpop.permute.xlu0 %2810
      %v2812 = vlaneseq
      %v2813 = vshrl.u32 %v2812, 7
      %v2814 = vsub.s32 3, %v2813
      %v2815 = vrot.slane %v2732, %v2814
      %2817 = vbcast.lane.b32.xlu0 %v2815, 256
      %v2818 = vpop.permute.xlu0 %2817
      %v2819 = vlaneseq
      %v2820 = vshrl.u32 %v2819, 7
      %v2821 = vsub.s32 4, %v2820
      %v2822 = vrot.slane %v2732, %v2821
      %2824 = vbcast.lane.b32.xlu0 %v2822, 256
      %v2825 = vpop.permute.xlu0 %2824
      %v2826 = vlaneseq
      %v2827 = vshrl.u32 %v2826, 7
      %v2828 = vsub.s32 5, %v2827
      %v2829 = vrot.slane %v2732, %v2828
      %2831 = vbcast.lane.b32.xlu0 %v2829, 256
      %v2832 = vpop.permute.xlu0 %2831
      %v2833 = vlaneseq
      %v2834 = vshrl.u32 %v2833, 7
      %v2835 = vsub.s32 6, %v2834
      %v2836 = vrot.slane %v2732, %v2835
      %2838 = vbcast.lane.b32.xlu0 %v2836, 256
      %v2839 = vpop.permute.xlu0 %2838
      %v2840 = vlaneseq
      %v2841 = vshrl.u32 %v2840, 7
      %v2842 = vsub.s32 7, %v2841
      %v2843 = vrot.slane %v2732, %v2842
      %2845 = vbcast.lane.b32.xlu0 %v2843, 256
      %v2846 = vpop.permute.xlu0 %2845
      %v2847 = vlaneseq
      %v2848 = vshrl.u32 %v2847, 7
      %v2849 = vsub.s32 0, %v2848
      %v2850 = vrot.slane %v2733, %v2849
      %2852 = vbcast.lane.b32.xlu0 %v2850, 256
      %v2853 = vpop.permute.xlu0 %2852
      %v2854 = vlaneseq
      %v2855 = vshrl.u32 %v2854, 7
      %v2856 = vsub.s32 1, %v2855
      %v2857 = vrot.slane %v2733, %v2856
      %2859 = vbcast.lane.b32.xlu0 %v2857, 256
      %v2860 = vpop.permute.xlu0 %2859
      %v2861 = vlaneseq
      %v2862 = vshrl.u32 %v2861, 7
      %v2863 = vsub.s32 2, %v2862
      %v2864 = vrot.slane %v2733, %v2863
      %2866 = vbcast.lane.b32.xlu0 %v2864, 256
      %v2867 = vpop.permute.xlu0 %2866
      %v2868 = vlaneseq
      %v2869 = vshrl.u32 %v2868, 7
      %v2870 = vsub.s32 3, %v2869
      %v2871 = vrot.slane %v2733, %v2870
      %2873 = vbcast.lane.b32.xlu0 %v2871, 256
      %v2874 = vpop.permute.xlu0 %2873
      %v2875 = vlaneseq
      %v2876 = vshrl.u32 %v2875, 7
      %v2877 = vsub.s32 4, %v2876
      %v2878 = vrot.slane %v2733, %v2877
      %2880 = vbcast.lane.b32.xlu0 %v2878, 256
      %v2881 = vpop.permute.xlu0 %2880
      %v2882 = vlaneseq
      %v2883 = vshrl.u32 %v2882, 7
      %v2884 = vsub.s32 5, %v2883
      %v2885 = vrot.slane %v2733, %v2884
      %2887 = vbcast.lane.b32.xlu0 %v2885, 256
      %v2888 = vpop.permute.xlu0 %2887
      %v2889 = vlaneseq
      %v2890 = vshrl.u32 %v2889, 7
      %v2891 = vsub.s32 6, %v2890
      %v2892 = vrot.slane %v2733, %v2891
      %2894 = vbcast.lane.b32.xlu0 %v2892, 256
      %v2895 = vpop.permute.xlu0 %2894
      %v2896 = vlaneseq
      %v2897 = vshrl.u32 %v2896, 7
      %v2898 = vsub.s32 7, %v2897
      %v2899 = vrot.slane %v2733, %v2898
      %2901 = vbcast.lane.b32.xlu0 %v2899, 256
      %v2902 = vpop.permute.xlu0 %2901
      %v2903 = vlaneseq
      %v2904 = vshrl.u32 %v2903, 7
      %v2905 = vsub.s32 0, %v2904
      %v2906 = vrot.slane %v2734, %v2905
      %2908 = vbcast.lane.b32.xlu0 %v2906, 256
      %v2909 = vpop.permute.xlu0 %2908
      %v2910 = vlaneseq
      %v2911 = vshrl.u32 %v2910, 7
      %v2912 = vsub.s32 1, %v2911
      %v2913 = vrot.slane %v2734, %v2912
      %2915 = vbcast.lane.b32.xlu0 %v2913, 256
      %v2916 = vpop.permute.xlu0 %2915
      %v2917 = vlaneseq
      %v2918 = vshrl.u32 %v2917, 7
      %v2919 = vsub.s32 2, %v2918
      %v2920 = vrot.slane %v2734, %v2919
      %2922 = vbcast.lane.b32.xlu0 %v2920, 256
      %v2923 = vpop.permute.xlu0 %2922
      %v2924 = vlaneseq
      %v2925 = vshrl.u32 %v2924, 7
      %v2926 = vsub.s32 3, %v2925
      %v2927 = vrot.slane %v2734, %v2926
      %2929 = vbcast.lane.b32.xlu0 %v2927, 256
      %v2930 = vpop.permute.xlu0 %2929
      %v2931 = vlaneseq
      %v2932 = vshrl.u32 %v2931, 7
      %v2933 = vsub.s32 4, %v2932
      %v2934 = vrot.slane %v2734, %v2933
      %2936 = vbcast.lane.b32.xlu0 %v2934, 256
      %v2937 = vpop.permute.xlu0 %2936
      %v2938 = vlaneseq
      %v2939 = vshrl.u32 %v2938, 7
      %v2940 = vsub.s32 5, %v2939
      %v2941 = vrot.slane %v2734, %v2940
      %2943 = vbcast.lane.b32.xlu0 %v2941, 256
      %v2944 = vpop.permute.xlu0 %2943
      %v2945 = vlaneseq
      %v2946 = vshrl.u32 %v2945, 7
      %v2947 = vsub.s32 6, %v2946
      %v2948 = vrot.slane %v2734, %v2947
      %2950 = vbcast.lane.b32.xlu0 %v2948, 256
      %v2951 = vpop.permute.xlu0 %2950
      %v2952 = vlaneseq
      %v2953 = vshrl.u32 %v2952, 7
      %v2954 = vsub.s32 7, %v2953
      %v2955 = vrot.slane %v2734, %v2954
      %2957 = vbcast.lane.b32.xlu0 %v2955, 256
      %v2958 = vpop.permute.xlu0 %2957
      %v2967 = vrot.slane %v1913, 7
      %v2968 = vsel %vm1395, %v2967, %v1912
      %v2969 = vrot.slane %v1914, 6
      %v2970 = vsel %vm1397, %v2969, %v2968
      %v2971 = vrot.slane %v1915, 5
      %v2972 = vsel %vm1399, %v2971, %v2970
      %v2973 = vrot.slane %v1916, 4
      %v2974 = vsel %vm1401, %v2973, %v2972
      %v2975 = vrot.slane %v1917, 3
      %v2976 = vsel %vm1403, %v2975, %v2974
      %v2977 = vrot.slane %v1918, 2
      %v2978 = vsel %vm1405, %v2977, %v2976
      %v2979 = vrot.slane %v1919, 1
      %v2980 = vsel %vm1407, %v2979, %v2978
      %v2982 = vmul.f32 %v2741, %v2980
      %v2983 = vmul.f32 %v2748, %v2980
      %v2984 = vmul.f32 %v2755, %v2980
      %v2985 = vmul.f32 %v2762, %v2980
      %v2986 = vmul.f32 %v2769, %v2980
      %v2987 = vmul.f32 %v2776, %v2980
      %v2988 = vmul.f32 %v2783, %v2980
      %v2989 = vmul.f32 %v2790, %v2980
      %v2990 = vmul.f32 %v2797, %v2980
      %v2991 = vmul.f32 %v2804, %v2980
      %v2992 = vmul.f32 %v2811, %v2980
      %v2993 = vmul.f32 %v2818, %v2980
      %v2994 = vmul.f32 %v2825, %v2980
      %v2995 = vmul.f32 %v2832, %v2980
      %v2996 = vmul.f32 %v2839, %v2980
      %v2997 = vmul.f32 %v2846, %v2980
      %v2998 = vmul.f32 %v2853, %v2980
      %v2999 = vmul.f32 %v2860, %v2980
      %v3000 = vmul.f32 %v2867, %v2980
      %v3001 = vmul.f32 %v2874, %v2980
      %v3002 = vmul.f32 %v2881, %v2980
      %v3003 = vmul.f32 %v2888, %v2980
      %v3004 = vmul.f32 %v2895, %v2980
      %v3005 = vmul.f32 %v2902, %v2980
      %v3006 = vmul.f32 %v2909, %v2980
      %v3007 = vmul.f32 %v2916, %v2980
      %v3008 = vmul.f32 %v2923, %v2980
      %v3009 = vmul.f32 %v2930, %v2980
      %v3010 = vmul.f32 %v2937, %v2980
      %v3011 = vmul.f32 %v2944, %v2980
      %v3012 = vmul.f32 %v2951, %v2980
      %v3013 = vmul.f32 %v2958, %v2980
      %v3014 = vsel %vm370, %v2982, 0.0
      %v3015 = vrot.slane %v3014, 4
      %v3016 = vadd.f32 %v3014, %v3015
      %v3017 = vrot.slane %v3016, 2
      %v3018 = vadd.f32 %v3016, %v3017
      %v3019 = vrot.slane %v3018, 1
      %v3020 = vadd.f32 %v3018, %v3019
      %v3021 = vsel %vm370, %v2983, 0.0
      %v3022 = vrot.slane %v3021, 4
      %v3023 = vadd.f32 %v3021, %v3022
      %v3024 = vrot.slane %v3023, 2
      %v3025 = vadd.f32 %v3023, %v3024
      %v3026 = vrot.slane %v3025, 1
      %v3027 = vadd.f32 %v3025, %v3026
      %v3028 = vsel %vm370, %v2984, 0.0
      %v3029 = vrot.slane %v3028, 4
      %v3030 = vadd.f32 %v3028, %v3029
      %v3031 = vrot.slane %v3030, 2
      %v3032 = vadd.f32 %v3030, %v3031
      %v3033 = vrot.slane %v3032, 1
      %v3034 = vadd.f32 %v3032, %v3033
      %v3035 = vsel %vm370, %v2985, 0.0
      %v3036 = vrot.slane %v3035, 4
      %v3037 = vadd.f32 %v3035, %v3036
      %v3038 = vrot.slane %v3037, 2
      %v3039 = vadd.f32 %v3037, %v3038
      %v3040 = vrot.slane %v3039, 1
      %v3041 = vadd.f32 %v3039, %v3040
      %v3042 = vsel %vm370, %v2986, 0.0
      %v3043 = vrot.slane %v3042, 4
      %v3044 = vadd.f32 %v3042, %v3043
      %v3045 = vrot.slane %v3044, 2
      %v3046 = vadd.f32 %v3044, %v3045
      %v3047 = vrot.slane %v3046, 1
      %v3048 = vadd.f32 %v3046, %v3047
      %v3049 = vsel %vm370, %v2987, 0.0
      %v3050 = vrot.slane %v3049, 4
      %v3051 = vadd.f32 %v3049, %v3050
      %v3052 = vrot.slane %v3051, 2
      %v3053 = vadd.f32 %v3051, %v3052
      %v3054 = vrot.slane %v3053, 1
      %v3055 = vadd.f32 %v3053, %v3054
      %v3056 = vsel %vm370, %v2988, 0.0
      %v3057 = vrot.slane %v3056, 4
      %v3058 = vadd.f32 %v3056, %v3057
      %v3059 = vrot.slane %v3058, 2
      %v3060 = vadd.f32 %v3058, %v3059
      %v3061 = vrot.slane %v3060, 1
      %v3062 = vadd.f32 %v3060, %v3061
      %v3063 = vsel %vm370, %v2989, 0.0
      %v3064 = vrot.slane %v3063, 4
      %v3065 = vadd.f32 %v3063, %v3064
      %v3066 = vrot.slane %v3065, 2
      %v3067 = vadd.f32 %v3065, %v3066
      %v3068 = vrot.slane %v3067, 1
      %v3069 = vadd.f32 %v3067, %v3068
      %v3070 = vsel %vm370, %v2990, 0.0
      %v3071 = vrot.slane %v3070, 4
      %v3072 = vadd.f32 %v3070, %v3071
      %v3073 = vrot.slane %v3072, 2
      %v3074 = vadd.f32 %v3072, %v3073
      %v3075 = vrot.slane %v3074, 1
      %v3076 = vadd.f32 %v3074, %v3075
      %v3077 = vsel %vm370, %v2991, 0.0
      %v3078 = vrot.slane %v3077, 4
      %v3079 = vadd.f32 %v3077, %v3078
      %v3080 = vrot.slane %v3079, 2
      %v3081 = vadd.f32 %v3079, %v3080
      %v3082 = vrot.slane %v3081, 1
      %v3083 = vadd.f32 %v3081, %v3082
      %v3084 = vsel %vm370, %v2992, 0.0
      %v3085 = vrot.slane %v3084, 4
      %v3086 = vadd.f32 %v3084, %v3085
      %v3087 = vrot.slane %v3086, 2
      %v3088 = vadd.f32 %v3086, %v3087
      %v3089 = vrot.slane %v3088, 1
      %v3090 = vadd.f32 %v3088, %v3089
      %v3091 = vsel %vm370, %v2993, 0.0
      %v3092 = vrot.slane %v3091, 4
      %v3093 = vadd.f32 %v3091, %v3092
      %v3094 = vrot.slane %v3093, 2
      %v3095 = vadd.f32 %v3093, %v3094
      %v3096 = vrot.slane %v3095, 1
      %v3097 = vadd.f32 %v3095, %v3096
      %v3098 = vsel %vm370, %v2994, 0.0
      %v3099 = vrot.slane %v3098, 4
      %v3100 = vadd.f32 %v3098, %v3099
      %v3101 = vrot.slane %v3100, 2
      %v3102 = vadd.f32 %v3100, %v3101
      %v3103 = vrot.slane %v3102, 1
      %v3104 = vadd.f32 %v3102, %v3103
      %v3105 = vsel %vm370, %v2995, 0.0
      %v3106 = vrot.slane %v3105, 4
      %v3107 = vadd.f32 %v3105, %v3106
      %v3108 = vrot.slane %v3107, 2
      %v3109 = vadd.f32 %v3107, %v3108
      %v3110 = vrot.slane %v3109, 1
      %v3111 = vadd.f32 %v3109, %v3110
      %v3112 = vsel %vm370, %v2996, 0.0
      %v3113 = vrot.slane %v3112, 4
      %v3114 = vadd.f32 %v3112, %v3113
      %v3115 = vrot.slane %v3114, 2
      %v3116 = vadd.f32 %v3114, %v3115
      %v3117 = vrot.slane %v3116, 1
      %v3118 = vadd.f32 %v3116, %v3117
      %v3119 = vsel %vm370, %v2997, 0.0
      %v3120 = vrot.slane %v3119, 4
      %v3121 = vadd.f32 %v3119, %v3120
      %v3122 = vrot.slane %v3121, 2
      %v3123 = vadd.f32 %v3121, %v3122
      %v3124 = vrot.slane %v3123, 1
      %v3125 = vadd.f32 %v3123, %v3124
      %v3126 = vsel %vm370, %v2998, 0.0
      %v3127 = vrot.slane %v3126, 4
      %v3128 = vadd.f32 %v3126, %v3127
      %v3129 = vrot.slane %v3128, 2
      %v3130 = vadd.f32 %v3128, %v3129
      %v3131 = vrot.slane %v3130, 1
      %v3132 = vadd.f32 %v3130, %v3131
      %v3133 = vsel %vm370, %v2999, 0.0
      %v3134 = vrot.slane %v3133, 4
      %v3135 = vadd.f32 %v3133, %v3134
      %v3136 = vrot.slane %v3135, 2
      %v3137 = vadd.f32 %v3135, %v3136
      %v3138 = vrot.slane %v3137, 1
      %v3139 = vadd.f32 %v3137, %v3138
      %v3140 = vsel %vm370, %v3000, 0.0
      %v3141 = vrot.slane %v3140, 4
      %v3142 = vadd.f32 %v3140, %v3141
      %v3143 = vrot.slane %v3142, 2
      %v3144 = vadd.f32 %v3142, %v3143
      %v3145 = vrot.slane %v3144, 1
      %v3146 = vadd.f32 %v3144, %v3145
      %v3147 = vsel %vm370, %v3001, 0.0
      %v3148 = vrot.slane %v3147, 4
      %v3149 = vadd.f32 %v3147, %v3148
      %v3150 = vrot.slane %v3149, 2
      %v3151 = vadd.f32 %v3149, %v3150
      %v3152 = vrot.slane %v3151, 1
      %v3153 = vadd.f32 %v3151, %v3152
      %v3154 = vsel %vm370, %v3002, 0.0
      %v3155 = vrot.slane %v3154, 4
      %v3156 = vadd.f32 %v3154, %v3155
      %v3157 = vrot.slane %v3156, 2
      %v3158 = vadd.f32 %v3156, %v3157
      %v3159 = vrot.slane %v3158, 1
      %v3160 = vadd.f32 %v3158, %v3159
      %v3161 = vsel %vm370, %v3003, 0.0
      %v3162 = vrot.slane %v3161, 4
      %v3163 = vadd.f32 %v3161, %v3162
      %v3164 = vrot.slane %v3163, 2
      %v3165 = vadd.f32 %v3163, %v3164
      %v3166 = vrot.slane %v3165, 1
      %v3167 = vadd.f32 %v3165, %v3166
      %v3168 = vsel %vm370, %v3004, 0.0
      %v3169 = vrot.slane %v3168, 4
      %v3170 = vadd.f32 %v3168, %v3169
      %v3171 = vrot.slane %v3170, 2
      %v3172 = vadd.f32 %v3170, %v3171
      %v3173 = vrot.slane %v3172, 1
      %v3174 = vadd.f32 %v3172, %v3173
      %v3175 = vsel %vm370, %v3005, 0.0
      %v3176 = vrot.slane %v3175, 4
      %v3177 = vadd.f32 %v3175, %v3176
      %v3178 = vrot.slane %v3177, 2
      %v3179 = vadd.f32 %v3177, %v3178
      %v3180 = vrot.slane %v3179, 1
      %v3181 = vadd.f32 %v3179, %v3180
      %v3182 = vsel %vm370, %v3006, 0.0
      %v3183 = vrot.slane %v3182, 4
      %v3184 = vadd.f32 %v3182, %v3183
      %v3185 = vrot.slane %v3184, 2
      %v3186 = vadd.f32 %v3184, %v3185
      %v3187 = vrot.slane %v3186, 1
      %v3188 = vadd.f32 %v3186, %v3187
      %v3189 = vsel %vm370, %v3007, 0.0
      %v3190 = vrot.slane %v3189, 4
      %v3191 = vadd.f32 %v3189, %v3190
      %v3192 = vrot.slane %v3191, 2
      %v3193 = vadd.f32 %v3191, %v3192
      %v3194 = vrot.slane %v3193, 1
      %v3195 = vadd.f32 %v3193, %v3194
      %v3196 = vsel %vm370, %v3008, 0.0
      %v3197 = vrot.slane %v3196, 4
      %v3198 = vadd.f32 %v3196, %v3197
      %v3199 = vrot.slane %v3198, 2
      %v3200 = vadd.f32 %v3198, %v3199
      %v3201 = vrot.slane %v3200, 1
      %v3202 = vadd.f32 %v3200, %v3201
      %v3203 = vsel %vm370, %v3009, 0.0
      %v3204 = vrot.slane %v3203, 4
      %v3205 = vadd.f32 %v3203, %v3204
      %v3206 = vrot.slane %v3205, 2
      %v3207 = vadd.f32 %v3205, %v3206
      %v3208 = vrot.slane %v3207, 1
      %v3209 = vadd.f32 %v3207, %v3208
      %v3210 = vsel %vm370, %v3010, 0.0
      %v3211 = vrot.slane %v3210, 4
      %v3212 = vadd.f32 %v3210, %v3211
      %v3213 = vrot.slane %v3212, 2
      %v3214 = vadd.f32 %v3212, %v3213
      %v3215 = vrot.slane %v3214, 1
      %v3216 = vadd.f32 %v3214, %v3215
      %v3217 = vsel %vm370, %v3011, 0.0
      %v3218 = vrot.slane %v3217, 4
      %v3219 = vadd.f32 %v3217, %v3218
      %v3220 = vrot.slane %v3219, 2
      %v3221 = vadd.f32 %v3219, %v3220
      %v3222 = vrot.slane %v3221, 1
      %v3223 = vadd.f32 %v3221, %v3222
      %v3224 = vsel %vm370, %v3012, 0.0
      %v3225 = vrot.slane %v3224, 4
      %v3226 = vadd.f32 %v3224, %v3225
      %v3227 = vrot.slane %v3226, 2
      %v3228 = vadd.f32 %v3226, %v3227
      %v3229 = vrot.slane %v3228, 1
      %v3230 = vadd.f32 %v3228, %v3229
      %v3231 = vsel %vm370, %v3013, 0.0
      %v3232 = vrot.slane %v3231, 4
      %v3233 = vadd.f32 %v3231, %v3232
      %v3234 = vrot.slane %v3233, 2
      %v3235 = vadd.f32 %v3233, %v3234
      %v3236 = vrot.slane %v3235, 1
      %v3237 = vadd.f32 %v3235, %v3236
      %v3238 = vld [vmem:[%s7] sm:$0xff]
      %v3239 = vld [vmem:[%s7 + $0x8] sm:$0xff]
      %v3240 = vld [vmem:[%s7 + $0x10] sm:$0xff]
      %v3241 = vld [vmem:[%s7 + $0x18] sm:$0xff]
      %3243 = vset.pattern.permute.xlu0 0
      %3244 = vperm.xlu0 %3243, %v3238
      %v3245 = vpop.permute.xlu0 %3244
      %3247 = vset.pattern.permute.xlu0 0
      %3248 = vperm.xlu0 %3247, %v3239
      %v3249 = vpop.permute.xlu0 %3248
      %3251 = vset.pattern.permute.xlu0 0
      %3252 = vperm.xlu0 %3251, %v3240
      %v3253 = vpop.permute.xlu0 %3252
      %3255 = vset.pattern.permute.xlu0 0
      %3256 = vperm.xlu0 %3255, %v3241
      %v3257 = vpop.permute.xlu0 %3256
      %v3258 = vrot.slane %v3245, 1
      %v3259 = vrot.slane %v3245, 2
      %v3260 = vrot.slane %v3245, 3
      %v3261 = vrot.slane %v3245, 4
      %v3262 = vrot.slane %v3245, 5
      %v3263 = vrot.slane %v3245, 6
      %v3264 = vrot.slane %v3245, 7
      %v3265 = vrot.slane %v3249, 1
      %v3266 = vrot.slane %v3249, 2
      %v3267 = vrot.slane %v3249, 3
      %v3268 = vrot.slane %v3249, 4
      %v3269 = vrot.slane %v3249, 5
      %v3270 = vrot.slane %v3249, 6
      %v3271 = vrot.slane %v3249, 7
      %v3272 = vrot.slane %v3253, 1
      %v3273 = vrot.slane %v3253, 2
      %v3274 = vrot.slane %v3253, 3
      %v3275 = vrot.slane %v3253, 4
      %v3276 = vrot.slane %v3253, 5
      %v3277 = vrot.slane %v3253, 6
      %v3278 = vrot.slane %v3253, 7
      %v3279 = vrot.slane %v3257, 1
      %v3280 = vrot.slane %v3257, 2
      %v3281 = vrot.slane %v3257, 3
      %v3282 = vrot.slane %v3257, 4
      %v3283 = vrot.slane %v3257, 5
      %v3284 = vrot.slane %v3257, 6
      %v3285 = vrot.slane %v3257, 7
      %v3318 = vadd.f32 %v3020, %v3245
      %v3319 = vadd.f32 %v3027, %v3258
      %v3320 = vadd.f32 %v3034, %v3259
      %v3321 = vadd.f32 %v3041, %v3260
      %v3322 = vadd.f32 %v3048, %v3261
      %v3323 = vadd.f32 %v3055, %v3262
      %v3324 = vadd.f32 %v3062, %v3263
      %v3325 = vadd.f32 %v3069, %v3264
      %v3326 = vadd.f32 %v3076, %v3249
      %v3327 = vadd.f32 %v3083, %v3265
      %v3328 = vadd.f32 %v3090, %v3266
      %v3329 = vadd.f32 %v3097, %v3267
      %v3330 = vadd.f32 %v3104, %v3268
      %v3331 = vadd.f32 %v3111, %v3269
      %v3332 = vadd.f32 %v3118, %v3270
      %v3333 = vadd.f32 %v3125, %v3271
      %v3334 = vadd.f32 %v3132, %v3253
      %v3335 = vadd.f32 %v3139, %v3272
      %v3336 = vadd.f32 %v3146, %v3273
      %v3337 = vadd.f32 %v3153, %v3274
      %v3338 = vadd.f32 %v3160, %v3275
      %v3339 = vadd.f32 %v3167, %v3276
      %v3340 = vadd.f32 %v3174, %v3277
      %v3341 = vadd.f32 %v3181, %v3278
      %v3342 = vadd.f32 %v3188, %v3257
      %v3343 = vadd.f32 %v3195, %v3279
      %v3344 = vadd.f32 %v3202, %v3280
      %v3345 = vadd.f32 %v3209, %v3281
      %v3346 = vadd.f32 %v3216, %v3282
      %v3347 = vadd.f32 %v3223, %v3283
      %v3348 = vadd.f32 %v3230, %v3284
      %v3349 = vadd.f32 %v3237, %v3285
      %v3350 = vxor.u32 %v3318, 2147483648
      %v3351 = vxor.u32 %v3319, 2147483648
      %v3352 = vxor.u32 %v3320, 2147483648
      %v3353 = vxor.u32 %v3321, 2147483648
      %v3354 = vxor.u32 %v3322, 2147483648
      %v3355 = vxor.u32 %v3323, 2147483648
      %v3356 = vxor.u32 %v3324, 2147483648
      %v3357 = vxor.u32 %v3325, 2147483648
      %v3358 = vxor.u32 %v3326, 2147483648
      %v3359 = vxor.u32 %v3327, 2147483648
      %v3360 = vxor.u32 %v3328, 2147483648
      %v3361 = vxor.u32 %v3329, 2147483648
      %v3362 = vxor.u32 %v3330, 2147483648
      %v3363 = vxor.u32 %v3331, 2147483648
      %v3364 = vxor.u32 %v3332, 2147483648
      %v3365 = vxor.u32 %v3333, 2147483648
      %v3366 = vxor.u32 %v3334, 2147483648
      %v3367 = vxor.u32 %v3335, 2147483648
      %v3368 = vxor.u32 %v3336, 2147483648
      %v3369 = vxor.u32 %v3337, 2147483648
      %v3370 = vxor.u32 %v3338, 2147483648
      %v3371 = vxor.u32 %v3339, 2147483648
      %v3372 = vxor.u32 %v3340, 2147483648
      %v3373 = vxor.u32 %v3341, 2147483648
      %v3374 = vxor.u32 %v3342, 2147483648
      %v3375 = vxor.u32 %v3343, 2147483648
      %v3376 = vxor.u32 %v3344, 2147483648
      %v3377 = vxor.u32 %v3345, 2147483648
      %v3378 = vxor.u32 %v3346, 2147483648
      %v3379 = vxor.u32 %v3347, 2147483648
      %v3380 = vxor.u32 %v3348, 2147483648
      %v3381 = vxor.u32 %v3349, 2147483648
      %v3382 = vmul.f32 %v3350, 1.442695
      %v3383 = vpow.pop %v3382
      %v3384 = vmul.f32 %v3351, 1.442695
      %v3385 = vpow.pop %v3384
      %v3386 = vmul.f32 %v3352, 1.442695
      %v3387 = vpow.pop %v3386
      %v3388 = vmul.f32 %v3353, 1.442695
      %v3389 = vpow.pop %v3388
      %v3390 = vmul.f32 %v3354, 1.442695
      %v3391 = vpow.pop %v3390
      %v3392 = vmul.f32 %v3355, 1.442695
      %v3393 = vpow.pop %v3392
      %v3394 = vmul.f32 %v3356, 1.442695
      %v3395 = vpow.pop %v3394
      %v3396 = vmul.f32 %v3357, 1.442695
      %v3397 = vpow.pop %v3396
      %v3398 = vmul.f32 %v3358, 1.442695
      %v3399 = vpow.pop %v3398
      %v3400 = vmul.f32 %v3359, 1.442695
      %v3401 = vpow.pop %v3400
      %v3402 = vmul.f32 %v3360, 1.442695
      %v3403 = vpow.pop %v3402
      %v3404 = vmul.f32 %v3361, 1.442695
      %v3405 = vpow.pop %v3404
      %v3406 = vmul.f32 %v3362, 1.442695
      %v3407 = vpow.pop %v3406
      %v3408 = vmul.f32 %v3363, 1.442695
      %v3409 = vpow.pop %v3408
      %v3410 = vmul.f32 %v3364, 1.442695
      %v3411 = vpow.pop %v3410
      %v3412 = vmul.f32 %v3365, 1.442695
      %v3413 = vpow.pop %v3412
      %v3414 = vmul.f32 %v3366, 1.442695
      %v3415 = vpow.pop %v3414
      %v3416 = vmul.f32 %v3367, 1.442695
      %v3417 = vpow.pop %v3416
      %v3418 = vmul.f32 %v3368, 1.442695
      %v3419 = vpow.pop %v3418
      %v3420 = vmul.f32 %v3369, 1.442695
      %v3421 = vpow.pop %v3420
      %v3422 = vmul.f32 %v3370, 1.442695
      %v3423 = vpow.pop %v3422
      %v3424 = vmul.f32 %v3371, 1.442695
      %v3425 = vpow.pop %v3424
      %v3426 = vmul.f32 %v3372, 1.442695
      %v3427 = vpow.pop %v3426
      %v3428 = vmul.f32 %v3373, 1.442695
      %v3429 = vpow.pop %v3428
      %v3430 = vmul.f32 %v3374, 1.442695
      %v3431 = vpow.pop %v3430
      %v3432 = vmul.f32 %v3375, 1.442695
      %v3433 = vpow.pop %v3432
      %v3434 = vmul.f32 %v3376, 1.442695
      %v3435 = vpow.pop %v3434
      %v3436 = vmul.f32 %v3377, 1.442695
      %v3437 = vpow.pop %v3436
      %v3438 = vmul.f32 %v3378, 1.442695
      %v3439 = vpow.pop %v3438
      %v3440 = vmul.f32 %v3379, 1.442695
      %v3441 = vpow.pop %v3440
      %v3442 = vmul.f32 %v3380, 1.442695
      %v3443 = vpow.pop %v3442
      %v3444 = vmul.f32 %v3381, 1.442695
      %v3445 = vpow.pop %v3444
      %v3446 = vadd.f32 %v3383, 1.0
      %v3447 = vadd.f32 %v3385, 1.0
      %v3448 = vadd.f32 %v3387, 1.0
      %v3449 = vadd.f32 %v3389, 1.0
      %v3450 = vadd.f32 %v3391, 1.0
      %v3451 = vadd.f32 %v3393, 1.0
      %v3452 = vadd.f32 %v3395, 1.0
      %v3453 = vadd.f32 %v3397, 1.0
      %v3454 = vadd.f32 %v3399, 1.0
      %v3455 = vadd.f32 %v3401, 1.0
      %v3456 = vadd.f32 %v3403, 1.0
      %v3457 = vadd.f32 %v3405, 1.0
      %v3458 = vadd.f32 %v3407, 1.0
      %v3459 = vadd.f32 %v3409, 1.0
      %v3460 = vadd.f32 %v3411, 1.0
      %v3461 = vadd.f32 %v3413, 1.0
      %v3462 = vadd.f32 %v3415, 1.0
      %v3463 = vadd.f32 %v3417, 1.0
      %v3464 = vadd.f32 %v3419, 1.0
      %v3465 = vadd.f32 %v3421, 1.0
      %v3466 = vadd.f32 %v3423, 1.0
      %v3467 = vadd.f32 %v3425, 1.0
      %v3468 = vadd.f32 %v3427, 1.0
      %v3469 = vadd.f32 %v3429, 1.0
      %v3470 = vadd.f32 %v3431, 1.0
      %v3471 = vadd.f32 %v3433, 1.0
      %v3472 = vadd.f32 %v3435, 1.0
      %v3473 = vadd.f32 %v3437, 1.0
      %v3474 = vadd.f32 %v3439, 1.0
      %v3475 = vadd.f32 %v3441, 1.0
      %v3476 = vadd.f32 %v3443, 1.0
      %v3477 = vadd.f32 %v3445, 1.0
      %v3478 = vrcp.pop %v3446
      %v3479 = vmul.f32 1.0, %v3478
      %v3480 = vrcp.pop %v3447
      %v3481 = vmul.f32 1.0, %v3480
      %v3482 = vrcp.pop %v3448
      %v3483 = vmul.f32 1.0, %v3482
      %v3484 = vrcp.pop %v3449
      %v3485 = vmul.f32 1.0, %v3484
      %v3486 = vrcp.pop %v3450
      %v3487 = vmul.f32 1.0, %v3486
      %v3488 = vrcp.pop %v3451
      %v3489 = vmul.f32 1.0, %v3488
      %v3490 = vrcp.pop %v3452
      %v3491 = vmul.f32 1.0, %v3490
      %v3492 = vrcp.pop %v3453
      %v3493 = vmul.f32 1.0, %v3492
      %v3494 = vrcp.pop %v3454
      %v3495 = vmul.f32 1.0, %v3494
      %v3496 = vrcp.pop %v3455
      %v3497 = vmul.f32 1.0, %v3496
      %v3498 = vrcp.pop %v3456
      %v3499 = vmul.f32 1.0, %v3498
      %v3500 = vrcp.pop %v3457
      %v3501 = vmul.f32 1.0, %v3500
      %v3502 = vrcp.pop %v3458
      %v3503 = vmul.f32 1.0, %v3502
      %v3504 = vrcp.pop %v3459
      %v3505 = vmul.f32 1.0, %v3504
      %v3506 = vrcp.pop %v3460
      %v3507 = vmul.f32 1.0, %v3506
      %v3508 = vrcp.pop %v3461
      %v3509 = vmul.f32 1.0, %v3508
      %v3510 = vrcp.pop %v3462
      %v3511 = vmul.f32 1.0, %v3510
      %v3512 = vrcp.pop %v3463
      %v3513 = vmul.f32 1.0, %v3512
      %v3514 = vrcp.pop %v3464
      %v3515 = vmul.f32 1.0, %v3514
      %v3516 = vrcp.pop %v3465
      %v3517 = vmul.f32 1.0, %v3516
      %v3518 = vrcp.pop %v3466
      %v3519 = vmul.f32 1.0, %v3518
      %v3520 = vrcp.pop %v3467
      %v3521 = vmul.f32 1.0, %v3520
      %v3522 = vrcp.pop %v3468
      %v3523 = vmul.f32 1.0, %v3522
      %v3524 = vrcp.pop %v3469
      %v3525 = vmul.f32 1.0, %v3524
      %v3526 = vrcp.pop %v3470
      %v3527 = vmul.f32 1.0, %v3526
      %v3528 = vrcp.pop %v3471
      %v3529 = vmul.f32 1.0, %v3528
      %v3530 = vrcp.pop %v3472
      %v3531 = vmul.f32 1.0, %v3530
      %v3532 = vrcp.pop %v3473
      %v3533 = vmul.f32 1.0, %v3532
      %v3534 = vrcp.pop %v3474
      %v3535 = vmul.f32 1.0, %v3534
      %v3536 = vrcp.pop %v3475
      %v3537 = vmul.f32 1.0, %v3536
      %v3538 = vrcp.pop %v3476
      %v3539 = vmul.f32 1.0, %v3538
      %v3540 = vrcp.pop %v3477
      %v3541 = vmul.f32 1.0, %v3540
      %v3542 = vlaneseq
      %v3543 = vshrl.u32 %v3542, 7
      %v3544 = vsub.s32 0, %v3543
      %v3545 = vrot.slane %v2668, %v3544
      %3547 = vbcast.lane.b32.xlu0 %v3545, 256
      %v3548 = vpop.permute.xlu0 %3547
      %s3550 = sor.u32 256, 8
      %3551 = vbcast.lane.b32.xlu0 %v3545, %s3550
      %v3552 = vpop.permute.xlu0 %3551
      %v3553 = vlaneseq
      %v3554 = vshrl.u32 %v3553, 7
      %v3555 = vsub.s32 0, %v3554
      %v3556 = vrot.slane %v2670, %v3555
      %3558 = vbcast.lane.b32.xlu0 %v3556, 256
      %v3559 = vpop.permute.xlu0 %3558
      %s3561 = sor.u32 256, 8
      %3562 = vbcast.lane.b32.xlu0 %v3556, %s3561
      %v3563 = vpop.permute.xlu0 %3562
      %v3564 = vlaneseq
      %v3565 = vshrl.u32 %v3564, 7
      %v3566 = vsub.s32 0, %v3565
      %v3567 = vrot.slane %v2672, %v3566
      %3569 = vbcast.lane.b32.xlu0 %v3567, 256
      %v3570 = vpop.permute.xlu0 %3569
      %s3572 = sor.u32 256, 8
      %3573 = vbcast.lane.b32.xlu0 %v3567, %s3572
      %v3574 = vpop.permute.xlu0 %3573
      %v3575 = vlaneseq
      %v3576 = vshrl.u32 %v3575, 7
      %v3577 = vsub.s32 0, %v3576
      %v3578 = vrot.slane %v2674, %v3577
      %3580 = vbcast.lane.b32.xlu0 %v3578, 256
      %v3581 = vpop.permute.xlu0 %3580
      %s3583 = sor.u32 256, 8
      %3584 = vbcast.lane.b32.xlu0 %v3578, %s3583
      %v3585 = vpop.permute.xlu0 %3584
      %v3586 = vlaneseq
      %v3587 = vshrl.u32 %v3586, 7
      %v3588 = vsub.s32 0, %v3587
      %v3589 = vrot.slane %v2676, %v3588
      %3591 = vbcast.lane.b32.xlu0 %v3589, 256
      %v3592 = vpop.permute.xlu0 %3591
      %s3594 = sor.u32 256, 8
      %3595 = vbcast.lane.b32.xlu0 %v3589, %s3594
      %v3596 = vpop.permute.xlu0 %3595
      %v3597 = vlaneseq
      %v3598 = vshrl.u32 %v3597, 7
      %v3599 = vsub.s32 0, %v3598
      %v3600 = vrot.slane %v2678, %v3599
      %3602 = vbcast.lane.b32.xlu0 %v3600, 256
      %v3603 = vpop.permute.xlu0 %3602
      %s3605 = sor.u32 256, 8
      %3606 = vbcast.lane.b32.xlu0 %v3600, %s3605
      %v3607 = vpop.permute.xlu0 %3606
      %v3608 = vlaneseq
      %v3609 = vshrl.u32 %v3608, 7
      %v3610 = vsub.s32 0, %v3609
      %v3611 = vrot.slane %v2680, %v3610
      %3613 = vbcast.lane.b32.xlu0 %v3611, 256
      %v3614 = vpop.permute.xlu0 %3613
      %s3616 = sor.u32 256, 8
      %3617 = vbcast.lane.b32.xlu0 %v3611, %s3616
      %v3618 = vpop.permute.xlu0 %3617
      %v3619 = vlaneseq
      %v3620 = vshrl.u32 %v3619, 7
      %v3621 = vsub.s32 0, %v3620
      %v3622 = vrot.slane %v2682, %v3621
      %3624 = vbcast.lane.b32.xlu0 %v3622, 256
      %v3625 = vpop.permute.xlu0 %3624
      %s3627 = sor.u32 256, 8
      %3628 = vbcast.lane.b32.xlu0 %v3622, %s3627
      %v3629 = vpop.permute.xlu0 %3628
      %v3630 = vlaneseq
      %v3631 = vshrl.u32 %v3630, 7
      %v3632 = vsub.s32 0, %v3631
      %v3633 = vrot.slane %v2684, %v3632
      %3635 = vbcast.lane.b32.xlu0 %v3633, 256
      %v3636 = vpop.permute.xlu0 %3635
      %s3638 = sor.u32 256, 8
      %3639 = vbcast.lane.b32.xlu0 %v3633, %s3638
      %v3640 = vpop.permute.xlu0 %3639
      %v3641 = vlaneseq
      %v3642 = vshrl.u32 %v3641, 7
      %v3643 = vsub.s32 0, %v3642
      %v3644 = vrot.slane %v2686, %v3643
      %3646 = vbcast.lane.b32.xlu0 %v3644, 256
      %v3647 = vpop.permute.xlu0 %3646
      %s3649 = sor.u32 256, 8
      %3650 = vbcast.lane.b32.xlu0 %v3644, %s3649
      %v3651 = vpop.permute.xlu0 %3650
      %v3652 = vlaneseq
      %v3653 = vshrl.u32 %v3652, 7
      %v3654 = vsub.s32 0, %v3653
      %v3655 = vrot.slane %v2688, %v3654
      %3657 = vbcast.lane.b32.xlu0 %v3655, 256
      %v3658 = vpop.permute.xlu0 %3657
      %s3660 = sor.u32 256, 8
      %3661 = vbcast.lane.b32.xlu0 %v3655, %s3660
      %v3662 = vpop.permute.xlu0 %3661
      %v3663 = vlaneseq
      %v3664 = vshrl.u32 %v3663, 7
      %v3665 = vsub.s32 0, %v3664
      %v3666 = vrot.slane %v2690, %v3665
      %3668 = vbcast.lane.b32.xlu0 %v3666, 256
      %v3669 = vpop.permute.xlu0 %3668
      %s3671 = sor.u32 256, 8
      %3672 = vbcast.lane.b32.xlu0 %v3666, %s3671
      %v3673 = vpop.permute.xlu0 %3672
      %v3674 = vlaneseq
      %v3675 = vshrl.u32 %v3674, 7
      %v3676 = vsub.s32 0, %v3675
      %v3677 = vrot.slane %v2692, %v3676
      %3679 = vbcast.lane.b32.xlu0 %v3677, 256
      %v3680 = vpop.permute.xlu0 %3679
      %s3682 = sor.u32 256, 8
      %3683 = vbcast.lane.b32.xlu0 %v3677, %s3682
      %v3684 = vpop.permute.xlu0 %3683
      %v3685 = vlaneseq
      %v3686 = vshrl.u32 %v3685, 7
      %v3687 = vsub.s32 0, %v3686
      %v3688 = vrot.slane %v2694, %v3687
      %3690 = vbcast.lane.b32.xlu0 %v3688, 256
      %v3691 = vpop.permute.xlu0 %3690
      %s3693 = sor.u32 256, 8
      %3694 = vbcast.lane.b32.xlu0 %v3688, %s3693
      %v3695 = vpop.permute.xlu0 %3694
      %v3696 = vlaneseq
      %v3697 = vshrl.u32 %v3696, 7
      %v3698 = vsub.s32 0, %v3697
      %v3699 = vrot.slane %v2696, %v3698
      %3701 = vbcast.lane.b32.xlu0 %v3699, 256
      %v3702 = vpop.permute.xlu0 %3701
      %s3704 = sor.u32 256, 8
      %3705 = vbcast.lane.b32.xlu0 %v3699, %s3704
      %v3706 = vpop.permute.xlu0 %3705
      %v3707 = vlaneseq
      %v3708 = vshrl.u32 %v3707, 7
      %v3709 = vsub.s32 0, %v3708
      %v3710 = vrot.slane %v2698, %v3709
      %3712 = vbcast.lane.b32.xlu0 %v3710, 256
      %v3713 = vpop.permute.xlu0 %3712
      %s3715 = sor.u32 256, 8
      %3716 = vbcast.lane.b32.xlu0 %v3710, %s3715
      %v3717 = vpop.permute.xlu0 %3716
      %v3718 = vlaneseq
      %v3719 = vshrl.u32 %v3718, 7
      %v3720 = vsub.s32 0, %v3719
      %v3721 = vrot.slane %v2700, %v3720
      %3723 = vbcast.lane.b32.xlu0 %v3721, 256
      %v3724 = vpop.permute.xlu0 %3723
      %s3726 = sor.u32 256, 8
      %3727 = vbcast.lane.b32.xlu0 %v3721, %s3726
      %v3728 = vpop.permute.xlu0 %3727
      %v3729 = vlaneseq
      %v3730 = vshrl.u32 %v3729, 7
      %v3731 = vsub.s32 0, %v3730
      %v3732 = vrot.slane %v2702, %v3731
      %3734 = vbcast.lane.b32.xlu0 %v3732, 256
      %v3735 = vpop.permute.xlu0 %3734
      %s3737 = sor.u32 256, 8
      %3738 = vbcast.lane.b32.xlu0 %v3732, %s3737
      %v3739 = vpop.permute.xlu0 %3738
      %v3740 = vlaneseq
      %v3741 = vshrl.u32 %v3740, 7
      %v3742 = vsub.s32 0, %v3741
      %v3743 = vrot.slane %v2704, %v3742
      %3745 = vbcast.lane.b32.xlu0 %v3743, 256
      %v3746 = vpop.permute.xlu0 %3745
      %s3748 = sor.u32 256, 8
      %3749 = vbcast.lane.b32.xlu0 %v3743, %s3748
      %v3750 = vpop.permute.xlu0 %3749
      %v3751 = vlaneseq
      %v3752 = vshrl.u32 %v3751, 7
      %v3753 = vsub.s32 0, %v3752
      %v3754 = vrot.slane %v2706, %v3753
      %3756 = vbcast.lane.b32.xlu0 %v3754, 256
      %v3757 = vpop.permute.xlu0 %3756
      %s3759 = sor.u32 256, 8
      %3760 = vbcast.lane.b32.xlu0 %v3754, %s3759
      %v3761 = vpop.permute.xlu0 %3760
      %v3762 = vlaneseq
      %v3763 = vshrl.u32 %v3762, 7
      %v3764 = vsub.s32 0, %v3763
      %v3765 = vrot.slane %v2708, %v3764
      %3767 = vbcast.lane.b32.xlu0 %v3765, 256
      %v3768 = vpop.permute.xlu0 %3767
      %s3770 = sor.u32 256, 8
      %3771 = vbcast.lane.b32.xlu0 %v3765, %s3770
      %v3772 = vpop.permute.xlu0 %3771
      %v3773 = vlaneseq
      %v3774 = vshrl.u32 %v3773, 7
      %v3775 = vsub.s32 0, %v3774
      %v3776 = vrot.slane %v2710, %v3775
      %3778 = vbcast.lane.b32.xlu0 %v3776, 256
      %v3779 = vpop.permute.xlu0 %3778
      %s3781 = sor.u32 256, 8
      %3782 = vbcast.lane.b32.xlu0 %v3776, %s3781
      %v3783 = vpop.permute.xlu0 %3782
      %v3784 = vlaneseq
      %v3785 = vshrl.u32 %v3784, 7
      %v3786 = vsub.s32 0, %v3785
      %v3787 = vrot.slane %v2712, %v3786
      %3789 = vbcast.lane.b32.xlu0 %v3787, 256
      %v3790 = vpop.permute.xlu0 %3789
      %s3792 = sor.u32 256, 8
      %3793 = vbcast.lane.b32.xlu0 %v3787, %s3792
      %v3794 = vpop.permute.xlu0 %3793
      %v3795 = vlaneseq
      %v3796 = vshrl.u32 %v3795, 7
      %v3797 = vsub.s32 0, %v3796
      %v3798 = vrot.slane %v2714, %v3797
      %3800 = vbcast.lane.b32.xlu0 %v3798, 256
      %v3801 = vpop.permute.xlu0 %3800
      %s3803 = sor.u32 256, 8
      %3804 = vbcast.lane.b32.xlu0 %v3798, %s3803
      %v3805 = vpop.permute.xlu0 %3804
      %v3806 = vlaneseq
      %v3807 = vshrl.u32 %v3806, 7
      %v3808 = vsub.s32 0, %v3807
      %v3809 = vrot.slane %v2716, %v3808
      %3811 = vbcast.lane.b32.xlu0 %v3809, 256
      %v3812 = vpop.permute.xlu0 %3811
      %s3814 = sor.u32 256, 8
      %3815 = vbcast.lane.b32.xlu0 %v3809, %s3814
      %v3816 = vpop.permute.xlu0 %3815
      %v3817 = vlaneseq
      %v3818 = vshrl.u32 %v3817, 7
      %v3819 = vsub.s32 0, %v3818
      %v3820 = vrot.slane %v2718, %v3819
      %3822 = vbcast.lane.b32.xlu0 %v3820, 256
      %v3823 = vpop.permute.xlu0 %3822
      %s3825 = sor.u32 256, 8
      %3826 = vbcast.lane.b32.xlu0 %v3820, %s3825
      %v3827 = vpop.permute.xlu0 %3826
      %v3828 = vlaneseq
      %v3829 = vshrl.u32 %v3828, 7
      %v3830 = vsub.s32 0, %v3829
      %v3831 = vrot.slane %v2720, %v3830
      %3833 = vbcast.lane.b32.xlu0 %v3831, 256
      %v3834 = vpop.permute.xlu0 %3833
      %s3836 = sor.u32 256, 8
      %3837 = vbcast.lane.b32.xlu0 %v3831, %s3836
      %v3838 = vpop.permute.xlu0 %3837
      %v3839 = vlaneseq
      %v3840 = vshrl.u32 %v3839, 7
      %v3841 = vsub.s32 0, %v3840
      %v3842 = vrot.slane %v2722, %v3841
      %3844 = vbcast.lane.b32.xlu0 %v3842, 256
      %v3845 = vpop.permute.xlu0 %3844
      %s3847 = sor.u32 256, 8
      %3848 = vbcast.lane.b32.xlu0 %v3842, %s3847
      %v3849 = vpop.permute.xlu0 %3848
      %v3850 = vlaneseq
      %v3851 = vshrl.u32 %v3850, 7
      %v3852 = vsub.s32 0, %v3851
      %v3853 = vrot.slane %v2724, %v3852
      %3855 = vbcast.lane.b32.xlu0 %v3853, 256
      %v3856 = vpop.permute.xlu0 %3855
      %s3858 = sor.u32 256, 8
      %3859 = vbcast.lane.b32.xlu0 %v3853, %s3858
      %v3860 = vpop.permute.xlu0 %3859
      %v3861 = vlaneseq
      %v3862 = vshrl.u32 %v3861, 7
      %v3863 = vsub.s32 0, %v3862
      %v3864 = vrot.slane %v2726, %v3863
      %3866 = vbcast.lane.b32.xlu0 %v3864, 256
      %v3867 = vpop.permute.xlu0 %3866
      %s3869 = sor.u32 256, 8
      %3870 = vbcast.lane.b32.xlu0 %v3864, %s3869
      %v3871 = vpop.permute.xlu0 %3870
      %v3872 = vlaneseq
      %v3873 = vshrl.u32 %v3872, 7
      %v3874 = vsub.s32 0, %v3873
      %v3875 = vrot.slane %v2728, %v3874
      %3877 = vbcast.lane.b32.xlu0 %v3875, 256
      %v3878 = vpop.permute.xlu0 %3877
      %s3880 = sor.u32 256, 8
      %3881 = vbcast.lane.b32.xlu0 %v3875, %s3880
      %v3882 = vpop.permute.xlu0 %3881
      %v3883 = vlaneseq
      %v3884 = vshrl.u32 %v3883, 7
      %v3885 = vsub.s32 0, %v3884
      %v3886 = vrot.slane %v2730, %v3885
      %3888 = vbcast.lane.b32.xlu0 %v3886, 256
      %v3889 = vpop.permute.xlu0 %3888
      %s3891 = sor.u32 256, 8
      %3892 = vbcast.lane.b32.xlu0 %v3886, %s3891
      %v3893 = vpop.permute.xlu0 %3892
      %v3894 = vmul.f32 %v306, %v3548
      %v3895 = vmul.f32 %v307, %v3552
      %v3896 = vmul.f32 %v308, %v3559
      %v3897 = vmul.f32 %v309, %v3563
      %v3898 = vmul.f32 %v310, %v3570
      %v3899 = vmul.f32 %v311, %v3574
      %v3900 = vmul.f32 %v312, %v3581
      %v3901 = vmul.f32 %v313, %v3585
      %v3902 = vmul.f32 %v314, %v3592
      %v3903 = vmul.f32 %v315, %v3596
      %v3904 = vmul.f32 %v316, %v3603
      %v3905 = vmul.f32 %v317, %v3607
      %v3906 = vmul.f32 %v318, %v3614
      %v3907 = vmul.f32 %v319, %v3618
      %v3908 = vmul.f32 %v320, %v3625
      %v3909 = vmul.f32 %v321, %v3629
      %v3910 = vmul.f32 %v322, %v3636
      %v3911 = vmul.f32 %v323, %v3640
      %v3912 = vmul.f32 %v324, %v3647
      %v3913 = vmul.f32 %v325, %v3651
      %v3914 = vmul.f32 %v326, %v3658
      %v3915 = vmul.f32 %v327, %v3662
      %v3916 = vmul.f32 %v328, %v3669
      %v3917 = vmul.f32 %v329, %v3673
      %v3918 = vmul.f32 %v330, %v3680
      %v3919 = vmul.f32 %v331, %v3684
      %v3920 = vmul.f32 %v332, %v3691
      %v3921 = vmul.f32 %v333, %v3695
      %v3922 = vmul.f32 %v334, %v3702
      %v3923 = vmul.f32 %v335, %v3706
      %v3924 = vmul.f32 %v336, %v3713
      %v3925 = vmul.f32 %v337, %v3717
      %v3926 = vmul.f32 %v338, %v3724
      %v3927 = vmul.f32 %v339, %v3728
      %v3928 = vmul.f32 %v340, %v3735
      %v3929 = vmul.f32 %v341, %v3739
      %v3930 = vmul.f32 %v342, %v3746
      %v3931 = vmul.f32 %v343, %v3750
      %v3932 = vmul.f32 %v344, %v3757
      %v3933 = vmul.f32 %v345, %v3761
      %v3934 = vmul.f32 %v346, %v3768
      %v3935 = vmul.f32 %v347, %v3772
      %v3936 = vmul.f32 %v348, %v3779
      %v3937 = vmul.f32 %v349, %v3783
      %v3938 = vmul.f32 %v350, %v3790
      %v3939 = vmul.f32 %v351, %v3794
      %v3940 = vmul.f32 %v352, %v3801
      %v3941 = vmul.f32 %v353, %v3805
      %v3942 = vmul.f32 %v354, %v3812
      %v3943 = vmul.f32 %v355, %v3816
      %v3944 = vmul.f32 %v356, %v3823
      %v3945 = vmul.f32 %v357, %v3827
      %v3946 = vmul.f32 %v358, %v3834
      %v3947 = vmul.f32 %v359, %v3838
      %v3948 = vmul.f32 %v360, %v3845
      %v3949 = vmul.f32 %v361, %v3849
      %v3950 = vmul.f32 %v362, %v3856
      %v3951 = vmul.f32 %v363, %v3860
      %v3952 = vmul.f32 %v364, %v3867
      %v3953 = vmul.f32 %v365, %v3871
      %v3954 = vmul.f32 %v366, %v3878
      %v3955 = vmul.f32 %v367, %v3882
      %v3956 = vmul.f32 %v368, %v3889
      %v3957 = vmul.f32 %v369, %v3893
      %v3958 = vlaneseq
      %v3959 = vshrl.u32 %v3958, 7
      %v3960 = vsub.s32 0, %v3959
      %v3961 = vrot.slane %v3479, %v3960
      %v3962 = vlaneseq
      %v3963 = vshrl.u32 %v3962, 7
      %v3964 = vsub.s32 0, %v3963
      %v3965 = vrot.slane %v3481, %v3964
      %v3966 = vlaneseq
      %v3967 = vshrl.u32 %v3966, 7
      %v3968 = vsub.s32 0, %v3967
      %v3969 = vrot.slane %v3483, %v3968
      %v3970 = vlaneseq
      %v3971 = vshrl.u32 %v3970, 7
      %v3972 = vsub.s32 0, %v3971
      %v3973 = vrot.slane %v3485, %v3972
      %v3974 = vlaneseq
      %v3975 = vshrl.u32 %v3974, 7
      %v3976 = vsub.s32 0, %v3975
      %v3977 = vrot.slane %v3487, %v3976
      %v3978 = vlaneseq
      %v3979 = vshrl.u32 %v3978, 7
      %v3980 = vsub.s32 0, %v3979
      %v3981 = vrot.slane %v3489, %v3980
      %v3982 = vlaneseq
      %v3983 = vshrl.u32 %v3982, 7
      %v3984 = vsub.s32 0, %v3983
      %v3985 = vrot.slane %v3491, %v3984
      %v3986 = vlaneseq
      %v3987 = vshrl.u32 %v3986, 7
      %v3988 = vsub.s32 0, %v3987
      %v3989 = vrot.slane %v3493, %v3988
      %v3990 = vlaneseq
      %v3991 = vshrl.u32 %v3990, 7
      %v3992 = vsub.s32 0, %v3991
      %v3993 = vrot.slane %v3495, %v3992
      %v3994 = vlaneseq
      %v3995 = vshrl.u32 %v3994, 7
      %v3996 = vsub.s32 0, %v3995
      %v3997 = vrot.slane %v3497, %v3996
      %v3998 = vlaneseq
      %v3999 = vshrl.u32 %v3998, 7
      %v4000 = vsub.s32 0, %v3999
      %v4001 = vrot.slane %v3499, %v4000
      %v4002 = vlaneseq
      %v4003 = vshrl.u32 %v4002, 7
      %v4004 = vsub.s32 0, %v4003
      %v4005 = vrot.slane %v3501, %v4004
      %v4006 = vlaneseq
      %v4007 = vshrl.u32 %v4006, 7
      %v4008 = vsub.s32 0, %v4007
      %v4009 = vrot.slane %v3503, %v4008
      %v4010 = vlaneseq
      %v4011 = vshrl.u32 %v4010, 7
      %v4012 = vsub.s32 0, %v4011
      %v4013 = vrot.slane %v3505, %v4012
      %v4014 = vlaneseq
      %v4015 = vshrl.u32 %v4014, 7
      %v4016 = vsub.s32 0, %v4015
      %v4017 = vrot.slane %v3507, %v4016
      %v4018 = vlaneseq
      %v4019 = vshrl.u32 %v4018, 7
      %v4020 = vsub.s32 0, %v4019
      %v4021 = vrot.slane %v3509, %v4020
      %v4022 = vlaneseq
      %v4023 = vshrl.u32 %v4022, 7
      %v4024 = vsub.s32 0, %v4023
      %v4025 = vrot.slane %v3511, %v4024
      %v4026 = vlaneseq
      %v4027 = vshrl.u32 %v4026, 7
      %v4028 = vsub.s32 0, %v4027
      %v4029 = vrot.slane %v3513, %v4028
      %v4030 = vlaneseq
      %v4031 = vshrl.u32 %v4030, 7
      %v4032 = vsub.s32 0, %v4031
      %v4033 = vrot.slane %v3515, %v4032
      %v4034 = vlaneseq
      %v4035 = vshrl.u32 %v4034, 7
      %v4036 = vsub.s32 0, %v4035
      %v4037 = vrot.slane %v3517, %v4036
      %v4038 = vlaneseq
      %v4039 = vshrl.u32 %v4038, 7
      %v4040 = vsub.s32 0, %v4039
      %v4041 = vrot.slane %v3519, %v4040
      %v4042 = vlaneseq
      %v4043 = vshrl.u32 %v4042, 7
      %v4044 = vsub.s32 0, %v4043
      %v4045 = vrot.slane %v3521, %v4044
      %v4046 = vlaneseq
      %v4047 = vshrl.u32 %v4046, 7
      %v4048 = vsub.s32 0, %v4047
      %v4049 = vrot.slane %v3523, %v4048
      %v4050 = vlaneseq
      %v4051 = vshrl.u32 %v4050, 7
      %v4052 = vsub.s32 0, %v4051
      %v4053 = vrot.slane %v3525, %v4052
      %v4054 = vlaneseq
      %v4055 = vshrl.u32 %v4054, 7
      %v4056 = vsub.s32 0, %v4055
      %v4057 = vrot.slane %v3527, %v4056
      %v4058 = vlaneseq
      %v4059 = vshrl.u32 %v4058, 7
      %v4060 = vsub.s32 0, %v4059
      %v4061 = vrot.slane %v3529, %v4060
      %v4062 = vlaneseq
      %v4063 = vshrl.u32 %v4062, 7
      %v4064 = vsub.s32 0, %v4063
      %v4065 = vrot.slane %v3531, %v4064
      %v4066 = vlaneseq
      %v4067 = vshrl.u32 %v4066, 7
      %v4068 = vsub.s32 0, %v4067
      %v4069 = vrot.slane %v3533, %v4068
      %v4070 = vlaneseq
      %v4071 = vshrl.u32 %v4070, 7
      %v4072 = vsub.s32 0, %v4071
      %v4073 = vrot.slane %v3535, %v4072
      %v4074 = vlaneseq
      %v4075 = vshrl.u32 %v4074, 7
      %v4076 = vsub.s32 0, %v4075
      %v4077 = vrot.slane %v3537, %v4076
      %v4078 = vlaneseq
      %v4079 = vshrl.u32 %v4078, 7
      %v4080 = vsub.s32 0, %v4079
      %v4081 = vrot.slane %v3539, %v4080
      %v4082 = vlaneseq
      %v4083 = vshrl.u32 %v4082, 7
      %v4084 = vsub.s32 0, %v4083
      %v4085 = vrot.slane %v3541, %v4084
      %v4086 = vmul.f32 %v3894, %v3961
      %v4087 = vmul.f32 %v3895, %v3961
      %v4088 = vmul.f32 %v3896, %v3965
      %v4089 = vmul.f32 %v3897, %v3965
      %v4090 = vmul.f32 %v3898, %v3969
      %v4091 = vmul.f32 %v3899, %v3969
      %v4092 = vmul.f32 %v3900, %v3973
      %v4093 = vmul.f32 %v3901, %v3973
      %v4094 = vmul.f32 %v3902, %v3977
      %v4095 = vmul.f32 %v3903, %v3977
      %v4096 = vmul.f32 %v3904, %v3981
      %v4097 = vmul.f32 %v3905, %v3981
      %v4098 = vmul.f32 %v3906, %v3985
      %v4099 = vmul.f32 %v3907, %v3985
      %v4100 = vmul.f32 %v3908, %v3989
      %v4101 = vmul.f32 %v3909, %v3989
      %v4102 = vmul.f32 %v3910, %v3993
      %v4103 = vmul.f32 %v3911, %v3993
      %v4104 = vmul.f32 %v3912, %v3997
      %v4105 = vmul.f32 %v3913, %v3997
      %v4106 = vmul.f32 %v3914, %v4001
      %v4107 = vmul.f32 %v3915, %v4001
      %v4108 = vmul.f32 %v3916, %v4005
      %v4109 = vmul.f32 %v3917, %v4005
      %v4110 = vmul.f32 %v3918, %v4009
      %v4111 = vmul.f32 %v3919, %v4009
      %v4112 = vmul.f32 %v3920, %v4013
      %v4113 = vmul.f32 %v3921, %v4013
      %v4114 = vmul.f32 %v3922, %v4017
      %v4115 = vmul.f32 %v3923, %v4017
      %v4116 = vmul.f32 %v3924, %v4021
      %v4117 = vmul.f32 %v3925, %v4021
      %v4118 = vmul.f32 %v3926, %v4025
      %v4119 = vmul.f32 %v3927, %v4025
      %v4120 = vmul.f32 %v3928, %v4029
      %v4121 = vmul.f32 %v3929, %v4029
      %v4122 = vmul.f32 %v3930, %v4033
      %v4123 = vmul.f32 %v3931, %v4033
      %v4124 = vmul.f32 %v3932, %v4037
      %v4125 = vmul.f32 %v3933, %v4037
      %v4126 = vmul.f32 %v3934, %v4041
      %v4127 = vmul.f32 %v3935, %v4041
      %v4128 = vmul.f32 %v3936, %v4045
      %v4129 = vmul.f32 %v3937, %v4045
      %v4130 = vmul.f32 %v3938, %v4049
      %v4131 = vmul.f32 %v3939, %v4049
      %v4132 = vmul.f32 %v3940, %v4053
      %v4133 = vmul.f32 %v3941, %v4053
      %v4134 = vmul.f32 %v3942, %v4057
      %v4135 = vmul.f32 %v3943, %v4057
      %v4136 = vmul.f32 %v3944, %v4061
      %v4137 = vmul.f32 %v3945, %v4061
      %v4138 = vmul.f32 %v3946, %v4065
      %v4139 = vmul.f32 %v3947, %v4065
      %v4140 = vmul.f32 %v3948, %v4069
      %v4141 = vmul.f32 %v3949, %v4069
      %v4142 = vmul.f32 %v3950, %v4073
      %v4143 = vmul.f32 %v3951, %v4073
      %v4144 = vmul.f32 %v3952, %v4077
      %v4145 = vmul.f32 %v3953, %v4077
      %v4146 = vmul.f32 %v3954, %v4081
      %v4147 = vmul.f32 %v3955, %v4081
      %v4148 = vmul.f32 %v3956, %v4085
      %v4149 = vmul.f32 %v3957, %v4085
      %4150 = vst.msk [vmem:[%s305] sm:$0xff] %vm370, %v4086
      %4151 = vst.msk [vmem:[%s305 + $0x8] sm:$0xff] %vm370, %v4087
      %4152 = vst.msk [vmem:[%s305 + $0x10] sm:$0xff] %vm370, %v4088
      %4153 = vst.msk [vmem:[%s305 + $0x18] sm:$0xff] %vm370, %v4089
      %4154 = vst.msk [vmem:[%s305 + $0x20] sm:$0xff] %vm370, %v4090
      %4155 = vst.msk [vmem:[%s305 + $0x28] sm:$0xff] %vm370, %v4091
      %4156 = vst.msk [vmem:[%s305 + $0x30] sm:$0xff] %vm370, %v4092
      %4157 = vst.msk [vmem:[%s305 + $0x38] sm:$0xff] %vm370, %v4093
      %4158 = vst.msk [vmem:[%s305 + $0x40] sm:$0xff] %vm370, %v4094
      %4159 = vst.msk [vmem:[%s305 + $0x48] sm:$0xff] %vm370, %v4095
      %4160 = vst.msk [vmem:[%s305 + $0x50] sm:$0xff] %vm370, %v4096
      %4161 = vst.msk [vmem:[%s305 + $0x58] sm:$0xff] %vm370, %v4097
      %4162 = vst.msk [vmem:[%s305 + $0x60] sm:$0xff] %vm370, %v4098
      %4163 = vst.msk [vmem:[%s305 + $0x68] sm:$0xff] %vm370, %v4099
      %4164 = vst.msk [vmem:[%s305 + $0x70] sm:$0xff] %vm370, %v4100
      %4165 = vst.msk [vmem:[%s305 + $0x78] sm:$0xff] %vm370, %v4101
      %4166 = vst.msk [vmem:[%s305 + $0x80] sm:$0xff] %vm370, %v4102
      %4167 = vst.msk [vmem:[%s305 + $0x88] sm:$0xff] %vm370, %v4103
      %4168 = vst.msk [vmem:[%s305 + $0x90] sm:$0xff] %vm370, %v4104
      %4169 = vst.msk [vmem:[%s305 + $0x98] sm:$0xff] %vm370, %v4105
      %4170 = vst.msk [vmem:[%s305 + $0xa0] sm:$0xff] %vm370, %v4106
      %4171 = vst.msk [vmem:[%s305 + $0xa8] sm:$0xff] %vm370, %v4107
      %4172 = vst.msk [vmem:[%s305 + $0xb0] sm:$0xff] %vm370, %v4108
      %4173 = vst.msk [vmem:[%s305 + $0xb8] sm:$0xff] %vm370, %v4109
      %4174 = vst.msk [vmem:[%s305 + $0xc0] sm:$0xff] %vm370, %v4110
      %4175 = vst.msk [vmem:[%s305 + $0xc8] sm:$0xff] %vm370, %v4111
      %4176 = vst.msk [vmem:[%s305 + $0xd0] sm:$0xff] %vm370, %v4112
      %4177 = vst.msk [vmem:[%s305 + $0xd8] sm:$0xff] %vm370, %v4113
      %4178 = vst.msk [vmem:[%s305 + $0xe0] sm:$0xff] %vm370, %v4114
      %4179 = vst.msk [vmem:[%s305 + $0xe8] sm:$0xff] %vm370, %v4115
      %4180 = vst.msk [vmem:[%s305 + $0xf0] sm:$0xff] %vm370, %v4116
      %4181 = vst.msk [vmem:[%s305 + $0xf8] sm:$0xff] %vm370, %v4117
      %4182 = vst.msk [vmem:[%s305 + $0x100] sm:$0xff] %vm370, %v4118
      %4183 = vst.msk [vmem:[%s305 + $0x108] sm:$0xff] %vm370, %v4119
      %4184 = vst.msk [vmem:[%s305 + $0x110] sm:$0xff] %vm370, %v4120
      %4185 = vst.msk [vmem:[%s305 + $0x118] sm:$0xff] %vm370, %v4121
      %4186 = vst.msk [vmem:[%s305 + $0x120] sm:$0xff] %vm370, %v4122
      %4187 = vst.msk [vmem:[%s305 + $0x128] sm:$0xff] %vm370, %v4123
      %4188 = vst.msk [vmem:[%s305 + $0x130] sm:$0xff] %vm370, %v4124
      %4189 = vst.msk [vmem:[%s305 + $0x138] sm:$0xff] %vm370, %v4125
      %4190 = vst.msk [vmem:[%s305 + $0x140] sm:$0xff] %vm370, %v4126
      %4191 = vst.msk [vmem:[%s305 + $0x148] sm:$0xff] %vm370, %v4127
      %4192 = vst.msk [vmem:[%s305 + $0x150] sm:$0xff] %vm370, %v4128
      %4193 = vst.msk [vmem:[%s305 + $0x158] sm:$0xff] %vm370, %v4129
      %4194 = vst.msk [vmem:[%s305 + $0x160] sm:$0xff] %vm370, %v4130
      %4195 = vst.msk [vmem:[%s305 + $0x168] sm:$0xff] %vm370, %v4131
      %4196 = vst.msk [vmem:[%s305 + $0x170] sm:$0xff] %vm370, %v4132
      %4197 = vst.msk [vmem:[%s305 + $0x178] sm:$0xff] %vm370, %v4133
      %4198 = vst.msk [vmem:[%s305 + $0x180] sm:$0xff] %vm370, %v4134
      %4199 = vst.msk [vmem:[%s305 + $0x188] sm:$0xff] %vm370, %v4135
      %4200 = vst.msk [vmem:[%s305 + $0x190] sm:$0xff] %vm370, %v4136
      %4201 = vst.msk [vmem:[%s305 + $0x198] sm:$0xff] %vm370, %v4137
      %4202 = vst.msk [vmem:[%s305 + $0x1a0] sm:$0xff] %vm370, %v4138
      %4203 = vst.msk [vmem:[%s305 + $0x1a8] sm:$0xff] %vm370, %v4139
      %4204 = vst.msk [vmem:[%s305 + $0x1b0] sm:$0xff] %vm370, %v4140
      %4205 = vst.msk [vmem:[%s305 + $0x1b8] sm:$0xff] %vm370, %v4141
      %4206 = vst.msk [vmem:[%s305 + $0x1c0] sm:$0xff] %vm370, %v4142
      %4207 = vst.msk [vmem:[%s305 + $0x1c8] sm:$0xff] %vm370, %v4143
      %4208 = vst.msk [vmem:[%s305 + $0x1d0] sm:$0xff] %vm370, %v4144
      %4209 = vst.msk [vmem:[%s305 + $0x1d8] sm:$0xff] %vm370, %v4145
      %4210 = vst.msk [vmem:[%s305 + $0x1e0] sm:$0xff] %vm370, %v4146
      %4211 = vst.msk [vmem:[%s305 + $0x1e8] sm:$0xff] %vm370, %v4147
      %4212 = vst.msk [vmem:[%s305 + $0x1f0] sm:$0xff] %vm370, %v4148
      %4213 = vst.msk [vmem:[%s305 + $0x1f8] sm:$0xff] %vm370, %v4149
      %p4214 = scmp.lt.s32.totalorder %s19, 1
      %s4215 = scalar_select %p4214, %s19, 1
      %s4216 = smul.addr %s4215, 64
      %s4217 = smul.addr %s4216, 8
      %s4218 = scalar_lea.vmem %s8, %s4217
      // Predicated region
      $region53: #{tpu_custom_call.1} parent=51 // pred_check
        %p4219 = pneg %p210
      $region54: #{tpu_custom_call.1} parent=51 // pred_check_branch
        %4221 = sbr.rel (%p4219) target = $region56
      $region55: #{tpu_custom_call.1} parent=51 // pred_region
        _
      $region56: #{tpu_custom_call.1} parent=51 // pred_fallthru
        _
    $region52: #{tpu_custom_call.1} parent=5 // pred_fallthru
      _
    %p4222 = scmp.le.s32.totalorder 2, %s14
    // Predicated region
    $region57: #{tpu_custom_call.1} parent=5 // pred_check
      %p4223 = pneg %p4222
    $region58: #{tpu_custom_call.1} parent=5 // pred_check_branch
      %4225 = sbr.rel (%p4223) target = $region60
    $region59: #{tpu_custom_call.1} parent=5 // pred_region
      %s4226 = ssub.s32 %s14, 2
      // Predicated region
      $region61: #{tpu_custom_call.1} parent=59 // pred_check
        %p4227 = pneg %p216
      $region62: #{tpu_custom_call.1} parent=59 // pred_check_branch
        %4229 = sbr.rel (%p4227) target = $region64
      $region63: #{tpu_custom_call.1} parent=59 // pred_region
        %p4230 = scmp.lt.s32.totalorder %s20, 1
        %s4231 = scalar_select %p4230, %s20, 1
        %s4232 = smul.addr %s4231, 64
        %s4233 = smul.addr %s4232, 8
        %s4234 = scalar_lea.vmem %s8, %s4233
      $region64: #{tpu_custom_call.1} parent=59 // pred_fallthru
        _
    $region60: #{tpu_custom_call.1} parent=5 // pred_fallthru
      _
  $region6: #{tpu_custom_call.1} parent=0 // loop_footer
    %s18 = sadd.s32 1, %s14
  $region7: #{tpu_custom_call.1} parent=0 // loop_footer_branch
    %13 = sbr.rel target = $region3
  $region8: #{tpu_custom_call.1} parent=0 // loop_exit
    _

</llo_original>
